<compile_context>
chip_gen: v6e
topology: v6e:2x2x1
jax: 0.10.0
libtpu: 0.0.40
codegen_flags: <defaults>
</compile_context>

<pallas_src>
import functools
import math

import jax
import jax.numpy as jnp
from jax.experimental import pallas as pl
from jax.experimental.pallas import tpu as pltpu

LN_EPS = 1e-5

# MXU input dtype: bf16-in / f32-accumulate is the fast path on v5e/v6e/v7x and halves
# weight HBM->VMEM bytes.  Set to jnp.float32 for exact-f32 parity checks vs. PyTorch.
MATMUL_DTYPE = jnp.bfloat16

# Explicit scoped-VMEM budget (bytes): within physical VMEM on v5e/v6e (128 MiB) and
# v7x (64 MiB) while leaving pipelining headroom.
_VMEM_LIMIT = 32 * 1024 * 1024


def _compiler_params(n_grid_axes=1):
    return pltpu.CompilerParams(
        dimension_semantics=("parallel",) * n_grid_axes,
        vmem_limit_bytes=_VMEM_LIMIT,
    )


def _row_tile(M):
    """Largest row tile (multiple of 8, <= 512) dividing M; falls back to full M."""
    for tm in (512, 256, 128, 64, 32, 16, 8):
        if M % tm == 0:
            return tm
    return M


def _col_tile(N):
    """Lane-dense column tile (prefer 512/256 for the 256-wide v6e/v7x MXU)."""
    for tn in (512, 256, 128):
        if N % tn == 0:
            return tn
    return N


def _f_chunk(F):
    """FFN hidden-dim chunk: bound the f32 intermediate to <= 512 columns."""
    if F <= 512:
        return F
    for c in (512, 256, 128):
        if F % c == 0:
            return c
    return F


# --------------------------------------------------------------------------
# Single-buffering for resident (constant index_map) blocks — feature probed.
# --------------------------------------------------------------------------
_BUFFERED_SINGLE = None


def _probe_buffered_single():
    """Return True iff pipeline_mode=pl.Buffered(1) lowers & runs on this JAX/libtpu."""
    try:
        def k(x_ref, w_ref, o_ref):
            o_ref[...] = x_ref[...] + w_ref[...]

        x = jnp.zeros((8, 128), jnp.float32)
        w = jnp.ones((8, 128), jnp.float32)
        out = pl.pallas_call(
            k,
            out_shape=jax.ShapeDtypeStruct((8, 128), jnp.float32),
            grid=(1,),
            in_specs=[
                pl.BlockSpec((8, 128), lambda i: (0, 0)),
                pl.BlockSpec((8, 128), lambda i: (0, 0),
                             pipeline_mode=pl.Buffered(1)),
            ],
            out_specs=pl.BlockSpec((8, 128), lambda i: (0, 0)),
        )(x, w)
        jax.block_until_ready(out)
        return True
    except Exception:
        return False


def _resident_mode():
    global _BUFFERED_SINGLE
    if _BUFFERED_SINGLE is None:
        _BUFFERED_SINGLE = _probe_buffered_single()
    return pl.Buffered(1) if _BUFFERED_SINGLE else None


def _resident_spec(shape):
    """BlockSpec for a grid-invariant (VMEM-resident) block on a 1-D grid."""
    idx = lambda i, n=len(shape): (0,) * n
    mode = _resident_mode()
    if mode is not None:
        return pl.BlockSpec(shape, idx, pipeline_mode=mode)
    return pl.BlockSpec(shape, idx)


# --------------------------------------------------------------------------
# Pallas kernels
# --------------------------------------------------------------------------
def _attention_block_kernel(*refs, nhead, scale, eps, cross):
    """Whole attention sub-layer for one batch element:
       LayerNorm(x + (concat_h softmax(q_h k_h^T) v_h) @ W_o + b_o)
    with q/k/v computed in-kernel from head-split bf16 weights (no HBM intermediates,
    no lane slices, no concat — out-proj is accumulated head by head)."""
    if cross:
        (x_ref, mem_ref, wq_ref, wk_ref, wv_ref, bq_ref, bk_ref, bv_ref,
         wo_ref, bo_ref, g_ref, beta_ref, o_ref) = refs
    else:
        (x_ref, wq_ref, wk_ref, wv_ref, bq_ref, bk_ref, bv_ref,
         wo_ref, bo_ref, g_ref, beta_ref, o_ref) = refs

    x = x_ref[0]                                    # (Sq, D) f32 — also the residual
    x_b = x.astype(MATMUL_DTYPE)
    m_b = mem_ref[0].astype(MATMUL_DTYPE) if cross else x_b

    Sq, D = x.shape
    acc = jnp.zeros((Sq, D), jnp.float32)
    dn = (((1,), (1,)), ((), ()))                   # contract last dims: q @ k.T

    # TODO(synk): for long sequences (S >= ~1k) tile Sq / switch to online-softmax over
    # Sk chunks instead of materializing the full (Sq, Sk) f32 score matrix per head.
    for h in range(nhead):
        qh = jnp.dot(x_b, wq_ref[h], preferred_element_type=jnp.float32) + bq_ref[h]
        kh = jnp.dot(m_b, wk_ref[h], preferred_element_type=jnp.float32) + bk_ref[h]
        vh = jnp.dot(m_b, wv_ref[h], preferred_element_type=jnp.float32) + bv_ref[h]
        s = jax.lax.dot_general(qh.astype(MATMUL_DTYPE), kh.astype(MATMUL_DTYPE), dn,
                                preferred_element_type=jnp.float32) * scale
        s = s - jnp.max(s, axis=-1, keepdims=True)          # f32 softmax
        p = jnp.exp(s)
        p = p * pl.reciprocal(jnp.sum(p, axis=-1, keepdims=True), approx=True)
        oh = jnp.dot(p.astype(MATMUL_DTYPE), vh.astype(MATMUL_DTYPE),
                     preferred_element_type=jnp.float32)
        acc = acc + jnp.dot(oh.astype(MATMUL_DTYPE), wo_ref[h],
                            preferred_element_type=jnp.float32)

    y = acc + bo_ref[...] + x                        # out-proj bias + residual
    mu = jnp.mean(y, axis=-1, keepdims=True)
    var = jnp.mean(jnp.square(y - mu), axis=-1, keepdims=True)
    o_ref[0] = ((y - mu) * jax.lax.rsqrt(var + eps) * g_ref[...] + beta_ref[...]
                ).astype(o_ref.dtype)


def attention_block_pallas(x, mem, p, ln, nhead):
    """x: (B, Sq, D) f32; mem: None (self-attn) or (B, Sk, D) f32.  Grid over batch."""
    B, Sq, D = x.shape
    cross = mem is not None
    hd = D // nhead
    scale = 1.0 / math.sqrt(hd)

    operands = [x]
    in_specs = [pl.BlockSpec((1, Sq, D), lambda b: (b, 0, 0))]
    if cross:
        Sk = mem.shape[1]
        operands.append(mem)
        in_specs.append(pl.BlockSpec((1, Sk, D), lambda b: (b, 0, 0)))

    resident = [p["wq"], p["wk"], p["wv"], p["bq"], p["bk"], p["bv"],
                p["wo"], p["bo"], ln["g"], ln["b"]]
    for a in resident:
        operands.append(a)
        in_specs.append(_resident_spec(a.shape))

    kernel = functools.partial(_attention_block_kernel, nhead=nhead, scale=scale,
                               eps=LN_EPS, cross=cross)
    return pl.pallas_call(
        kernel,
        out_shape=jax.ShapeDtypeStruct((B, Sq, D), jnp.float32),
        grid=(B,),
        in_specs=in_specs,
        out_specs=pl.BlockSpec((1, Sq, D), lambda b: (b, 0, 0)),
        compiler_params=_compiler_params(1),
    )(*operands)


def _ffn_add_ln_kernel(x_ref, w1_ref, b1_ref, w2_ref, b2_ref, g_ref, beta_ref, o_ref,
                       *, eps, f_chunk):
    """LayerNorm(x + relu(x @ W1 + b1) @ W2 + b2), hidden dim processed in chunks."""
    x = x_ref[...]                                   # (tm, D) f32 — residual
    x_b = x.astype(MATMUL_DTYPE)
    F = w1_ref.shape[1]
    acc = jnp.zeros((x.shape[0], o_ref.shape[-1]), jnp.float32)
    for c0 in range(0, F, f_chunk):
        h = jnp.dot(x_b, w1_ref[:, c0:c0 + f_chunk],
                    preferred_element_type=jnp.float32) + b1_ref[:, c0:c0 + f_chunk]
        h = jnp.maximum(h, 0.0)                      # ReLU (nn.Transformer default)
        acc = acc + jnp.dot(h.astype(MATMUL_DTYPE), w2_ref[c0:c0 + f_chunk, :],
                            preferred_element_type=jnp.float32)
    y = acc + b2_ref[...] + x
    mu = jnp.mean(y, axis=-1, keepdims=True)
    var = jnp.mean(jnp.square(y - mu), axis=-1, keepdims=True)
    o_ref[...] = ((y - mu) * jax.lax.rsqrt(var + eps) * g_ref[...] + beta_ref[...]
                  ).astype(o_ref.dtype)


def ffn_add_layernorm_pallas(x2, ffn, ln):
    M, D = x2.shape
    F = ffn["w1"].shape[1]
    tm = _row_tile(M)
    # TODO(synk): at very large d_ff also grid the F axis with a pl.when-initialized
    # accumulator so W1/W2 need not be fully VMEM-resident.
    return pl.pallas_call(
        functools.partial(_ffn_add_ln_kernel, eps=LN_EPS, f_chunk=_f_chunk(F)),
        out_shape=jax.ShapeDtypeStruct((M, D), jnp.float32),
        grid=(M // tm,),
        in_specs=[
            pl.BlockSpec((tm, D), lambda i: (i, 0)),
            _resident_spec((D, F)),
            _resident_spec((1, F)),
            _resident_spec((F, D)),
            _resident_spec((1, D)),
            _resident_spec((1, D)),
            _resident_spec((1, D)),
        ],
        out_specs=pl.BlockSpec((tm, D), lambda i: (i, 0)),
        compiler_params=_compiler_params(1),
    )(x2, ffn["w1"], ffn["b1"], ffn["w2"], ffn["b2"], ln["g"], ln["b"])


def _ln_kernel(x_ref, g_ref, b_ref, o_ref, *, eps):
    y = x_ref[...].astype(jnp.float32)
    mu = jnp.mean(y, axis=-1, keepdims=True)
    var = jnp.mean(jnp.square(y - mu), axis=-1, keepdims=True)
    o_ref[...] = ((y - mu) * jax.lax.rsqrt(var + eps) * g_ref[...] + b_ref[...]
                  ).astype(o_ref.dtype)


def layernorm_pallas(x2, ln):
    """Plain LayerNorm (final encoder/decoder norms)."""
    M, D = x2.shape
    tm = _row_tile(M)
    return pl.pallas_call(
        functools.partial(_ln_kernel, eps=LN_EPS),
        out_shape=jax.ShapeDtypeStruct((M, D), jnp.float32),
        grid=(M // tm,),
        in_specs=[
            pl.BlockSpec((tm, D), lambda i: (i, 0)),
            _resident_spec((1, D)),
            _resident_spec((1, D)),
        ],
        out_specs=pl.BlockSpec((tm, D), lambda i: (i, 0)),
        compiler_params=_compiler_params(1),
    )(x2, ln["g"], ln["b"])


def _linear_kernel(x_ref, w_ref, b_ref, o_ref):
    o_ref[...] = (jnp.dot(x_ref[...].astype(MATMUL_DTYPE), w_ref[...],
                          preferred_element_type=jnp.float32)
                  + b_ref[...]).astype(o_ref.dtype)


def vocab_head_pallas(x2, w, b):
    """x2:(M,D) @ w:(D,Np) + b — N-tiled grid (Np is pre-padded to a 128 multiple)."""
    M, D = x2.shape
    Np = w.shape[1]
    tm = _row_tile(M)
    tn = _col_tile(Np)
    return pl.pallas_call(
        _linear_kernel,
        out_shape=jax.ShapeDtypeStruct((M, Np), jnp.float32),
        grid=(M // tm, Np // tn),
        in_specs=[
            pl.BlockSpec((tm, D), lambda i, j: (i, 0)),
            pl.BlockSpec((D, tn), lambda i, j: (0, j)),
            pl.BlockSpec((1, tn), lambda i, j: (0, j)),
        ],
        out_specs=pl.BlockSpec((tm, tn), lambda i, j: (i, j)),
        compiler_params=_compiler_params(2),
    )(x2, w, b)


# --------------------------------------------------------------------------
# Transformer building blocks (glue in JAX, compute in Pallas)
# --------------------------------------------------------------------------
def encoder_layer(x, p, nhead):
    B, S, D = x.shape
    x = attention_block_pallas(x, None, p["sa"], p["ln1"], nhead)
    y = ffn_add_layernorm_pallas(x.reshape(-1, D), p["ffn"], p["ln2"])
    return y.reshape(B, S, D)


def decoder_layer(x, mem, p, nhead):
    B, S, D = x.shape
    x = attention_block_pallas(x, None, p["sa"], p["ln1"], nhead)
    x = attention_block_pallas(x, mem, p["ca"], p["ln2"], nhead)
    y = ffn_add_layernorm_pallas(x.reshape(-1, D), p["ffn"], p["ln3"])
    return y.reshape(B, S, D)


def forward(params, ids, nhead, vocab):
    """ids: (B, S) int32 tokens  ->  logits (B, S, vocab)."""
    B, S = ids.shape
    D = params["emb"].shape[1]

    # Embedding gather + positional add (plain XLA; gather+add fuse into one pass).
    # TODO(synk): fuse the row gather + pos add into the first attention kernel via
    # PrefetchScalarGridSpec row gather to drop one (B, S, D) HBM round-trip.
    emb = params["emb"][ids] + params["pos"][:, :S]            # (B, S, D) f32

    # Encoder stack + final encoder LayerNorm.
    mem = emb
    for lyr in params["enc_layers"]:
        mem = encoder_layer(mem, lyr, nhead)
    mem = layernorm_pallas(mem.reshape(-1, D), params["enc_norm"]).reshape(B, S, D)

    # Decoder stack (tgt = emb, memory = encoder output) + final decoder LayerNorm.
    out = emb
    for lyr in params["dec_layers"]:
        out = decoder_layer(out, mem, lyr, nhead)
    out = layernorm_pallas(out.reshape(-1, D), params["dec_norm"])

    # Vocab head (f32 logits, lane-padded vocab; strip padding afterwards).
    logits = vocab_head_pallas(out, params["w_dec"], params["b_dec"])
    return logits[:, :vocab].reshape(B, S, vocab)


# --------------------------------------------------------------------------
# Deterministic synthetic parameter init (module-faithful shapes, f32)
# --------------------------------------------------------------------------
def init_params(key, vocab, d, nhead, num_layers, max_len, d_ff):
    keys = iter(jax.random.split(key, 4096))

    def nrm(shape, scale=0.05):
        return (scale * jax.random.normal(next(keys), shape)).astype(jnp.float32)

    def mha_p():
        return dict(w_in=nrm((d, 3 * d)), b_in=nrm((3 * d,), 0.01),
                    w_o=nrm((d, d)), b_o=jnp.zeros((d,), jnp.float32))

    def ffn_p():
        return dict(w1=nrm((d, d_ff)), b1=nrm((d_ff,), 0.01),
                    w2=nrm((d_ff, d)), b2=nrm((d,), 0.01))

    def ln_p():
        return dict(g=jnp.ones((d,), jnp.float32), b=jnp.zeros((d,), jnp.float32))

    emb = nrm((vocab, d), 0.1).at[0].set(0.0)      # padding_idx=0 -> zero row
    pos = nrm((1, max_len, d), 0.1)

    enc_layers = [dict(sa=mha_p(), ffn=ffn_p(), ln1=ln_p(), ln2=ln_p())
                  for _ in range(num_layers)]
    dec_layers = [dict(sa=mha_p(), ca=mha_p(), ffn=ffn_p(),
                       ln1=ln_p(), ln2=ln_p(), ln3=ln_p())
                  for _ in range(num_layers)]

    return dict(emb=emb, pos=pos,
                enc_layers=enc_layers, dec_layers=dec_layers,
                enc_norm=ln_p(), dec_norm=ln_p(),
                w_dec=nrm((d, vocab)), b_dec=nrm((vocab,), 0.01))


def prepare_params(raw, nhead):
    """One-time kernel-layout prep: bf16 weights, per-head split attention weights,
    (1, N) biases, padded vocab head.  Done once outside the per-step forward."""
    _resident_mode()  # warm the Buffered(1) feature probe outside jit tracing
    wdt = MATMUL_DTYPE
    d = raw["emb"].shape[1]
    hd = d // nhead

    def split_w(w):        # (D, D) -> (nhead, D, hd)
        return jnp.transpose(w.reshape(d, nhead, hd), (1, 0, 2)).astype(wdt)

    def split_b(b):        # (D,) -> (nhead, 1, hd) f32
        return b.reshape(nhead, 1, hd).astype(jnp.float32)

    def prep_mha(p):
        w_in, b_in = p["w_in"], p["b_in"]
        return dict(
            wq=split_w(w_in[:, :d]), wk=split_w(w_in[:, d:2 * d]), wv=split_w(w_in[:, 2 * d:]),
            bq=split_b(b_in[:d]), bk=split_b(b_in[d:2 * d]), bv=split_b(b_in[2 * d:]),
            wo=p["w_o"].reshape(nhead, hd, d).astype(wdt),
            bo=p["b_o"].reshape(1, d).astype(jnp.float32),
        )

    def prep_ffn(f):
        return dict(w1=f["w1"].astype(wdt), b1=f["b1"].reshape(1, -1).astype(jnp.float32),
                    w2=f["w2"].astype(wdt), b2=f["b2"].reshape(1, -1).astype(jnp.float32))

    def prep_ln(l):
        return dict(g=l["g"].reshape(1, d).astype(jnp.float32),
                    b=l["b"].reshape(1, d).astype(jnp.float32))

    vocab = raw["w_dec"].shape[1]
    np_pad = ((vocab + 127) // 128) * 128           # lane-dense vocab head stores
    w_dec = jnp.zeros((d, np_pad), wdt).at[:, :vocab].set(raw["w_dec"].astype(wdt))
    b_dec = jnp.zeros((1, np_pad), jnp.float32).at[:, :vocab].set(raw["b_dec"])

    enc_layers = [dict(sa=prep_mha(l["sa"]), ffn=prep_ffn(l["ffn"]),
                       ln1=prep_ln(l["ln1"]), ln2=prep_ln(l["ln2"]))
                  for l in raw["enc_layers"]]
    dec_layers = [dict(sa=prep_mha(l["sa"]), ca=prep_mha(l["ca"]), ffn=prep_ffn(l["ffn"]),
                       ln1=prep_ln(l["ln1"]), ln2=prep_ln(l["ln2"]), ln3=prep_ln(l["ln3"]))
                  for l in raw["dec_layers"]]

    return dict(emb=raw["emb"], pos=raw["pos"],
                enc_layers=enc_layers, dec_layers=dec_layers,
                enc_norm=prep_ln(raw["enc_norm"]), dec_norm=prep_ln(raw["dec_norm"]),
                w_dec=w_dec, b_dec=b_dec)


# --------------------------------------------------------------------------
if __name__ == "__main__":
    # Small, forward-consistent shapes.
    VOCAB = 50
    D_MODEL = 32
    NHEAD = 4
    NUM_LAYERS = 2
    MAX_LEN = 16
    D_FF = 64          # nn.Transformer default is 2048; kept small for the demo
    B, S = 2, 8

    key = jax.random.PRNGKey(0)
    raw_params = init_params(key, VOCAB, D_MODEL, NHEAD, NUM_LAYERS, MAX_LEN, D_FF)
    params = prepare_params(raw_params, NHEAD)
    ids = jax.random.randint(jax.random.fold_in(key, 123), (B, S), 0, VOCAB,
                             dtype=jnp.int32)

    fwd = jax.jit(functools.partial(forward, nhead=NHEAD, vocab=VOCAB))
    logits = fwd(params, ids)
    jax.block_until_ready(logits)

    assert logits.shape == (B, S, VOCAB), logits.shape
    assert bool(jnp.all(jnp.isfinite(logits)))
    print("KERNEL_OK")
</pallas_src>

<mosaic_0001>
module attributes {stable_mosaic.version = 11 : i64} {
  func.func @k(%arg0: i32, %arg1: memref<8x128xf32, #tpu.memory_space<vmem>>, %arg2: memref<8x128xf32, #tpu.memory_space<vmem>>, %arg3: memref<8x128xf32, #tpu.memory_space<vmem>>) attributes {dimension_semantics = [#tpu.dimension_semantics<arbitrary>], iteration_bounds = array<i64: 1>, scalar_prefetch = 0 : i64, scratch_operands = 0 : i64, tpu.core_type = #tpu.core_type<tc>, window_params = [{pipeline_mode = #tpu.pipeline_mode<synchronous>, transform_indices = @transform_0, window_bounds = array<i64: 8, 128>}, {pipeline_mode = #tpu.pipeline_mode<synchronous>, transform_indices = @transform_1, window_bounds = array<i64: 8, 128>}, {pipeline_mode = #tpu.pipeline_mode<synchronous>, transform_indices = @transform_2, window_bounds = array<i64: 8, 128>}]} {
    %c0 = arith.constant 0 : index
    %c0_0 = arith.constant 0 : index
    %0 = vector.load %arg1[%c0, %c0_0] : memref<8x128xf32, #tpu.memory_space<vmem>>, vector<8x128xf32>
    %c0_1 = arith.constant 0 : index
    %c0_2 = arith.constant 0 : index
    %1 = vector.load %arg2[%c0_1, %c0_2] : memref<8x128xf32, #tpu.memory_space<vmem>>, vector<8x128xf32>
    %2 = arith.addf %0, %1 : vector<8x128xf32>
    %c0_3 = arith.constant 0 : index
    %c0_4 = arith.constant 0 : index
    %3 = vector.load %arg3[%c0_3, %c0_4] : memref<8x128xf32, #tpu.memory_space<vmem>>, vector<8x128xf32>
    tpu.vector_store %arg3[%c0_3, %c0_4], %2 {strides = array<i32>} : memref<8x128xf32, #tpu.memory_space<vmem>>, vector<8x128xf32>,
    return
  }
  func.func @transform_0(%arg0: i32) -> (i32, i32) {
    %c0_i32 = arith.constant 0 : i32
    %c0_i32_0 = arith.constant 0 : i32
    %c0_i32_1 = arith.constant 0 : i32
    return %c0_i32, %c0_i32_0 : i32, i32
  }
  func.func @transform_1(%arg0: i32) -> (i32, i32) {
    %c0_i32 = arith.constant 0 : i32
    %c0_i32_0 = arith.constant 0 : i32
    %c0_i32_1 = arith.constant 0 : i32
    return %c0_i32, %c0_i32_0 : i32, i32
  }
  func.func @transform_2(%arg0: i32) -> (i32, i32) {
    %c0_i32 = arith.constant 0 : i32
    %c0_i32_0 = arith.constant 0 : i32
    %c0_i32_1 = arith.constant 0 : i32
    return %c0_i32, %c0_i32_0 : i32, i32
  }
}

module attributes {stable_mosaic.version = 11 : i64} {
  func.func @_attention_block_kernel(%arg0: i32, %arg1: memref<1x8x32xf32, #tpu.memory_space<vmem>>, %arg2: memref<4x32x8xbf16, #tpu.memory_space<vmem>>, %arg3: memref<4x32x8xbf16, #tpu.memory_space<vmem>>, %arg4: memref<4x32x8xbf16, #tpu.memory_space<vmem>>, %arg5: memref<4x1x8xf32, #tpu.memory_space<vmem>>, %arg6: memref<4x1x8xf32, #tpu.memory_space<vmem>>, %arg7: memref<4x1x8xf32, #tpu.memory_space<vmem>>, %arg8: memref<4x8x32xbf16, #tpu.memory_space<vmem>>, %arg9: memref<1x32xf32, #tpu.memory_space<vmem>>, %arg10: memref<1x32xf32, #tpu.memory_space<vmem>>, %arg11: memref<1x32xf32, #tpu.memory_space<vmem>>, %arg12: memref<1x8x32xf32, #tpu.memory_space<vmem>>) attributes {dimension_semantics = [#tpu.dimension_semantics<parallel>], iteration_bounds = array<i64: 2>, scalar_prefetch = 0 : i64, scratch_operands = 0 : i64, tpu.core_type = #tpu.core_type<tc>, window_params = [{transform_indices = @transform_0, window_bounds = array<i64: 1, 8, 32>}, {pipeline_mode = #tpu.pipeline_mode<synchronous>, transform_indices = @transform_1, window_bounds = array<i64: 4, 32, 8>}, {pipeline_mode = #tpu.pipeline_mode<synchronous>, transform_indices = @transform_2, window_bounds = array<i64: 4, 32, 8>}, {pipeline_mode = #tpu.pipeline_mode<synchronous>, transform_indices = @transform_3, window_bounds = array<i64: 4, 32, 8>}, {pipeline_mode = #tpu.pipeline_mode<synchronous>, transform_indices = @transform_4, window_bounds = array<i64: 4, 1, 8>}, {pipeline_mode = #tpu.pipeline_mode<synchronous>, transform_indices = @transform_5, window_bounds = array<i64: 4, 1, 8>}, {pipeline_mode = #tpu.pipeline_mode<synchronous>, transform_indices = @transform_6, window_bounds = array<i64: 4, 1, 8>}, {pipeline_mode = #tpu.pipeline_mode<synchronous>, transform_indices = @transform_7, window_bounds = array<i64: 4, 8, 32>}, {pipeline_mode = #tpu.pipeline_mode<synchronous>, transform_indices = @transform_8, window_bounds = array<i64: 1, 32>}, {pipeline_mode = #tpu.pipeline_mode<synchronous>, transform_indices = @transform_9, window_bounds = array<i64: 1, 32>}, {pipeline_mode = #tpu.pipeline_mode<synchronous>, transform_indices = @transform_10, window_bounds = array<i64: 1, 32>}, {transform_indices = @transform_11, window_bounds = array<i64: 1, 8, 32>}]} {
    %c0 = arith.constant 0 : index
    %c0_0 = arith.constant 0 : index
    %c0_1 = arith.constant 0 : index
    %0 = vector.load %arg1[%c0, %c0_0, %c0_1] : memref<1x8x32xf32, #tpu.memory_space<vmem>>, vector<1x8x32xf32>
    %1 = vector.shape_cast %0 : vector<1x8x32xf32> to vector<8x32xf32>
    %2 = arith.truncf %1 : vector<8x32xf32> to vector<8x32xbf16>
    %cst = arith.constant 0.000000e+00 : f32
    %3 = vector.broadcast %cst : f32 to vector<8x32xf32>
    %c0_2 = arith.constant 0 : index
    %c0_3 = arith.constant 0 : index
    %c0_4 = arith.constant 0 : index
    %4 = vector.load %arg2[%c0_2, %c0_3, %c0_4] : memref<4x32x8xbf16, #tpu.memory_space<vmem>>, vector<1x32x8xbf16>
    %5 = vector.shape_cast %4 : vector<1x32x8xbf16> to vector<32x8xbf16>
    %cst_5 = arith.constant dense<0.000000e+00> : vector<8x8xf32>
    %6 = tpu.matmul %2, %5, %cst_5 {dimension_numbers = #tpu.dot_dimension_numbers<[1], [0], [0], [1], [0, 0, 1, 1], [], []>} : vector<8x32xbf16>, vector<32x8xbf16>, vector<8x8xf32> -> vector<8x8xf32>
    %c0_6 = arith.constant 0 : index
    %c0_7 = arith.constant 0 : index
    %c0_8 = arith.constant 0 : index
    %7 = vector.load %arg5[%c0_6, %c0_7, %c0_8] : memref<4x1x8xf32, #tpu.memory_space<vmem>>, vector<1x1x8xf32>
    %8 = vector.shape_cast %7 : vector<1x1x8xf32> to vector<1x8xf32>
    %9 = vector.broadcast %8 : vector<1x8xf32> to vector<8x8xf32>
    %10 = arith.addf %6, %9 : vector<8x8xf32>
    %c0_9 = arith.constant 0 : index
    %c0_10 = arith.constant 0 : index
    %c0_11 = arith.constant 0 : index
    %11 = vector.load %arg3[%c0_9, %c0_10, %c0_11] : memref<4x32x8xbf16, #tpu.memory_space<vmem>>, vector<1x32x8xbf16>
    %12 = vector.shape_cast %11 : vector<1x32x8xbf16> to vector<32x8xbf16>
    %cst_12 = arith.constant dense<0.000000e+00> : vector<8x8xf32>
    %13 = tpu.matmul %2, %12, %cst_12 {dimension_numbers = #tpu.dot_dimension_numbers<[1], [0], [0], [1], [0, 0, 1, 1], [], []>} : vector<8x32xbf16>, vector<32x8xbf16>, vector<8x8xf32> -> vector<8x8xf32>
    %c0_13 = arith.constant 0 : index
    %c0_14 = arith.constant 0 : index
    %c0_15 = arith.constant 0 : index
    %14 = vector.load %arg6[%c0_13, %c0_14, %c0_15] : memref<4x1x8xf32, #tpu.memory_space<vmem>>, vector<1x1x8xf32>
    %15 = vector.shape_cast %14 : vector<1x1x8xf32> to vector<1x8xf32>
    %16 = vector.broadcast %15 : vector<1x8xf32> to vector<8x8xf32>
    %17 = arith.addf %13, %16 : vector<8x8xf32>
    %c0_16 = arith.constant 0 : index
    %c0_17 = arith.constant 0 : index
    %c0_18 = arith.constant 0 : index
    %18 = vector.load %arg4[%c0_16, %c0_17, %c0_18] : memref<4x32x8xbf16, #tpu.memory_space<vmem>>, vector<1x32x8xbf16>
    %19 = vector.shape_cast %18 : vector<1x32x8xbf16> to vector<32x8xbf16>
    %cst_19 = arith.constant dense<0.000000e+00> : vector<8x8xf32>
    %20 = tpu.matmul %2, %19, %cst_19 {dimension_numbers = #tpu.dot_dimension_numbers<[1], [0], [0], [1], [0, 0, 1, 1], [], []>} : vector<8x32xbf16>, vector<32x8xbf16>, vector<8x8xf32> -> vector<8x8xf32>
    %c0_20 = arith.constant 0 : index
    %c0_21 = arith.constant 0 : index
    %c0_22 = arith.constant 0 : index
    %21 = vector.load %arg7[%c0_20, %c0_21, %c0_22] : memref<4x1x8xf32, #tpu.memory_space<vmem>>, vector<1x1x8xf32>
    %22 = vector.shape_cast %21 : vector<1x1x8xf32> to vector<1x8xf32>
    %23 = vector.broadcast %22 : vector<1x8xf32> to vector<8x8xf32>
    %24 = arith.addf %20, %23 : vector<8x8xf32>
    %25 = arith.truncf %10 : vector<8x8xf32> to vector<8x8xbf16>
    %26 = arith.truncf %17 : vector<8x8xf32> to vector<8x8xbf16>
    %cst_23 = arith.constant dense<0.000000e+00> : vector<8x8xf32>
    %27 = tpu.matmul %25, %26, %cst_23 {dimension_numbers = #tpu.dot_dimension_numbers<[1], [1], [0], [0], [0, 0, 1, 0], [], []>} : vector<8x8xbf16>, vector<8x8xbf16>, vector<8x8xf32> -> vector<8x8xf32>
    %cst_24 = arith.constant 0.353553385 : f32
    %28 = vector.broadcast %cst_24 : f32 to vector<8x8xf32>
    %29 = arith.mulf %27, %28 : vector<8x8xf32>
    %cst_25 = arith.constant dense<0xFF800000> : vector<8xf32>
    %30 = vector.multi_reduction <maximumf>, %29, %cst_25 [1] : vector<8x8xf32> to vector<8xf32>
    %31 = vector.shape_cast %30 : vector<8xf32> to vector<8x1xf32>
    %32 = vector.broadcast %31 : vector<8x1xf32> to vector<8x8xf32>
    %33 = arith.subf %29, %32 : vector<8x8xf32>
    %34 = math.exp %33 : vector<8x8xf32>
    %cst_26 = arith.constant dense<0.000000e+00> : vector<8xf32>
    %35 = vector.multi_reduction <add>, %34, %cst_26 [1] : vector<8x8xf32> to vector<8xf32>
    %36 = vector.shape_cast %35 : vector<8xf32> to vector<8x1xf32>
    %37 = tpu.reciprocal %36 {approx = true} : vector<8x1xf32> -> vector<8x1xf32>
    %38 = vector.broadcast %37 : vector<8x1xf32> to vector<8x8xf32>
    %39 = arith.mulf %34, %38 : vector<8x8xf32>
    %40 = arith.truncf %39 : vector<8x8xf32> to vector<8x8xbf16>
    %41 = arith.truncf %24 : vector<8x8xf32> to vector<8x8xbf16>
    %cst_27 = arith.constant dense<0.000000e+00> : vector<8x8xf32>
    %42 = tpu.matmul %40, %41, %cst_27 {dimension_numbers = #tpu.dot_dimension_numbers<[1], [0], [0], [1], [0, 0, 1, 1], [], []>} : vector<8x8xbf16>, vector<8x8xbf16>, vector<8x8xf32> -> vector<8x8xf32>
    %43 = arith.truncf %42 : vector<8x8xf32> to vector<8x8xbf16>
    %c0_28 = arith.constant 0 : index
    %c0_29 = arith.constant 0 : index
    %c0_30 = arith.constant 0 : index
    %44 = vector.load %arg8[%c0_28, %c0_29, %c0_30] : memref<4x8x32xbf16, #tpu.memory_space<vmem>>, vector<1x8x32xbf16>
    %45 = vector.shape_cast %44 : vector<1x8x32xbf16> to vector<8x32xbf16>
    %cst_31 = arith.constant dense<0.000000e+00> : vector<8x32xf32>
    %46 = tpu.matmul %43, %45, %cst_31 {dimension_numbers = #tpu.dot_dimension_numbers<[1], [0], [0], [1], [0, 0, 1, 1], [], []>} : vector<8x8xbf16>, vector<8x32xbf16>, vector<8x32xf32> -> vector<8x32xf32>
    %47 = arith.addf %3, %46 : vector<8x32xf32>
    %c1 = arith.constant 1 : index
    %c0_32 = arith.constant 0 : index
    %c0_33 = arith.constant 0 : index
    %48 = vector.load %arg2[%c1, %c0_32, %c0_33] : memref<4x32x8xbf16, #tpu.memory_space<vmem>>, vector<1x32x8xbf16>
    %49 = vector.shape_cast %48 : vector<1x32x8xbf16> to vector<32x8xbf16>
    %cst_34 = arith.constant dense<0.000000e+00> : vector<8x8xf32>
    %50 = tpu.matmul %2, %49, %cst_34 {dimension_numbers = #tpu.dot_dimension_numbers<[1], [0], [0], [1], [0, 0, 1, 1], [], []>} : vector<8x32xbf16>, vector<32x8xbf16>, vector<8x8xf32> -> vector<8x8xf32>
    %c1_35 = arith.constant 1 : index
    %c0_36 = arith.constant 0 : index
    %c0_37 = arith.constant 0 : index
    %51 = vector.load %arg5[%c1_35, %c0_36, %c0_37] : memref<4x1x8xf32, #tpu.memory_space<vmem>>, vector<1x1x8xf32>
    %52 = vector.shape_cast %51 : vector<1x1x8xf32> to vector<1x8xf32>
    %53 = vector.broadcast %52 : vector<1x8xf32> to vector<8x8xf32>
    %54 = arith.addf %50, %53 : vector<8x8xf32>
    %c1_38 = arith.constant 1 : index
    %c0_39 = arith.constant 0 : index
    %c0_40 = arith.constant 0 : index
    %55 = vector.load %arg3[%c1_38, %c0_39, %c0_40] : memref<4x32x8xbf16, #tpu.memory_space<vmem>>, vector<1x32x8xbf16>
    %56 = vector.shape_cast %55 : vector<1x32x8xbf16> to vector<32x8xbf16>
    %cst_41 = arith.constant dense<0.000000e+00> : vector<8x8xf32>
    %57 = tpu.matmul %2, %56, %cst_41 {dimension_numbers = #tpu.dot_dimension_numbers<[1], [0], [0], [1], [0, 0, 1, 1], [], []>} : vector<8x32xbf16>, vector<32x8xbf16>, vector<8x8xf32> -> vector<8x8xf32>
    %c1_42 = arith.constant 1 : index
    %c0_43 = arith.constant 0 : index
    %c0_44 = arith.constant 0 : index
    %58 = vector.load %arg6[%c1_42, %c0_43, %c0_44] : memref<4x1x8xf32, #tpu.memory_space<vmem>>, vector<1x1x8xf32>
    %59 = vector.shape_cast %58 : vector<1x1x8xf32> to vector<1x8xf32>
    %60 = vector.broadcast %59 : vector<1x8xf32> to vector<8x8xf32>
    %61 = arith.addf %57, %60 : vector<8x8xf32>
    %c1_45 = arith.constant 1 : index
    %c0_46 = arith.constant 0 : index
    %c0_47 = arith.constant 0 : index
    %62 = vector.load %arg4[%c1_45, %c0_46, %c0_47] : memref<4x32x8xbf16, #tpu.memory_space<vmem>>, vector<1x32x8xbf16>
    %63 = vector.shape_cast %62 : vector<1x32x8xbf16> to vector<32x8xbf16>
    %cst_48 = arith.constant dense<0.000000e+00> : vector<8x8xf32>
    %64 = tpu.matmul %2, %63, %cst_48 {dimension_numbers = #tpu.dot_dimension_numbers<[1], [0], [0], [1], [0, 0, 1, 1], [], []>} : vector<8x32xbf16>, vector<32x8xbf16>, vector<8x8xf32> -> vector<8x8xf32>
    %c1_49 = arith.constant 1 : index
    %c0_50 = arith.constant 0 : index
    %c0_51 = arith.constant 0 : index
    %65 = vector.load %arg7[%c1_49, %c0_50, %c0_51] : memref<4x1x8xf32, #tpu.memory_space<vmem>>, vector<1x1x8xf32>
    %66 = vector.shape_cast %65 : vector<1x1x8xf32> to vector<1x8xf32>
    %67 = vector.broadcast %66 : vector<1x8xf32> to vector<8x8xf32>
    %68 = arith.addf %64, %67 : vector<8x8xf32>
    %69 = arith.truncf %54 : vector<8x8xf32> to vector<8x8xbf16>
    %70 = arith.truncf %61 : vector<8x8xf32> to vector<8x8xbf16>
    %cst_52 = arith.constant dense<0.000000e+00> : vector<8x8xf32>
    %71 = tpu.matmul %69, %70, %cst_52 {dimension_numbers = #tpu.dot_dimension_numbers<[1], [1], [0], [0], [0, 0, 1, 0], [], []>} : vector<8x8xbf16>, vector<8x8xbf16>, vector<8x8xf32> -> vector<8x8xf32>
    %cst_53 = arith.constant 0.353553385 : f32
    %72 = vector.broadcast %cst_53 : f32 to vector<8x8xf32>
    %73 = arith.mulf %71, %72 : vector<8x8xf32>
    %cst_54 = arith.constant dense<0xFF800000> : vector<8xf32>
    %74 = vector.multi_reduction <maximumf>, %73, %cst_54 [1] : vector<8x8xf32> to vector<8xf32>
    %75 = vector.shape_cast %74 : vector<8xf32> to vector<8x1xf32>
    %76 = vector.broadcast %75 : vector<8x1xf32> to vector<8x8xf32>
    %77 = arith.subf %73, %76 : vector<8x8xf32>
    %78 = math.exp %77 : vector<8x8xf32>
    %cst_55 = arith.constant dense<0.000000e+00> : vector<8xf32>
    %79 = vector.multi_reduction <add>, %78, %cst_55 [1] : vector<8x8xf32> to vector<8xf32>
    %80 = vector.shape_cast %79 : vector<8xf32> to vector<8x1xf32>
    %81 = tpu.reciprocal %80 {approx = true} : vector<8x1xf32> -> vector<8x1xf32>
    %82 = vector.broadcast %81 : vector<8x1xf32> to vector<8x8xf32>
    %83 = arith.mulf %78, %82 : vector<8x8xf32>
    %84 = arith.truncf %83 : vector<8x8xf32> to vector<8x8xbf16>
    %85 = arith.truncf %68 : vector<8x8xf32> to vector<8x8xbf16>
    %cst_56 = arith.constant dense<0.000000e+00> : vector<8x8xf32>
    %86 = tpu.matmul %84, %85, %cst_56 {dimension_numbers = #tpu.dot_dimension_numbers<[1], [0], [0], [1], [0, 0, 1, 1], [], []>} : vector<8x8xbf16>, vector<8x8xbf16>, vector<8x8xf32> -> vector<8x8xf32>
    %87 = arith.truncf %86 : vector<8x8xf32> to vector<8x8xbf16>
    %c1_57 = arith.constant 1 : index
    %c0_58 = arith.constant 0 : index
    %c0_59 = arith.constant 0 : index
    %88 = vector.load %arg8[%c1_57, %c0_58, %c0_59] : memref<4x8x32xbf16, #tpu.memory_space<vmem>>, vector<1x8x32xbf16>
    %89 = vector.shape_cast %88 : vector<1x8x32xbf16> to vector<8x32xbf16>
    %cst_60 = arith.constant dense<0.000000e+00> : vector<8x32xf32>
    %90 = tpu.matmul %87, %89, %cst_60 {dimension_numbers = #tpu.dot_dimension_numbers<[1], [0], [0], [1], [0, 0, 1, 1], [], []>} : vector<8x8xbf16>, vector<8x32xbf16>, vector<8x32xf32> -> vector<8x32xf32>
    %91 = arith.addf %47, %90 : vector<8x32xf32>
    %c2 = arith.constant 2 : index
    %c0_61 = arith.constant 0 : index
    %c0_62 = arith.constant 0 : index
    %92 = vector.load %arg2[%c2, %c0_61, %c0_62] : memref<4x32x8xbf16, #tpu.memory_space<vmem>>, vector<1x32x8xbf16>
    %93 = vector.shape_cast %92 : vector<1x32x8xbf16> to vector<32x8xbf16>
    %cst_63 = arith.constant dense<0.000000e+00> : vector<8x8xf32>
    %94 = tpu.matmul %2, %93, %cst_63 {dimension_numbers = #tpu.dot_dimension_numbers<[1], [0], [0], [1], [0, 0, 1, 1], [], []>} : vector<8x32xbf16>, vector<32x8xbf16>, vector<8x8xf32> -> vector<8x8xf32>
    %c2_64 = arith.constant 2 : index
    %c0_65 = arith.constant 0 : index
    %c0_66 = arith.constant 0 : index
    %95 = vector.load %arg5[%c2_64, %c0_65, %c0_66] : memref<4x1x8xf32, #tpu.memory_space<vmem>>, vector<1x1x8xf32>
    %96 = vector.shape_cast %95 : vector<1x1x8xf32> to vector<1x8xf32>
    %97 = vector.broadcast %96 : vector<1x8xf32> to vector<8x8xf32>
    %98 = arith.addf %94, %97 : vector<8x8xf32>
    %c2_67 = arith.constant 2 : index
    %c0_68 = arith.constant 0 : index
    %c0_69 = arith.constant 0 : index
    %99 = vector.load %arg3[%c2_67, %c0_68, %c0_69] : memref<4x32x8xbf16, #tpu.memory_space<vmem>>, vector<1x32x8xbf16>
    %100 = vector.shape_cast %99 : vector<1x32x8xbf16> to vector<32x8xbf16>
    %cst_70 = arith.constant dense<0.000000e+00> : vector<8x8xf32>
    %101 = tpu.matmul %2, %100, %cst_70 {dimension_numbers = #tpu.dot_dimension_numbers<[1], [0], [0], [1], [0, 0, 1, 1], [], []>} : vector<8x32xbf16>, vector<32x8xbf16>, vector<8x8xf32> -> vector<8x8xf32>
    %c2_71 = arith.constant 2 : index
    %c0_72 = arith.constant 0 : index
    %c0_73 = arith.constant 0 : index
    %102 = vector.load %arg6[%c2_71, %c0_72, %c0_73] : memref<4x1x8xf32, #tpu.memory_space<vmem>>, vector<1x1x8xf32>
    %103 = vector.shape_cast %102 : vector<1x1x8xf32> to vector<1x8xf32>
    %104 = vector.broadcast %103 : vector<1x8xf32> to vector<8x8xf32>
    %105 = arith.addf %101, %104 : vector<8x8xf32>
    %c2_74 = arith.constant 2 : index
    %c0_75 = arith.constant 0 : index
    %c0_76 = arith.constant 0 : index
    %106 = vector.load %arg4[%c2_74, %c0_75, %c0_76] : memref<4x32x8xbf16, #tpu.memory_space<vmem>>, vector<1x32x8xbf16>
    %107 = vector.shape_cast %106 : vector<1x32x8xbf16> to vector<32x8xbf16>
    %cst_77 = arith.constant dense<0.000000e+00> : vector<8x8xf32>
    %108 = tpu.matmul %2, %107, %cst_77 {dimension_numbers = #tpu.dot_dimension_numbers<[1], [0], [0], [1], [0, 0, 1, 1], [], []>} : vector<8x32xbf16>, vector<32x8xbf16>, vector<8x8xf32> -> vector<8x8xf32>
    %c2_78 = arith.constant 2 : index
    %c0_79 = arith.constant 0 : index
    %c0_80 = arith.constant 0 : index
    %109 = vector.load %arg7[%c2_78, %c0_79, %c0_80] : memref<4x1x8xf32, #tpu.memory_space<vmem>>, vector<1x1x8xf32>
    %110 = vector.shape_cast %109 : vector<1x1x8xf32> to vector<1x8xf32>
    %111 = vector.broadcast %110 : vector<1x8xf32> to vector<8x8xf32>
    %112 = arith.addf %108, %111 : vector<8x8xf32>
    %113 = arith.truncf %98 : vector<8x8xf32> to vector<8x8xbf16>
    %114 = arith.truncf %105 : vector<8x8xf32> to vector<8x8xbf16>
    %cst_81 = arith.constant dense<0.000000e+00> : vector<8x8xf32>
    %115 = tpu.matmul %113, %114, %cst_81 {dimension_numbers = #tpu.dot_dimension_numbers<[1], [1], [0], [0], [0, 0, 1, 0], [], []>} : vector<8x8xbf16>, vector<8x8xbf16>, vector<8x8xf32> -> vector<8x8xf32>
    %cst_82 = arith.constant 0.353553385 : f32
    %116 = vector.broadcast %cst_82 : f32 to vector<8x8xf32>
    %117 = arith.mulf %115, %116 : vector<8x8xf32>
    %cst_83 = arith.constant dense<0xFF800000> : vector<8xf32>
    %118 = vector.multi_reduction <maximumf>, %117, %cst_83 [1] : vector<8x8xf32> to vector<8xf32>
    %119 = vector.shape_cast %118 : vector<8xf32> to vector<8x1xf32>
    %120 = vector.broadcast %119 : vector<8x1xf32> to vector<8x8xf32>
    %121 = arith.subf %117, %120 : vector<8x8xf32>
    %122 = math.exp %121 : vector<8x8xf32>
    %cst_84 = arith.constant dense<0.000000e+00> : vector<8xf32>
    %123 = vector.multi_reduction <add>, %122, %cst_84 [1] : vector<8x8xf32> to vector<8xf32>
    %124 = vector.shape_cast %123 : vector<8xf32> to vector<8x1xf32>
    %125 = tpu.reciprocal %124 {approx = true} : vector<8x1xf32> -> vector<8x1xf32>
    %126 = vector.broadcast %125 : vector<8x1xf32> to vector<8x8xf32>
    %127 = arith.mulf %122, %126 : vector<8x8xf32>
    %128 = arith.truncf %127 : vector<8x8xf32> to vector<8x8xbf16>
    %129 = arith.truncf %112 : vector<8x8xf32> to vector<8x8xbf16>
    %cst_85 = arith.constant dense<0.000000e+00> : vector<8x8xf32>
    %130 = tpu.matmul %128, %129, %cst_85 {dimension_numbers = #tpu.dot_dimension_numbers<[1], [0], [0], [1], [0, 0, 1, 1], [], []>} : vector<8x8xbf16>, vector<8x8xbf16>, vector<8x8xf32> -> vector<8x8xf32>
    %131 = arith.truncf %130 : vector<8x8xf32> to vector<8x8xbf16>
    %c2_86 = arith.constant 2 : index
    %c0_87 = arith.constant 0 : index
    %c0_88 = arith.constant 0 : index
    %132 = vector.load %arg8[%c2_86, %c0_87, %c0_88] : memref<4x8x32xbf16, #tpu.memory_space<vmem>>, vector<1x8x32xbf16>
    %133 = vector.shape_cast %132 : vector<1x8x32xbf16> to vector<8x32xbf16>
    %cst_89 = arith.constant dense<0.000000e+00> : vector<8x32xf32>
    %134 = tpu.matmul %131, %133, %cst_89 {dimension_numbers = #tpu.dot_dimension_numbers<[1], [0], [0], [1], [0, 0, 1, 1], [], []>} : vector<8x8xbf16>, vector<8x32xbf16>, vector<8x32xf32> -> vector<8x32xf32>
    %135 = arith.addf %91, %134 : vector<8x32xf32>
    %c3 = arith.constant 3 : index
    %c0_90 = arith.constant 0 : index
    %c0_91 = arith.constant 0 : index
    %136 = vector.load %arg2[%c3, %c0_90, %c0_91] : memref<4x32x8xbf16, #tpu.memory_space<vmem>>, vector<1x32x8xbf16>
    %137 = vector.shape_cast %136 : vector<1x32x8xbf16> to vector<32x8xbf16>
    %cst_92 = arith.constant dense<0.000000e+00> : vector<8x8xf32>
    %138 = tpu.matmul %2, %137, %cst_92 {dimension_numbers = #tpu.dot_dimension_numbers<[1], [0], [0], [1], [0, 0, 1, 1], [], []>} : vector<8x32xbf16>, vector<32x8xbf16>, vector<8x8xf32> -> vector<8x8xf32>
    %c3_93 = arith.constant 3 : index
    %c0_94 = arith.constant 0 : index
    %c0_95 = arith.constant 0 : index
    %139 = vector.load %arg5[%c3_93, %c0_94, %c0_95] : memref<4x1x8xf32, #tpu.memory_space<vmem>>, vector<1x1x8xf32>
    %140 = vector.shape_cast %139 : vector<1x1x8xf32> to vector<1x8xf32>
    %141 = vector.broadcast %140 : vector<1x8xf32> to vector<8x8xf32>
    %142 = arith.addf %138, %141 : vector<8x8xf32>
    %c3_96 = arith.constant 3 : index
    %c0_97 = arith.constant 0 : index
    %c0_98 = arith.constant 0 : index
    %143 = vector.load %arg3[%c3_96, %c0_97, %c0_98] : memref<4x32x8xbf16, #tpu.memory_space<vmem>>, vector<1x32x8xbf16>
    %144 = vector.shape_cast %143 : vector<1x32x8xbf16> to vector<32x8xbf16>
    %cst_99 = arith.constant dense<0.000000e+00> : vector<8x8xf32>
    %145 = tpu.matmul %2, %144, %cst_99 {dimension_numbers = #tpu.dot_dimension_numbers<[1], [0], [0], [1], [0, 0, 1, 1], [], []>} : vector<8x32xbf16>, vector<32x8xbf16>, vector<8x8xf32> -> vector<8x8xf32>
    %c3_100 = arith.constant 3 : index
    %c0_101 = arith.constant 0 : index
    %c0_102 = arith.constant 0 : index
    %146 = vector.load %arg6[%c3_100, %c0_101, %c0_102] : memref<4x1x8xf32, #tpu.memory_space<vmem>>, vector<1x1x8xf32>
    %147 = vector.shape_cast %146 : vector<1x1x8xf32> to vector<1x8xf32>
    %148 = vector.broadcast %147 : vector<1x8xf32> to vector<8x8xf32>
    %149 = arith.addf %145, %148 : vector<8x8xf32>
    %c3_103 = arith.constant 3 : index
    %c0_104 = arith.constant 0 : index
    %c0_105 = arith.constant 0 : index
    %150 = vector.load %arg4[%c3_103, %c0_104, %c0_105] : memref<4x32x8xbf16, #tpu.memory_space<vmem>>, vector<1x32x8xbf16>
    %151 = vector.shape_cast %150 : vector<1x32x8xbf16> to vector<32x8xbf16>
    %cst_106 = arith.constant dense<0.000000e+00> : vector<8x8xf32>
    %152 = tpu.matmul %2, %151, %cst_106 {dimension_numbers = #tpu.dot_dimension_numbers<[1], [0], [0], [1], [0, 0, 1, 1], [], []>} : vector<8x32xbf16>, vector<32x8xbf16>, vector<8x8xf32> -> vector<8x8xf32>
    %c3_107 = arith.constant 3 : index
    %c0_108 = arith.constant 0 : index
    %c0_109 = arith.constant 0 : index
    %153 = vector.load %arg7[%c3_107, %c0_108, %c0_109] : memref<4x1x8xf32, #tpu.memory_space<vmem>>, vector<1x1x8xf32>
    %154 = vector.shape_cast %153 : vector<1x1x8xf32> to vector<1x8xf32>
    %155 = vector.broadcast %154 : vector<1x8xf32> to vector<8x8xf32>
    %156 = arith.addf %152, %155 : vector<8x8xf32>
    %157 = arith.truncf %142 : vector<8x8xf32> to vector<8x8xbf16>
    %158 = arith.truncf %149 : vector<8x8xf32> to vector<8x8xbf16>
    %cst_110 = arith.constant dense<0.000000e+00> : vector<8x8xf32>
    %159 = tpu.matmul %157, %158, %cst_110 {dimension_numbers = #tpu.dot_dimension_numbers<[1], [1], [0], [0], [0, 0, 1, 0], [], []>} : vector<8x8xbf16>, vector<8x8xbf16>, vector<8x8xf32> -> vector<8x8xf32>
    %cst_111 = arith.constant 0.353553385 : f32
    %160 = vector.broadcast %cst_111 : f32 to vector<8x8xf32>
    %161 = arith.mulf %159, %160 : vector<8x8xf32>
    %cst_112 = arith.constant dense<0xFF800000> : vector<8xf32>
    %162 = vector.multi_reduction <maximumf>, %161, %cst_112 [1] : vector<8x8xf32> to vector<8xf32>
    %163 = vector.shape_cast %162 : vector<8xf32> to vector<8x1xf32>
    %164 = vector.broadcast %163 : vector<8x1xf32> to vector<8x8xf32>
    %165 = arith.subf %161, %164 : vector<8x8xf32>
    %166 = math.exp %165 : vector<8x8xf32>
    %cst_113 = arith.constant dense<0.000000e+00> : vector<8xf32>
    %167 = vector.multi_reduction <add>, %166, %cst_113 [1] : vector<8x8xf32> to vector<8xf32>
    %168 = vector.shape_cast %167 : vector<8xf32> to vector<8x1xf32>
    %169 = tpu.reciprocal %168 {approx = true} : vector<8x1xf32> -> vector<8x1xf32>
    %170 = vector.broadcast %169 : vector<8x1xf32> to vector<8x8xf32>
    %171 = arith.mulf %166, %170 : vector<8x8xf32>
    %172 = arith.truncf %171 : vector<8x8xf32> to vector<8x8xbf16>
    %173 = arith.truncf %156 : vector<8x8xf32> to vector<8x8xbf16>
    %cst_114 = arith.constant dense<0.000000e+00> : vector<8x8xf32>
    %174 = tpu.matmul %172, %173, %cst_114 {dimension_numbers = #tpu.dot_dimension_numbers<[1], [0], [0], [1], [0, 0, 1, 1], [], []>} : vector<8x8xbf16>, vector<8x8xbf16>, vector<8x8xf32> -> vector<8x8xf32>
    %175 = arith.truncf %174 : vector<8x8xf32> to vector<8x8xbf16>
    %c3_115 = arith.constant 3 : index
    %c0_116 = arith.constant 0 : index
    %c0_117 = arith.constant 0 : index
    %176 = vector.load %arg8[%c3_115, %c0_116, %c0_117] : memref<4x8x32xbf16, #tpu.memory_space<vmem>>, vector<1x8x32xbf16>
    %177 = vector.shape_cast %176 : vector<1x8x32xbf16> to vector<8x32xbf16>
    %cst_118 = arith.constant dense<0.000000e+00> : vector<8x32xf32>
    %178 = tpu.matmul %175, %177, %cst_118 {dimension_numbers = #tpu.dot_dimension_numbers<[1], [0], [0], [1], [0, 0, 1, 1], [], []>} : vector<8x8xbf16>, vector<8x32xbf16>, vector<8x32xf32> -> vector<8x32xf32>
    %179 = arith.addf %135, %178 : vector<8x32xf32>
    %c0_119 = arith.constant 0 : index
    %c0_120 = arith.constant 0 : index
    %180 = vector.load %arg9[%c0_119, %c0_120] : memref<1x32xf32, #tpu.memory_space<vmem>>, vector<1x32xf32>
    %181 = vector.broadcast %180 : vector<1x32xf32> to vector<8x32xf32>
    %182 = arith.addf %179, %181 : vector<8x32xf32>
    %183 = arith.addf %182, %1 : vector<8x32xf32>
    %cst_121 = arith.constant dense<0.000000e+00> : vector<8xf32>
    %184 = vector.multi_reduction <add>, %183, %cst_121 [1] : vector<8x32xf32> to vector<8xf32>
    %185 = vector.shape_cast %184 : vector<8xf32> to vector<8x1xf32>
    %cst_122 = arith.constant 3.200000e+01 : f32
    %186 = vector.broadcast %cst_122 : f32 to vector<8x1xf32>
    %187 = arith.divf %185, %186 : vector<8x1xf32>
    %188 = vector.broadcast %187 : vector<8x1xf32> to vector<8x32xf32>
    %189 = arith.subf %183, %188 : vector<8x32xf32>
    %190 = arith.mulf %189, %189 : vector<8x32xf32>
    %cst_123 = arith.constant dense<0.000000e+00> : vector<8xf32>
    %191 = vector.multi_reduction <add>, %190, %cst_123 [1] : vector<8x32xf32> to vector<8xf32>
    %192 = vector.shape_cast %191 : vector<8xf32> to vector<8x1xf32>
    %cst_124 = arith.constant 3.200000e+01 : f32
    %193 = vector.broadcast %cst_124 : f32 to vector<8x1xf32>
    %194 = arith.divf %192, %193 : vector<8x1xf32>
    %195 = vector.broadcast %187 : vector<8x1xf32> to vector<8x32xf32>
    %196 = arith.subf %183, %195 : vector<8x32xf32>
    %cst_125 = arith.constant 9.99999974E-6 : f32
    %197 = vector.broadcast %cst_125 : f32 to vector<8x1xf32>
    %198 = arith.addf %194, %197 : vector<8x1xf32>
    %199 = math.rsqrt %198 : vector<8x1xf32>
    %200 = vector.broadcast %199 : vector<8x1xf32> to vector<8x32xf32>
    %201 = arith.mulf %196, %200 : vector<8x32xf32>
    %c0_126 = arith.constant 0 : index
    %c0_127 = arith.constant 0 : index
    %202 = vector.load %arg10[%c0_126, %c0_127] : memref<1x32xf32, #tpu.memory_space<vmem>>, vector<1x32xf32>
    %203 = vector.broadcast %202 : vector<1x32xf32> to vector<8x32xf32>
    %204 = arith.mulf %201, %203 : vector<8x32xf32>
    %c0_128 = arith.constant 0 : index
    %c0_129 = arith.constant 0 : index
    %205 = vector.load %arg11[%c0_128, %c0_129] : memref<1x32xf32, #tpu.memory_space<vmem>>, vector<1x32xf32>
    %206 = vector.broadcast %205 : vector<1x32xf32> to vector<8x32xf32>
    %207 = arith.addf %204, %206 : vector<8x32xf32>
    %c0_130 = arith.constant 0 : index
    %c0_131 = arith.constant 0 : index
    %c0_132 = arith.constant 0 : index
    %208 = vector.load %arg12[%c0_130, %c0_131, %c0_132] : memref<1x8x32xf32, #tpu.memory_space<vmem>>, vector<1x8x32xf32>
    %209 = vector.shape_cast %208 : vector<1x8x32xf32> to vector<8x32xf32>
    %210 = vector.shape_cast %207 : vector<8x32xf32> to vector<1x8x32xf32>
    tpu.vector_store %arg12[%c0_130, %c0_131, %c0_132], %210 {strides = array<i32>} : memref<1x8x32xf32, #tpu.memory_space<vmem>>, vector<1x8x32xf32>,
    return
  }
  func.func @transform_0(%arg0: i32) -> (i32, i32, i32) {
    %c0_i32 = arith.constant 0 : i32
    %c0_i32_0 = arith.constant 0 : i32
    %c0_i32_1 = arith.constant 0 : i32
    return %arg0, %c0_i32, %c0_i32_0 : i32, i32, i32
  }
  func.func @transform_1(%arg0: i32) -> (i32, i32, i32) {
    %c0_i32 = arith.constant 0 : i32
    %c0_i32_0 = arith.constant 0 : i32
    %c0_i32_1 = arith.constant 0 : i32
    %c0_i32_2 = arith.constant 0 : i32
    return %c0_i32, %c0_i32_0, %c0_i32_1 : i32, i32, i32
  }
  func.func @transform_2(%arg0: i32) -> (i32, i32, i32) {
    %c0_i32 = arith.constant 0 : i32
    %c0_i32_0 = arith.constant 0 : i32
    %c0_i32_1 = arith.constant 0 : i32
    %c0_i32_2 = arith.constant 0 : i32
    return %c0_i32, %c0_i32_0, %c0_i32_1 : i32, i32, i32
  }
  func.func @transform_3(%arg0: i32) -> (i32, i32, i32) {
    %c0_i32 = arith.constant 0 : i32
    %c0_i32_0 = arith.constant 0 : i32
    %c0_i32_1 = arith.constant 0 : i32
    %c0_i32_2 = arith.constant 0 : i32
    return %c0_i32, %c0_i32_0, %c0_i32_1 : i32, i32, i32
  }
  func.func @transform_4(%arg0: i32) -> (i32, i32, i32) {
    %c0_i32 = arith.constant 0 : i32
    %c0_i32_0 = arith.constant 0 : i32
    %c0_i32_1 = arith.constant 0 : i32
    %c0_i32_2 = arith.constant 0 : i32
    return %c0_i32, %c0_i32_0, %c0_i32_1 : i32, i32, i32
  }
  func.func @transform_5(%arg0: i32) -> (i32, i32, i32) {
    %c0_i32 = arith.constant 0 : i32
    %c0_i32_0 = arith.constant 0 : i32
    %c0_i32_1 = arith.constant 0 : i32
    %c0_i32_2 = arith.constant 0 : i32
    return %c0_i32, %c0_i32_0, %c0_i32_1 : i32, i32, i32
  }
  func.func @transform_6(%arg0: i32) -> (i32, i32, i32) {
    %c0_i32 = arith.constant 0 : i32
    %c0_i32_0 = arith.constant 0 : i32
    %c0_i32_1 = arith.constant 0 : i32
    %c0_i32_2 = arith.constant 0 : i32
    return %c0_i32, %c0_i32_0, %c0_i32_1 : i32, i32, i32
  }
  func.func @transform_7(%arg0: i32) -> (i32, i32, i32) {
    %c0_i32 = arith.constant 0 : i32
    %c0_i32_0 = arith.constant 0 : i32
    %c0_i32_1 = arith.constant 0 : i32
    %c0_i32_2 = arith.constant 0 : i32
    return %c0_i32, %c0_i32_0, %c0_i32_1 : i32, i32, i32
  }
  func.func @transform_8(%arg0: i32) -> (i32, i32) {
    %c0_i32 = arith.constant 0 : i32
    %c0_i32_0 = arith.constant 0 : i32
    %c0_i32_1 = arith.constant 0 : i32
    return %c0_i32, %c0_i32_0 : i32, i32
  }
  func.func @transform_9(%arg0: i32) -> (i32, i32) {
    %c0_i32 = arith.constant 0 : i32
    %c0_i32_0 = arith.constant 0 : i32
    %c0_i32_1 = arith.constant 0 : i32
    return %c0_i32, %c0_i32_0 : i32, i32
  }
  func.func @transform_10(%arg0: i32) -> (i32, i32) {
    %c0_i32 = arith.constant 0 : i32
    %c0_i32_0 = arith.constant 0 : i32
    %c0_i32_1 = arith.constant 0 : i32
    return %c0_i32, %c0_i32_0 : i32, i32
  }
  func.func @transform_11(%arg0: i32) -> (i32, i32, i32) {
    %c0_i32 = arith.constant 0 : i32
    %c0_i32_0 = arith.constant 0 : i32
    %c0_i32_1 = arith.constant 0 : i32
    return %arg0, %c0_i32, %c0_i32_0 : i32, i32, i32
  }
}

module attributes {stable_mosaic.version = 11 : i64} {
  func.func @_ln_kernel(%arg0: i32, %arg1: memref<16x32xf32, #tpu.memory_space<vmem>>, %arg2: memref<1x32xf32, #tpu.memory_space<vmem>>, %arg3: memref<1x32xf32, #tpu.memory_space<vmem>>, %arg4: memref<16x32xf32, #tpu.memory_space<vmem>>) attributes {dimension_semantics = [#tpu.dimension_semantics<parallel>], iteration_bounds = array<i64: 1>, scalar_prefetch = 0 : i64, scratch_operands = 0 : i64, tpu.core_type = #tpu.core_type<tc>, window_params = [{transform_indices = @transform_0, window_bounds = array<i64: 16, 32>}, {pipeline_mode = #tpu.pipeline_mode<synchronous>, transform_indices = @transform_1, window_bounds = array<i64: 1, 32>}, {pipeline_mode = #tpu.pipeline_mode<synchronous>, transform_indices = @transform_2, window_bounds = array<i64: 1, 32>}, {transform_indices = @transform_3, window_bounds = array<i64: 16, 32>}]} {
    %c0 = arith.constant 0 : index
    %c0_0 = arith.constant 0 : index
    %0 = vector.load %arg1[%c0, %c0_0] : memref<16x32xf32, #tpu.memory_space<vmem>>, vector<16x32xf32>
    %cst = arith.constant dense<0.000000e+00> : vector<16xf32>
    %1 = vector.multi_reduction <add>, %0, %cst [1] : vector<16x32xf32> to vector<16xf32>
    %2 = vector.shape_cast %1 : vector<16xf32> to vector<16x1xf32>
    %cst_1 = arith.constant 3.200000e+01 : f32
    %3 = vector.broadcast %cst_1 : f32 to vector<16x1xf32>
    %4 = arith.divf %2, %3 : vector<16x1xf32>
    %5 = vector.broadcast %4 : vector<16x1xf32> to vector<16x32xf32>
    %6 = arith.subf %0, %5 : vector<16x32xf32>
    %7 = arith.mulf %6, %6 : vector<16x32xf32>
    %cst_2 = arith.constant dense<0.000000e+00> : vector<16xf32>
    %8 = vector.multi_reduction <add>, %7, %cst_2 [1] : vector<16x32xf32> to vector<16xf32>
    %9 = vector.shape_cast %8 : vector<16xf32> to vector<16x1xf32>
    %cst_3 = arith.constant 3.200000e+01 : f32
    %10 = vector.broadcast %cst_3 : f32 to vector<16x1xf32>
    %11 = arith.divf %9, %10 : vector<16x1xf32>
    %12 = vector.broadcast %4 : vector<16x1xf32> to vector<16x32xf32>
    %13 = arith.subf %0, %12 : vector<16x32xf32>
    %cst_4 = arith.constant 9.99999974E-6 : f32
    %14 = vector.broadcast %cst_4 : f32 to vector<16x1xf32>
    %15 = arith.addf %11, %14 : vector<16x1xf32>
    %16 = math.rsqrt %15 : vector<16x1xf32>
    %17 = vector.broadcast %16 : vector<16x1xf32> to vector<16x32xf32>
    %18 = arith.mulf %13, %17 : vector<16x32xf32>
    %c0_5 = arith.constant 0 : index
    %c0_6 = arith.constant 0 : index
    %19 = vector.load %arg2[%c0_5, %c0_6] : memref<1x32xf32, #tpu.memory_space<vmem>>, vector<1x32xf32>
    %20 = vector.broadcast %19 : vector<1x32xf32> to vector<16x32xf32>
    %21 = arith.mulf %18, %20 : vector<16x32xf32>
    %c0_7 = arith.constant 0 : index
    %c0_8 = arith.constant 0 : index
    %22 = vector.load %arg3[%c0_7, %c0_8] : memref<1x32xf32, #tpu.memory_space<vmem>>, vector<1x32xf32>
    %23 = vector.broadcast %22 : vector<1x32xf32> to vector<16x32xf32>
    %24 = arith.addf %21, %23 : vector<16x32xf32>
    %c0_9 = arith.constant 0 : index
    %c0_10 = arith.constant 0 : index
    %25 = vector.load %arg4[%c0_9, %c0_10] : memref<16x32xf32, #tpu.memory_space<vmem>>, vector<16x32xf32>
    tpu.vector_store %arg4[%c0_9, %c0_10], %24 {strides = array<i32>} : memref<16x32xf32, #tpu.memory_space<vmem>>, vector<16x32xf32>,
    return
  }
  func.func @transform_0(%arg0: i32) -> (i32, i32) {
    %c0_i32 = arith.constant 0 : i32
    %c0_i32_0 = arith.constant 0 : i32
    return %arg0, %c0_i32 : i32, i32
  }
  func.func @transform_1(%arg0: i32) -> (i32, i32) {
    %c0_i32 = arith.constant 0 : i32
    %c0_i32_0 = arith.constant 0 : i32
    %c0_i32_1 = arith.constant 0 : i32
    return %c0_i32, %c0_i32_0 : i32, i32
  }
  func.func @transform_2(%arg0: i32) -> (i32, i32) {
    %c0_i32 = arith.constant 0 : i32
    %c0_i32_0 = arith.constant 0 : i32
    %c0_i32_1 = arith.constant 0 : i32
    return %c0_i32, %c0_i32_0 : i32, i32
  }
  func.func @transform_3(%arg0: i32) -> (i32, i32) {
    %c0_i32 = arith.constant 0 : i32
    %c0_i32_0 = arith.constant 0 : i32
    return %arg0, %c0_i32 : i32, i32
  }
}

module attributes {stable_mosaic.version = 11 : i64} {
  func.func @_ffn_add_ln_kernel(%arg0: i32, %arg1: memref<16x32xf32, #tpu.memory_space<vmem>>, %arg2: memref<32x64xbf16, #tpu.memory_space<vmem>>, %arg3: memref<1x64xf32, #tpu.memory_space<vmem>>, %arg4: memref<64x32xbf16, #tpu.memory_space<vmem>>, %arg5: memref<1x32xf32, #tpu.memory_space<vmem>>, %arg6: memref<1x32xf32, #tpu.memory_space<vmem>>, %arg7: memref<1x32xf32, #tpu.memory_space<vmem>>, %arg8: memref<16x32xf32, #tpu.memory_space<vmem>>) attributes {dimension_semantics = [#tpu.dimension_semantics<parallel>], iteration_bounds = array<i64: 1>, scalar_prefetch = 0 : i64, scratch_operands = 0 : i64, tpu.core_type = #tpu.core_type<tc>, window_params = [{transform_indices = @transform_0, window_bounds = array<i64: 16, 32>}, {pipeline_mode = #tpu.pipeline_mode<synchronous>, transform_indices = @transform_1, window_bounds = array<i64: 32, 64>}, {pipeline_mode = #tpu.pipeline_mode<synchronous>, transform_indices = @transform_2, window_bounds = array<i64: 1, 64>}, {pipeline_mode = #tpu.pipeline_mode<synchronous>, transform_indices = @transform_3, window_bounds = array<i64: 64, 32>}, {pipeline_mode = #tpu.pipeline_mode<synchronous>, transform_indices = @transform_4, window_bounds = array<i64: 1, 32>}, {pipeline_mode = #tpu.pipeline_mode<synchronous>, transform_indices = @transform_5, window_bounds = array<i64: 1, 32>}, {pipeline_mode = #tpu.pipeline_mode<synchronous>, transform_indices = @transform_6, window_bounds = array<i64: 1, 32>}, {transform_indices = @transform_7, window_bounds = array<i64: 16, 32>}]} {
    %c0 = arith.constant 0 : index
    %c0_0 = arith.constant 0 : index
    %0 = vector.load %arg1[%c0, %c0_0] : memref<16x32xf32, #tpu.memory_space<vmem>>, vector<16x32xf32>
    %1 = arith.truncf %0 : vector<16x32xf32> to vector<16x32xbf16>
    %cst = arith.constant 0.000000e+00 : f32
    %2 = vector.broadcast %cst : f32 to vector<16x32xf32>
    %c0_1 = arith.constant 0 : index
    %c0_2 = arith.constant 0 : index
    %3 = vector.load %arg2[%c0_1, %c0_2] : memref<32x64xbf16, #tpu.memory_space<vmem>>, vector<32x64xbf16>
    %cst_3 = arith.constant dense<0.000000e+00> : vector<16x64xf32>
    %4 = tpu.matmul %1, %3, %cst_3 {dimension_numbers = #tpu.dot_dimension_numbers<[1], [0], [0], [1], [0, 0, 1, 1], [], []>} : vector<16x32xbf16>, vector<32x64xbf16>, vector<16x64xf32> -> vector<16x64xf32>
    %c0_4 = arith.constant 0 : index
    %c0_5 = arith.constant 0 : index
    %5 = vector.load %arg3[%c0_4, %c0_5] : memref<1x64xf32, #tpu.memory_space<vmem>>, vector<1x64xf32>
    %6 = vector.broadcast %5 : vector<1x64xf32> to vector<16x64xf32>
    %7 = arith.addf %4, %6 : vector<16x64xf32>
    %cst_6 = arith.constant 0.000000e+00 : f32
    %8 = vector.broadcast %cst_6 : f32 to vector<16x64xf32>
    %9 = arith.maximumf %7, %8 : vector<16x64xf32>
    %10 = arith.truncf %9 : vector<16x64xf32> to vector<16x64xbf16>
    %c0_7 = arith.constant 0 : index
    %c0_8 = arith.constant 0 : index
    %11 = vector.load %arg4[%c0_7, %c0_8] : memref<64x32xbf16, #tpu.memory_space<vmem>>, vector<64x32xbf16>
    %cst_9 = arith.constant dense<0.000000e+00> : vector<16x32xf32>
    %12 = tpu.matmul %10, %11, %cst_9 {dimension_numbers = #tpu.dot_dimension_numbers<[1], [0], [0], [1], [0, 0, 1, 1], [], []>} : vector<16x64xbf16>, vector<64x32xbf16>, vector<16x32xf32> -> vector<16x32xf32>
    %13 = arith.addf %2, %12 : vector<16x32xf32>
    %c0_10 = arith.constant 0 : index
    %c0_11 = arith.constant 0 : index
    %14 = vector.load %arg5[%c0_10, %c0_11] : memref<1x32xf32, #tpu.memory_space<vmem>>, vector<1x32xf32>
    %15 = vector.broadcast %14 : vector<1x32xf32> to vector<16x32xf32>
    %16 = arith.addf %13, %15 : vector<16x32xf32>
    %17 = arith.addf %16, %0 : vector<16x32xf32>
    %cst_12 = arith.constant dense<0.000000e+00> : vector<16xf32>
    %18 = vector.multi_reduction <add>, %17, %cst_12 [1] : vector<16x32xf32> to vector<16xf32>
    %19 = vector.shape_cast %18 : vector<16xf32> to vector<16x1xf32>
    %cst_13 = arith.constant 3.200000e+01 : f32
    %20 = vector.broadcast %cst_13 : f32 to vector<16x1xf32>
    %21 = arith.divf %19, %20 : vector<16x1xf32>
    %22 = vector.broadcast %21 : vector<16x1xf32> to vector<16x32xf32>
    %23 = arith.subf %17, %22 : vector<16x32xf32>
    %24 = arith.mulf %23, %23 : vector<16x32xf32>
    %cst_14 = arith.constant dense<0.000000e+00> : vector<16xf32>
    %25 = vector.multi_reduction <add>, %24, %cst_14 [1] : vector<16x32xf32> to vector<16xf32>
    %26 = vector.shape_cast %25 : vector<16xf32> to vector<16x1xf32>
    %cst_15 = arith.constant 3.200000e+01 : f32
    %27 = vector.broadcast %cst_15 : f32 to vector<16x1xf32>
    %28 = arith.divf %26, %27 : vector<16x1xf32>
    %29 = vector.broadcast %21 : vector<16x1xf32> to vector<16x32xf32>
    %30 = arith.subf %17, %29 : vector<16x32xf32>
    %cst_16 = arith.constant 9.99999974E-6 : f32
    %31 = vector.broadcast %cst_16 : f32 to vector<16x1xf32>
    %32 = arith.addf %28, %31 : vector<16x1xf32>
    %33 = math.rsqrt %32 : vector<16x1xf32>
    %34 = vector.broadcast %33 : vector<16x1xf32> to vector<16x32xf32>
    %35 = arith.mulf %30, %34 : vector<16x32xf32>
    %c0_17 = arith.constant 0 : index
    %c0_18 = arith.constant 0 : index
    %36 = vector.load %arg6[%c0_17, %c0_18] : memref<1x32xf32, #tpu.memory_space<vmem>>, vector<1x32xf32>
    %37 = vector.broadcast %36 : vector<1x32xf32> to vector<16x32xf32>
    %38 = arith.mulf %35, %37 : vector<16x32xf32>
    %c0_19 = arith.constant 0 : index
    %c0_20 = arith.constant 0 : index
    %39 = vector.load %arg7[%c0_19, %c0_20] : memref<1x32xf32, #tpu.memory_space<vmem>>, vector<1x32xf32>
    %40 = vector.broadcast %39 : vector<1x32xf32> to vector<16x32xf32>
    %41 = arith.addf %38, %40 : vector<16x32xf32>
    %c0_21 = arith.constant 0 : index
    %c0_22 = arith.constant 0 : index
    %42 = vector.load %arg8[%c0_21, %c0_22] : memref<16x32xf32, #tpu.memory_space<vmem>>, vector<16x32xf32>
    tpu.vector_store %arg8[%c0_21, %c0_22], %41 {strides = array<i32>} : memref<16x32xf32, #tpu.memory_space<vmem>>, vector<16x32xf32>,
    return
  }
  func.func @transform_0(%arg0: i32) -> (i32, i32) {
    %c0_i32 = arith.constant 0 : i32
    %c0_i32_0 = arith.constant 0 : i32
    return %arg0, %c0_i32 : i32, i32
  }
  func.func @transform_1(%arg0: i32) -> (i32, i32) {
    %c0_i32 = arith.constant 0 : i32
    %c0_i32_0 = arith.constant 0 : i32
    %c0_i32_1 = arith.constant 0 : i32
    return %c0_i32, %c0_i32_0 : i32, i32
  }
  func.func @transform_2(%arg0: i32) -> (i32, i32) {
    %c0_i32 = arith.constant 0 : i32
    %c0_i32_0 = arith.constant 0 : i32
    %c0_i32_1 = arith.constant 0 : i32
    return %c0_i32, %c0_i32_0 : i32, i32
  }
  func.func @transform_3(%arg0: i32) -> (i32, i32) {
    %c0_i32 = arith.constant 0 : i32
    %c0_i32_0 = arith.constant 0 : i32
    %c0_i32_1 = arith.constant 0 : i32
    return %c0_i32, %c0_i32_0 : i32, i32
  }
  func.func @transform_4(%arg0: i32) -> (i32, i32) {
    %c0_i32 = arith.constant 0 : i32
    %c0_i32_0 = arith.constant 0 : i32
    %c0_i32_1 = arith.constant 0 : i32
    return %c0_i32, %c0_i32_0 : i32, i32
  }
  func.func @transform_5(%arg0: i32) -> (i32, i32) {
    %c0_i32 = arith.constant 0 : i32
    %c0_i32_0 = arith.constant 0 : i32
    %c0_i32_1 = arith.constant 0 : i32
    return %c0_i32, %c0_i32_0 : i32, i32
  }
  func.func @transform_6(%arg0: i32) -> (i32, i32) {
    %c0_i32 = arith.constant 0 : i32
    %c0_i32_0 = arith.constant 0 : i32
    %c0_i32_1 = arith.constant 0 : i32
    return %c0_i32, %c0_i32_0 : i32, i32
  }
  func.func @transform_7(%arg0: i32) -> (i32, i32) {
    %c0_i32 = arith.constant 0 : i32
    %c0_i32_0 = arith.constant 0 : i32
    return %arg0, %c0_i32 : i32, i32
  }
}

module attributes {stable_mosaic.version = 11 : i64} {
  func.func @_attention_block_kernel(%arg0: i32, %arg1: memref<1x8x32xf32, #tpu.memory_space<vmem>>, %arg2: memref<1x8x32xf32, #tpu.memory_space<vmem>>, %arg3: memref<4x32x8xbf16, #tpu.memory_space<vmem>>, %arg4: memref<4x32x8xbf16, #tpu.memory_space<vmem>>, %arg5: memref<4x32x8xbf16, #tpu.memory_space<vmem>>, %arg6: memref<4x1x8xf32, #tpu.memory_space<vmem>>, %arg7: memref<4x1x8xf32, #tpu.memory_space<vmem>>, %arg8: memref<4x1x8xf32, #tpu.memory_space<vmem>>, %arg9: memref<4x8x32xbf16, #tpu.memory_space<vmem>>, %arg10: memref<1x32xf32, #tpu.memory_space<vmem>>, %arg11: memref<1x32xf32, #tpu.memory_space<vmem>>, %arg12: memref<1x32xf32, #tpu.memory_space<vmem>>, %arg13: memref<1x8x32xf32, #tpu.memory_space<vmem>>) attributes {dimension_semantics = [#tpu.dimension_semantics<parallel>], iteration_bounds = array<i64: 2>, scalar_prefetch = 0 : i64, scratch_operands = 0 : i64, tpu.core_type = #tpu.core_type<tc>, window_params = [{transform_indices = @transform_0, window_bounds = array<i64: 1, 8, 32>}, {transform_indices = @transform_1, window_bounds = array<i64: 1, 8, 32>}, {pipeline_mode = #tpu.pipeline_mode<synchronous>, transform_indices = @transform_2, window_bounds = array<i64: 4, 32, 8>}, {pipeline_mode = #tpu.pipeline_mode<synchronous>, transform_indices = @transform_3, window_bounds = array<i64: 4, 32, 8>}, {pipeline_mode = #tpu.pipeline_mode<synchronous>, transform_indices = @transform_4, window_bounds = array<i64: 4, 32, 8>}, {pipeline_mode = #tpu.pipeline_mode<synchronous>, transform_indices = @transform_5, window_bounds = array<i64: 4, 1, 8>}, {pipeline_mode = #tpu.pipeline_mode<synchronous>, transform_indices = @transform_6, window_bounds = array<i64: 4, 1, 8>}, {pipeline_mode = #tpu.pipeline_mode<synchronous>, transform_indices = @transform_7, window_bounds = array<i64: 4, 1, 8>}, {pipeline_mode = #tpu.pipeline_mode<synchronous>, transform_indices = @transform_8, window_bounds = array<i64: 4, 8, 32>}, {pipeline_mode = #tpu.pipeline_mode<synchronous>, transform_indices = @transform_9, window_bounds = array<i64: 1, 32>}, {pipeline_mode = #tpu.pipeline_mode<synchronous>, transform_indices = @transform_10, window_bounds = array<i64: 1, 32>}, {pipeline_mode = #tpu.pipeline_mode<synchronous>, transform_indices = @transform_11, window_bounds = array<i64: 1, 32>}, {transform_indices = @transform_12, window_bounds = array<i64: 1, 8, 32>}]} {
    %c0 = arith.constant 0 : index
    %c0_0 = arith.constant 0 : index
    %c0_1 = arith.constant 0 : index
    %0 = vector.load %arg1[%c0, %c0_0, %c0_1] : memref<1x8x32xf32, #tpu.memory_space<vmem>>, vector<1x8x32xf32>
    %1 = vector.shape_cast %0 : vector<1x8x32xf32> to vector<8x32xf32>
    %2 = arith.truncf %1 : vector<8x32xf32> to vector<8x32xbf16>
    %c0_2 = arith.constant 0 : index
    %c0_3 = arith.constant 0 : index
    %c0_4 = arith.constant 0 : index
    %3 = vector.load %arg2[%c0_2, %c0_3, %c0_4] : memref<1x8x32xf32, #tpu.memory_space<vmem>>, vector<1x8x32xf32>
    %4 = vector.shape_cast %3 : vector<1x8x32xf32> to vector<8x32xf32>
    %5 = arith.truncf %4 : vector<8x32xf32> to vector<8x32xbf16>
    %cst = arith.constant 0.000000e+00 : f32
    %6 = vector.broadcast %cst : f32 to vector<8x32xf32>
    %c0_5 = arith.constant 0 : index
    %c0_6 = arith.constant 0 : index
    %c0_7 = arith.constant 0 : index
    %7 = vector.load %arg3[%c0_5, %c0_6, %c0_7] : memref<4x32x8xbf16, #tpu.memory_space<vmem>>, vector<1x32x8xbf16>
    %8 = vector.shape_cast %7 : vector<1x32x8xbf16> to vector<32x8xbf16>
    %cst_8 = arith.constant dense<0.000000e+00> : vector<8x8xf32>
    %9 = tpu.matmul %2, %8, %cst_8 {dimension_numbers = #tpu.dot_dimension_numbers<[1], [0], [0], [1], [0, 0, 1, 1], [], []>} : vector<8x32xbf16>, vector<32x8xbf16>, vector<8x8xf32> -> vector<8x8xf32>
    %c0_9 = arith.constant 0 : index
    %c0_10 = arith.constant 0 : index
    %c0_11 = arith.constant 0 : index
    %10 = vector.load %arg6[%c0_9, %c0_10, %c0_11] : memref<4x1x8xf32, #tpu.memory_space<vmem>>, vector<1x1x8xf32>
    %11 = vector.shape_cast %10 : vector<1x1x8xf32> to vector<1x8xf32>
    %12 = vector.broadcast %11 : vector<1x8xf32> to vector<8x8xf32>
    %13 = arith.addf %9, %12 : vector<8x8xf32>
    %c0_12 = arith.constant 0 : index
    %c0_13 = arith.constant 0 : index
    %c0_14 = arith.constant 0 : index
    %14 = vector.load %arg4[%c0_12, %c0_13, %c0_14] : memref<4x32x8xbf16, #tpu.memory_space<vmem>>, vector<1x32x8xbf16>
    %15 = vector.shape_cast %14 : vector<1x32x8xbf16> to vector<32x8xbf16>
    %cst_15 = arith.constant dense<0.000000e+00> : vector<8x8xf32>
    %16 = tpu.matmul %5, %15, %cst_15 {dimension_numbers = #tpu.dot_dimension_numbers<[1], [0], [0], [1], [0, 0, 1, 1], [], []>} : vector<8x32xbf16>, vector<32x8xbf16>, vector<8x8xf32> -> vector<8x8xf32>
    %c0_16 = arith.constant 0 : index
    %c0_17 = arith.constant 0 : index
    %c0_18 = arith.constant 0 : index
    %17 = vector.load %arg7[%c0_16, %c0_17, %c0_18] : memref<4x1x8xf32, #tpu.memory_space<vmem>>, vector<1x1x8xf32>
    %18 = vector.shape_cast %17 : vector<1x1x8xf32> to vector<1x8xf32>
    %19 = vector.broadcast %18 : vector<1x8xf32> to vector<8x8xf32>
    %20 = arith.addf %16, %19 : vector<8x8xf32>
    %c0_19 = arith.constant 0 : index
    %c0_20 = arith.constant 0 : index
    %c0_21 = arith.constant 0 : index
    %21 = vector.load %arg5[%c0_19, %c0_20, %c0_21] : memref<4x32x8xbf16, #tpu.memory_space<vmem>>, vector<1x32x8xbf16>
    %22 = vector.shape_cast %21 : vector<1x32x8xbf16> to vector<32x8xbf16>
    %cst_22 = arith.constant dense<0.000000e+00> : vector<8x8xf32>
    %23 = tpu.matmul %5, %22, %cst_22 {dimension_numbers = #tpu.dot_dimension_numbers<[1], [0], [0], [1], [0, 0, 1, 1], [], []>} : vector<8x32xbf16>, vector<32x8xbf16>, vector<8x8xf32> -> vector<8x8xf32>
    %c0_23 = arith.constant 0 : index
    %c0_24 = arith.constant 0 : index
    %c0_25 = arith.constant 0 : index
    %24 = vector.load %arg8[%c0_23, %c0_24, %c0_25] : memref<4x1x8xf32, #tpu.memory_space<vmem>>, vector<1x1x8xf32>
    %25 = vector.shape_cast %24 : vector<1x1x8xf32> to vector<1x8xf32>
    %26 = vector.broadcast %25 : vector<1x8xf32> to vector<8x8xf32>
    %27 = arith.addf %23, %26 : vector<8x8xf32>
    %28 = arith.truncf %13 : vector<8x8xf32> to vector<8x8xbf16>
    %29 = arith.truncf %20 : vector<8x8xf32> to vector<8x8xbf16>
    %cst_26 = arith.constant dense<0.000000e+00> : vector<8x8xf32>
    %30 = tpu.matmul %28, %29, %cst_26 {dimension_numbers = #tpu.dot_dimension_numbers<[1], [1], [0], [0], [0, 0, 1, 0], [], []>} : vector<8x8xbf16>, vector<8x8xbf16>, vector<8x8xf32> -> vector<8x8xf32>
    %cst_27 = arith.constant 0.353553385 : f32
    %31 = vector.broadcast %cst_27 : f32 to vector<8x8xf32>
    %32 = arith.mulf %30, %31 : vector<8x8xf32>
    %cst_28 = arith.constant dense<0xFF800000> : vector<8xf32>
    %33 = vector.multi_reduction <maximumf>, %32, %cst_28 [1] : vector<8x8xf32> to vector<8xf32>
    %34 = vector.shape_cast %33 : vector<8xf32> to vector<8x1xf32>
    %35 = vector.broadcast %34 : vector<8x1xf32> to vector<8x8xf32>
    %36 = arith.subf %32, %35 : vector<8x8xf32>
    %37 = math.exp %36 : vector<8x8xf32>
    %cst_29 = arith.constant dense<0.000000e+00> : vector<8xf32>
    %38 = vector.multi_reduction <add>, %37, %cst_29 [1] : vector<8x8xf32> to vector<8xf32>
    %39 = vector.shape_cast %38 : vector<8xf32> to vector<8x1xf32>
    %40 = tpu.reciprocal %39 {approx = true} : vector<8x1xf32> -> vector<8x1xf32>
    %41 = vector.broadcast %40 : vector<8x1xf32> to vector<8x8xf32>
    %42 = arith.mulf %37, %41 : vector<8x8xf32>
    %43 = arith.truncf %42 : vector<8x8xf32> to vector<8x8xbf16>
    %44 = arith.truncf %27 : vector<8x8xf32> to vector<8x8xbf16>
    %cst_30 = arith.constant dense<0.000000e+00> : vector<8x8xf32>
    %45 = tpu.matmul %43, %44, %cst_30 {dimension_numbers = #tpu.dot_dimension_numbers<[1], [0], [0], [1], [0, 0, 1, 1], [], []>} : vector<8x8xbf16>, vector<8x8xbf16>, vector<8x8xf32> -> vector<8x8xf32>
    %46 = arith.truncf %45 : vector<8x8xf32> to vector<8x8xbf16>
    %c0_31 = arith.constant 0 : index
    %c0_32 = arith.constant 0 : index
    %c0_33 = arith.constant 0 : index
    %47 = vector.load %arg9[%c0_31, %c0_32, %c0_33] : memref<4x8x32xbf16, #tpu.memory_space<vmem>>, vector<1x8x32xbf16>
    %48 = vector.shape_cast %47 : vector<1x8x32xbf16> to vector<8x32xbf16>
    %cst_34 = arith.constant dense<0.000000e+00> : vector<8x32xf32>
    %49 = tpu.matmul %46, %48, %cst_34 {dimension_numbers = #tpu.dot_dimension_numbers<[1], [0], [0], [1], [0, 0, 1, 1], [], []>} : vector<8x8xbf16>, vector<8x32xbf16>, vector<8x32xf32> -> vector<8x32xf32>
    %50 = arith.addf %6, %49 : vector<8x32xf32>
    %c1 = arith.constant 1 : index
    %c0_35 = arith.constant 0 : index
    %c0_36 = arith.constant 0 : index
    %51 = vector.load %arg3[%c1, %c0_35, %c0_36] : memref<4x32x8xbf16, #tpu.memory_space<vmem>>, vector<1x32x8xbf16>
    %52 = vector.shape_cast %51 : vector<1x32x8xbf16> to vector<32x8xbf16>
    %cst_37 = arith.constant dense<0.000000e+00> : vector<8x8xf32>
    %53 = tpu.matmul %2, %52, %cst_37 {dimension_numbers = #tpu.dot_dimension_numbers<[1], [0], [0], [1], [0, 0, 1, 1], [], []>} : vector<8x32xbf16>, vector<32x8xbf16>, vector<8x8xf32> -> vector<8x8xf32>
    %c1_38 = arith.constant 1 : index
    %c0_39 = arith.constant 0 : index
    %c0_40 = arith.constant 0 : index
    %54 = vector.load %arg6[%c1_38, %c0_39, %c0_40] : memref<4x1x8xf32, #tpu.memory_space<vmem>>, vector<1x1x8xf32>
    %55 = vector.shape_cast %54 : vector<1x1x8xf32> to vector<1x8xf32>
    %56 = vector.broadcast %55 : vector<1x8xf32> to vector<8x8xf32>
    %57 = arith.addf %53, %56 : vector<8x8xf32>
    %c1_41 = arith.constant 1 : index
    %c0_42 = arith.constant 0 : index
    %c0_43 = arith.constant 0 : index
    %58 = vector.load %arg4[%c1_41, %c0_42, %c0_43] : memref<4x32x8xbf16, #tpu.memory_space<vmem>>, vector<1x32x8xbf16>
    %59 = vector.shape_cast %58 : vector<1x32x8xbf16> to vector<32x8xbf16>
    %cst_44 = arith.constant dense<0.000000e+00> : vector<8x8xf32>
    %60 = tpu.matmul %5, %59, %cst_44 {dimension_numbers = #tpu.dot_dimension_numbers<[1], [0], [0], [1], [0, 0, 1, 1], [], []>} : vector<8x32xbf16>, vector<32x8xbf16>, vector<8x8xf32> -> vector<8x8xf32>
    %c1_45 = arith.constant 1 : index
    %c0_46 = arith.constant 0 : index
    %c0_47 = arith.constant 0 : index
    %61 = vector.load %arg7[%c1_45, %c0_46, %c0_47] : memref<4x1x8xf32, #tpu.memory_space<vmem>>, vector<1x1x8xf32>
    %62 = vector.shape_cast %61 : vector<1x1x8xf32> to vector<1x8xf32>
    %63 = vector.broadcast %62 : vector<1x8xf32> to vector<8x8xf32>
    %64 = arith.addf %60, %63 : vector<8x8xf32>
    %c1_48 = arith.constant 1 : index
    %c0_49 = arith.constant 0 : index
    %c0_50 = arith.constant 0 : index
    %65 = vector.load %arg5[%c1_48, %c0_49, %c0_50] : memref<4x32x8xbf16, #tpu.memory_space<vmem>>, vector<1x32x8xbf16>
    %66 = vector.shape_cast %65 : vector<1x32x8xbf16> to vector<32x8xbf16>
    %cst_51 = arith.constant dense<0.000000e+00> : vector<8x8xf32>
    %67 = tpu.matmul %5, %66, %cst_51 {dimension_numbers = #tpu.dot_dimension_numbers<[1], [0], [0], [1], [0, 0, 1, 1], [], []>} : vector<8x32xbf16>, vector<32x8xbf16>, vector<8x8xf32> -> vector<8x8xf32>
    %c1_52 = arith.constant 1 : index
    %c0_53 = arith.constant 0 : index
    %c0_54 = arith.constant 0 : index
    %68 = vector.load %arg8[%c1_52, %c0_53, %c0_54] : memref<4x1x8xf32, #tpu.memory_space<vmem>>, vector<1x1x8xf32>
    %69 = vector.shape_cast %68 : vector<1x1x8xf32> to vector<1x8xf32>
    %70 = vector.broadcast %69 : vector<1x8xf32> to vector<8x8xf32>
    %71 = arith.addf %67, %70 : vector<8x8xf32>
    %72 = arith.truncf %57 : vector<8x8xf32> to vector<8x8xbf16>
    %73 = arith.truncf %64 : vector<8x8xf32> to vector<8x8xbf16>
    %cst_55 = arith.constant dense<0.000000e+00> : vector<8x8xf32>
    %74 = tpu.matmul %72, %73, %cst_55 {dimension_numbers = #tpu.dot_dimension_numbers<[1], [1], [0], [0], [0, 0, 1, 0], [], []>} : vector<8x8xbf16>, vector<8x8xbf16>, vector<8x8xf32> -> vector<8x8xf32>
    %cst_56 = arith.constant 0.353553385 : f32
    %75 = vector.broadcast %cst_56 : f32 to vector<8x8xf32>
    %76 = arith.mulf %74, %75 : vector<8x8xf32>
    %cst_57 = arith.constant dense<0xFF800000> : vector<8xf32>
    %77 = vector.multi_reduction <maximumf>, %76, %cst_57 [1] : vector<8x8xf32> to vector<8xf32>
    %78 = vector.shape_cast %77 : vector<8xf32> to vector<8x1xf32>
    %79 = vector.broadcast %78 : vector<8x1xf32> to vector<8x8xf32>
    %80 = arith.subf %76, %79 : vector<8x8xf32>
    %81 = math.exp %80 : vector<8x8xf32>
    %cst_58 = arith.constant dense<0.000000e+00> : vector<8xf32>
    %82 = vector.multi_reduction <add>, %81, %cst_58 [1] : vector<8x8xf32> to vector<8xf32>
    %83 = vector.shape_cast %82 : vector<8xf32> to vector<8x1xf32>
    %84 = tpu.reciprocal %83 {approx = true} : vector<8x1xf32> -> vector<8x1xf32>
    %85 = vector.broadcast %84 : vector<8x1xf32> to vector<8x8xf32>
    %86 = arith.mulf %81, %85 : vector<8x8xf32>
    %87 = arith.truncf %86 : vector<8x8xf32> to vector<8x8xbf16>
    %88 = arith.truncf %71 : vector<8x8xf32> to vector<8x8xbf16>
    %cst_59 = arith.constant dense<0.000000e+00> : vector<8x8xf32>
    %89 = tpu.matmul %87, %88, %cst_59 {dimension_numbers = #tpu.dot_dimension_numbers<[1], [0], [0], [1], [0, 0, 1, 1], [], []>} : vector<8x8xbf16>, vector<8x8xbf16>, vector<8x8xf32> -> vector<8x8xf32>
    %90 = arith.truncf %89 : vector<8x8xf32> to vector<8x8xbf16>
    %c1_60 = arith.constant 1 : index
    %c0_61 = arith.constant 0 : index
    %c0_62 = arith.constant 0 : index
    %91 = vector.load %arg9[%c1_60, %c0_61, %c0_62] : memref<4x8x32xbf16, #tpu.memory_space<vmem>>, vector<1x8x32xbf16>
    %92 = vector.shape_cast %91 : vector<1x8x32xbf16> to vector<8x32xbf16>
    %cst_63 = arith.constant dense<0.000000e+00> : vector<8x32xf32>
    %93 = tpu.matmul %90, %92, %cst_63 {dimension_numbers = #tpu.dot_dimension_numbers<[1], [0], [0], [1], [0, 0, 1, 1], [], []>} : vector<8x8xbf16>, vector<8x32xbf16>, vector<8x32xf32> -> vector<8x32xf32>
    %94 = arith.addf %50, %93 : vector<8x32xf32>
    %c2 = arith.constant 2 : index
    %c0_64 = arith.constant 0 : index
    %c0_65 = arith.constant 0 : index
    %95 = vector.load %arg3[%c2, %c0_64, %c0_65] : memref<4x32x8xbf16, #tpu.memory_space<vmem>>, vector<1x32x8xbf16>
    %96 = vector.shape_cast %95 : vector<1x32x8xbf16> to vector<32x8xbf16>
    %cst_66 = arith.constant dense<0.000000e+00> : vector<8x8xf32>
    %97 = tpu.matmul %2, %96, %cst_66 {dimension_numbers = #tpu.dot_dimension_numbers<[1], [0], [0], [1], [0, 0, 1, 1], [], []>} : vector<8x32xbf16>, vector<32x8xbf16>, vector<8x8xf32> -> vector<8x8xf32>
    %c2_67 = arith.constant 2 : index
    %c0_68 = arith.constant 0 : index
    %c0_69 = arith.constant 0 : index
    %98 = vector.load %arg6[%c2_67, %c0_68, %c0_69] : memref<4x1x8xf32, #tpu.memory_space<vmem>>, vector<1x1x8xf32>
    %99 = vector.shape_cast %98 : vector<1x1x8xf32> to vector<1x8xf32>
    %100 = vector.broadcast %99 : vector<1x8xf32> to vector<8x8xf32>
    %101 = arith.addf %97, %100 : vector<8x8xf32>
    %c2_70 = arith.constant 2 : index
    %c0_71 = arith.constant 0 : index
    %c0_72 = arith.constant 0 : index
    %102 = vector.load %arg4[%c2_70, %c0_71, %c0_72] : memref<4x32x8xbf16, #tpu.memory_space<vmem>>, vector<1x32x8xbf16>
    %103 = vector.shape_cast %102 : vector<1x32x8xbf16> to vector<32x8xbf16>
    %cst_73 = arith.constant dense<0.000000e+00> : vector<8x8xf32>
    %104 = tpu.matmul %5, %103, %cst_73 {dimension_numbers = #tpu.dot_dimension_numbers<[1], [0], [0], [1], [0, 0, 1, 1], [], []>} : vector<8x32xbf16>, vector<32x8xbf16>, vector<8x8xf32> -> vector<8x8xf32>
    %c2_74 = arith.constant 2 : index
    %c0_75 = arith.constant 0 : index
    %c0_76 = arith.constant 0 : index
    %105 = vector.load %arg7[%c2_74, %c0_75, %c0_76] : memref<4x1x8xf32, #tpu.memory_space<vmem>>, vector<1x1x8xf32>
    %106 = vector.shape_cast %105 : vector<1x1x8xf32> to vector<1x8xf32>
    %107 = vector.broadcast %106 : vector<1x8xf32> to vector<8x8xf32>
    %108 = arith.addf %104, %107 : vector<8x8xf32>
    %c2_77 = arith.constant 2 : index
    %c0_78 = arith.constant 0 : index
    %c0_79 = arith.constant 0 : index
    %109 = vector.load %arg5[%c2_77, %c0_78, %c0_79] : memref<4x32x8xbf16, #tpu.memory_space<vmem>>, vector<1x32x8xbf16>
    %110 = vector.shape_cast %109 : vector<1x32x8xbf16> to vector<32x8xbf16>
    %cst_80 = arith.constant dense<0.000000e+00> : vector<8x8xf32>
    %111 = tpu.matmul %5, %110, %cst_80 {dimension_numbers = #tpu.dot_dimension_numbers<[1], [0], [0], [1], [0, 0, 1, 1], [], []>} : vector<8x32xbf16>, vector<32x8xbf16>, vector<8x8xf32> -> vector<8x8xf32>
    %c2_81 = arith.constant 2 : index
    %c0_82 = arith.constant 0 : index
    %c0_83 = arith.constant 0 : index
    %112 = vector.load %arg8[%c2_81, %c0_82, %c0_83] : memref<4x1x8xf32, #tpu.memory_space<vmem>>, vector<1x1x8xf32>
    %113 = vector.shape_cast %112 : vector<1x1x8xf32> to vector<1x8xf32>
    %114 = vector.broadcast %113 : vector<1x8xf32> to vector<8x8xf32>
    %115 = arith.addf %111, %114 : vector<8x8xf32>
    %116 = arith.truncf %101 : vector<8x8xf32> to vector<8x8xbf16>
    %117 = arith.truncf %108 : vector<8x8xf32> to vector<8x8xbf16>
    %cst_84 = arith.constant dense<0.000000e+00> : vector<8x8xf32>
    %118 = tpu.matmul %116, %117, %cst_84 {dimension_numbers = #tpu.dot_dimension_numbers<[1], [1], [0], [0], [0, 0, 1, 0], [], []>} : vector<8x8xbf16>, vector<8x8xbf16>, vector<8x8xf32> -> vector<8x8xf32>
    %cst_85 = arith.constant 0.353553385 : f32
    %119 = vector.broadcast %cst_85 : f32 to vector<8x8xf32>
    %120 = arith.mulf %118, %119 : vector<8x8xf32>
    %cst_86 = arith.constant dense<0xFF800000> : vector<8xf32>
    %121 = vector.multi_reduction <maximumf>, %120, %cst_86 [1] : vector<8x8xf32> to vector<8xf32>
    %122 = vector.shape_cast %121 : vector<8xf32> to vector<8x1xf32>
    %123 = vector.broadcast %122 : vector<8x1xf32> to vector<8x8xf32>
    %124 = arith.subf %120, %123 : vector<8x8xf32>
    %125 = math.exp %124 : vector<8x8xf32>
    %cst_87 = arith.constant dense<0.000000e+00> : vector<8xf32>
    %126 = vector.multi_reduction <add>, %125, %cst_87 [1] : vector<8x8xf32> to vector<8xf32>
    %127 = vector.shape_cast %126 : vector<8xf32> to vector<8x1xf32>
    %128 = tpu.reciprocal %127 {approx = true} : vector<8x1xf32> -> vector<8x1xf32>
    %129 = vector.broadcast %128 : vector<8x1xf32> to vector<8x8xf32>
    %130 = arith.mulf %125, %129 : vector<8x8xf32>
    %131 = arith.truncf %130 : vector<8x8xf32> to vector<8x8xbf16>
    %132 = arith.truncf %115 : vector<8x8xf32> to vector<8x8xbf16>
    %cst_88 = arith.constant dense<0.000000e+00> : vector<8x8xf32>
    %133 = tpu.matmul %131, %132, %cst_88 {dimension_numbers = #tpu.dot_dimension_numbers<[1], [0], [0], [1], [0, 0, 1, 1], [], []>} : vector<8x8xbf16>, vector<8x8xbf16>, vector<8x8xf32> -> vector<8x8xf32>
    %134 = arith.truncf %133 : vector<8x8xf32> to vector<8x8xbf16>
    %c2_89 = arith.constant 2 : index
    %c0_90 = arith.constant 0 : index
    %c0_91 = arith.constant 0 : index
    %135 = vector.load %arg9[%c2_89, %c0_90, %c0_91] : memref<4x8x32xbf16, #tpu.memory_space<vmem>>, vector<1x8x32xbf16>
    %136 = vector.shape_cast %135 : vector<1x8x32xbf16> to vector<8x32xbf16>
    %cst_92 = arith.constant dense<0.000000e+00> : vector<8x32xf32>
    %137 = tpu.matmul %134, %136, %cst_92 {dimension_numbers = #tpu.dot_dimension_numbers<[1], [0], [0], [1], [0, 0, 1, 1], [], []>} : vector<8x8xbf16>, vector<8x32xbf16>, vector<8x32xf32> -> vector<8x32xf32>
    %138 = arith.addf %94, %137 : vector<8x32xf32>
    %c3 = arith.constant 3 : index
    %c0_93 = arith.constant 0 : index
    %c0_94 = arith.constant 0 : index
    %139 = vector.load %arg3[%c3, %c0_93, %c0_94] : memref<4x32x8xbf16, #tpu.memory_space<vmem>>, vector<1x32x8xbf16>
    %140 = vector.shape_cast %139 : vector<1x32x8xbf16> to vector<32x8xbf16>
    %cst_95 = arith.constant dense<0.000000e+00> : vector<8x8xf32>
    %141 = tpu.matmul %2, %140, %cst_95 {dimension_numbers = #tpu.dot_dimension_numbers<[1], [0], [0], [1], [0, 0, 1, 1], [], []>} : vector<8x32xbf16>, vector<32x8xbf16>, vector<8x8xf32> -> vector<8x8xf32>
    %c3_96 = arith.constant 3 : index
    %c0_97 = arith.constant 0 : index
    %c0_98 = arith.constant 0 : index
    %142 = vector.load %arg6[%c3_96, %c0_97, %c0_98] : memref<4x1x8xf32, #tpu.memory_space<vmem>>, vector<1x1x8xf32>
    %143 = vector.shape_cast %142 : vector<1x1x8xf32> to vector<1x8xf32>
    %144 = vector.broadcast %143 : vector<1x8xf32> to vector<8x8xf32>
    %145 = arith.addf %141, %144 : vector<8x8xf32>
    %c3_99 = arith.constant 3 : index
    %c0_100 = arith.constant 0 : index
    %c0_101 = arith.constant 0 : index
    %146 = vector.load %arg4[%c3_99, %c0_100, %c0_101] : memref<4x32x8xbf16, #tpu.memory_space<vmem>>, vector<1x32x8xbf16>
    %147 = vector.shape_cast %146 : vector<1x32x8xbf16> to vector<32x8xbf16>
    %cst_102 = arith.constant dense<0.000000e+00> : vector<8x8xf32>
    %148 = tpu.matmul %5, %147, %cst_102 {dimension_numbers = #tpu.dot_dimension_numbers<[1], [0], [0], [1], [0, 0, 1, 1], [], []>} : vector<8x32xbf16>, vector<32x8xbf16>, vector<8x8xf32> -> vector<8x8xf32>
    %c3_103 = arith.constant 3 : index
    %c0_104 = arith.constant 0 : index
    %c0_105 = arith.constant 0 : index
    %149 = vector.load %arg7[%c3_103, %c0_104, %c0_105] : memref<4x1x8xf32, #tpu.memory_space<vmem>>, vector<1x1x8xf32>
    %150 = vector.shape_cast %149 : vector<1x1x8xf32> to vector<1x8xf32>
    %151 = vector.broadcast %150 : vector<1x8xf32> to vector<8x8xf32>
    %152 = arith.addf %148, %151 : vector<8x8xf32>
    %c3_106 = arith.constant 3 : index
    %c0_107 = arith.constant 0 : index
    %c0_108 = arith.constant 0 : index
    %153 = vector.load %arg5[%c3_106, %c0_107, %c0_108] : memref<4x32x8xbf16, #tpu.memory_space<vmem>>, vector<1x32x8xbf16>
    %154 = vector.shape_cast %153 : vector<1x32x8xbf16> to vector<32x8xbf16>
    %cst_109 = arith.constant dense<0.000000e+00> : vector<8x8xf32>
    %155 = tpu.matmul %5, %154, %cst_109 {dimension_numbers = #tpu.dot_dimension_numbers<[1], [0], [0], [1], [0, 0, 1, 1], [], []>} : vector<8x32xbf16>, vector<32x8xbf16>, vector<8x8xf32> -> vector<8x8xf32>
    %c3_110 = arith.constant 3 : index
    %c0_111 = arith.constant 0 : index
    %c0_112 = arith.constant 0 : index
    %156 = vector.load %arg8[%c3_110, %c0_111, %c0_112] : memref<4x1x8xf32, #tpu.memory_space<vmem>>, vector<1x1x8xf32>
    %157 = vector.shape_cast %156 : vector<1x1x8xf32> to vector<1x8xf32>
    %158 = vector.broadcast %157 : vector<1x8xf32> to vector<8x8xf32>
    %159 = arith.addf %155, %158 : vector<8x8xf32>
    %160 = arith.truncf %145 : vector<8x8xf32> to vector<8x8xbf16>
    %161 = arith.truncf %152 : vector<8x8xf32> to vector<8x8xbf16>
    %cst_113 = arith.constant dense<0.000000e+00> : vector<8x8xf32>
    %162 = tpu.matmul %160, %161, %cst_113 {dimension_numbers = #tpu.dot_dimension_numbers<[1], [1], [0], [0], [0, 0, 1, 0], [], []>} : vector<8x8xbf16>, vector<8x8xbf16>, vector<8x8xf32> -> vector<8x8xf32>
    %cst_114 = arith.constant 0.353553385 : f32
    %163 = vector.broadcast %cst_114 : f32 to vector<8x8xf32>
    %164 = arith.mulf %162, %163 : vector<8x8xf32>
    %cst_115 = arith.constant dense<0xFF800000> : vector<8xf32>
    %165 = vector.multi_reduction <maximumf>, %164, %cst_115 [1] : vector<8x8xf32> to vector<8xf32>
    %166 = vector.shape_cast %165 : vector<8xf32> to vector<8x1xf32>
    %167 = vector.broadcast %166 : vector<8x1xf32> to vector<8x8xf32>
    %168 = arith.subf %164, %167 : vector<8x8xf32>
    %169 = math.exp %168 : vector<8x8xf32>
    %cst_116 = arith.constant dense<0.000000e+00> : vector<8xf32>
    %170 = vector.multi_reduction <add>, %169, %cst_116 [1] : vector<8x8xf32> to vector<8xf32>
    %171 = vector.shape_cast %170 : vector<8xf32> to vector<8x1xf32>
    %172 = tpu.reciprocal %171 {approx = true} : vector<8x1xf32> -> vector<8x1xf32>
    %173 = vector.broadcast %172 : vector<8x1xf32> to vector<8x8xf32>
    %174 = arith.mulf %169, %173 : vector<8x8xf32>
    %175 = arith.truncf %174 : vector<8x8xf32> to vector<8x8xbf16>
    %176 = arith.truncf %159 : vector<8x8xf32> to vector<8x8xbf16>
    %cst_117 = arith.constant dense<0.000000e+00> : vector<8x8xf32>
    %177 = tpu.matmul %175, %176, %cst_117 {dimension_numbers = #tpu.dot_dimension_numbers<[1], [0], [0], [1], [0, 0, 1, 1], [], []>} : vector<8x8xbf16>, vector<8x8xbf16>, vector<8x8xf32> -> vector<8x8xf32>
    %178 = arith.truncf %177 : vector<8x8xf32> to vector<8x8xbf16>
    %c3_118 = arith.constant 3 : index
    %c0_119 = arith.constant 0 : index
    %c0_120 = arith.constant 0 : index
    %179 = vector.load %arg9[%c3_118, %c0_119, %c0_120] : memref<4x8x32xbf16, #tpu.memory_space<vmem>>, vector<1x8x32xbf16>
    %180 = vector.shape_cast %179 : vector<1x8x32xbf16> to vector<8x32xbf16>
    %cst_121 = arith.constant dense<0.000000e+00> : vector<8x32xf32>
    %181 = tpu.matmul %178, %180, %cst_121 {dimension_numbers = #tpu.dot_dimension_numbers<[1], [0], [0], [1], [0, 0, 1, 1], [], []>} : vector<8x8xbf16>, vector<8x32xbf16>, vector<8x32xf32> -> vector<8x32xf32>
    %182 = arith.addf %138, %181 : vector<8x32xf32>
    %c0_122 = arith.constant 0 : index
    %c0_123 = arith.constant 0 : index
    %183 = vector.load %arg10[%c0_122, %c0_123] : memref<1x32xf32, #tpu.memory_space<vmem>>, vector<1x32xf32>
    %184 = vector.broadcast %183 : vector<1x32xf32> to vector<8x32xf32>
    %185 = arith.addf %182, %184 : vector<8x32xf32>
    %186 = arith.addf %185, %1 : vector<8x32xf32>
    %cst_124 = arith.constant dense<0.000000e+00> : vector<8xf32>
    %187 = vector.multi_reduction <add>, %186, %cst_124 [1] : vector<8x32xf32> to vector<8xf32>
    %188 = vector.shape_cast %187 : vector<8xf32> to vector<8x1xf32>
    %cst_125 = arith.constant 3.200000e+01 : f32
    %189 = vector.broadcast %cst_125 : f32 to vector<8x1xf32>
    %190 = arith.divf %188, %189 : vector<8x1xf32>
    %191 = vector.broadcast %190 : vector<8x1xf32> to vector<8x32xf32>
    %192 = arith.subf %186, %191 : vector<8x32xf32>
    %193 = arith.mulf %192, %192 : vector<8x32xf32>
    %cst_126 = arith.constant dense<0.000000e+00> : vector<8xf32>
    %194 = vector.multi_reduction <add>, %193, %cst_126 [1] : vector<8x32xf32> to vector<8xf32>
    %195 = vector.shape_cast %194 : vector<8xf32> to vector<8x1xf32>
    %cst_127 = arith.constant 3.200000e+01 : f32
    %196 = vector.broadcast %cst_127 : f32 to vector<8x1xf32>
    %197 = arith.divf %195, %196 : vector<8x1xf32>
    %198 = vector.broadcast %190 : vector<8x1xf32> to vector<8x32xf32>
    %199 = arith.subf %186, %198 : vector<8x32xf32>
    %cst_128 = arith.constant 9.99999974E-6 : f32
    %200 = vector.broadcast %cst_128 : f32 to vector<8x1xf32>
    %201 = arith.addf %197, %200 : vector<8x1xf32>
    %202 = math.rsqrt %201 : vector<8x1xf32>
    %203 = vector.broadcast %202 : vector<8x1xf32> to vector<8x32xf32>
    %204 = arith.mulf %199, %203 : vector<8x32xf32>
    %c0_129 = arith.constant 0 : index
    %c0_130 = arith.constant 0 : index
    %205 = vector.load %arg11[%c0_129, %c0_130] : memref<1x32xf32, #tpu.memory_space<vmem>>, vector<1x32xf32>
    %206 = vector.broadcast %205 : vector<1x32xf32> to vector<8x32xf32>
    %207 = arith.mulf %204, %206 : vector<8x32xf32>
    %c0_131 = arith.constant 0 : index
    %c0_132 = arith.constant 0 : index
    %208 = vector.load %arg12[%c0_131, %c0_132] : memref<1x32xf32, #tpu.memory_space<vmem>>, vector<1x32xf32>
    %209 = vector.broadcast %208 : vector<1x32xf32> to vector<8x32xf32>
    %210 = arith.addf %207, %209 : vector<8x32xf32>
    %c0_133 = arith.constant 0 : index
    %c0_134 = arith.constant 0 : index
    %c0_135 = arith.constant 0 : index
    %211 = vector.load %arg13[%c0_133, %c0_134, %c0_135] : memref<1x8x32xf32, #tpu.memory_space<vmem>>, vector<1x8x32xf32>
    %212 = vector.shape_cast %211 : vector<1x8x32xf32> to vector<8x32xf32>
    %213 = vector.shape_cast %210 : vector<8x32xf32> to vector<1x8x32xf32>
    tpu.vector_store %arg13[%c0_133, %c0_134, %c0_135], %213 {strides = array<i32>} : memref<1x8x32xf32, #tpu.memory_space<vmem>>, vector<1x8x32xf32>,
    return
  }
  func.func @transform_0(%arg0: i32) -> (i32, i32, i32) {
    %c0_i32 = arith.constant 0 : i32
    %c0_i32_0 = arith.constant 0 : i32
    %c0_i32_1 = arith.constant 0 : i32
    return %arg0, %c0_i32, %c0_i32_0 : i32, i32, i32
  }
  func.func @transform_1(%arg0: i32) -> (i32, i32, i32) {
    %c0_i32 = arith.constant 0 : i32
    %c0_i32_0 = arith.constant 0 : i32
    %c0_i32_1 = arith.constant 0 : i32
    return %arg0, %c0_i32, %c0_i32_0 : i32, i32, i32
  }
  func.func @transform_2(%arg0: i32) -> (i32, i32, i32) {
    %c0_i32 = arith.constant 0 : i32
    %c0_i32_0 = arith.constant 0 : i32
    %c0_i32_1 = arith.constant 0 : i32
    %c0_i32_2 = arith.constant 0 : i32
    return %c0_i32, %c0_i32_0, %c0_i32_1 : i32, i32, i32
  }
  func.func @transform_3(%arg0: i32) -> (i32, i32, i32) {
    %c0_i32 = arith.constant 0 : i32
    %c0_i32_0 = arith.constant 0 : i32
    %c0_i32_1 = arith.constant 0 : i32
    %c0_i32_2 = arith.constant 0 : i32
    return %c0_i32, %c0_i32_0, %c0_i32_1 : i32, i32, i32
  }
  func.func @transform_4(%arg0: i32) -> (i32, i32, i32) {
    %c0_i32 = arith.constant 0 : i32
    %c0_i32_0 = arith.constant 0 : i32
    %c0_i32_1 = arith.constant 0 : i32
    %c0_i32_2 = arith.constant 0 : i32
    return %c0_i32, %c0_i32_0, %c0_i32_1 : i32, i32, i32
  }
  func.func @transform_5(%arg0: i32) -> (i32, i32, i32) {
    %c0_i32 = arith.constant 0 : i32
    %c0_i32_0 = arith.constant 0 : i32
    %c0_i32_1 = arith.constant 0 : i32
    %c0_i32_2 = arith.constant 0 : i32
    return %c0_i32, %c0_i32_0, %c0_i32_1 : i32, i32, i32
  }
  func.func @transform_6(%arg0: i32) -> (i32, i32, i32) {
    %c0_i32 = arith.constant 0 : i32
    %c0_i32_0 = arith.constant 0 : i32
    %c0_i32_1 = arith.constant 0 : i32
    %c0_i32_2 = arith.constant 0 : i32
    return %c0_i32, %c0_i32_0, %c0_i32_1 : i32, i32, i32
  }
  func.func @transform_7(%arg0: i32) -> (i32, i32, i32) {
    %c0_i32 = arith.constant 0 : i32
    %c0_i32_0 = arith.constant 0 : i32
    %c0_i32_1 = arith.constant 0 : i32
    %c0_i32_2 = arith.constant 0 : i32
    return %c0_i32, %c0_i32_0, %c0_i32_1 : i32, i32, i32
  }
  func.func @transform_8(%arg0: i32) -> (i32, i32, i32) {
    %c0_i32 = arith.constant 0 : i32
    %c0_i32_0 = arith.constant 0 : i32
    %c0_i32_1 = arith.constant 0 : i32
    %c0_i32_2 = arith.constant 0 : i32
    return %c0_i32, %c0_i32_0, %c0_i32_1 : i32, i32, i32
  }
  func.func @transform_9(%arg0: i32) -> (i32, i32) {
    %c0_i32 = arith.constant 0 : i32
    %c0_i32_0 = arith.constant 0 : i32
    %c0_i32_1 = arith.constant 0 : i32
    return %c0_i32, %c0_i32_0 : i32, i32
  }
  func.func @transform_10(%arg0: i32) -> (i32, i32) {
    %c0_i32 = arith.constant 0 : i32
    %c0_i32_0 = arith.constant 0 : i32
    %c0_i32_1 = arith.constant 0 : i32
    return %c0_i32, %c0_i32_0 : i32, i32
  }
  func.func @transform_11(%arg0: i32) -> (i32, i32) {
    %c0_i32 = arith.constant 0 : i32
    %c0_i32_0 = arith.constant 0 : i32
    %c0_i32_1 = arith.constant 0 : i32
    return %c0_i32, %c0_i32_0 : i32, i32
  }
  func.func @transform_12(%arg0: i32) -> (i32, i32, i32) {
    %c0_i32 = arith.constant 0 : i32
    %c0_i32_0 = arith.constant 0 : i32
    %c0_i32_1 = arith.constant 0 : i32
    return %arg0, %c0_i32, %c0_i32_0 : i32, i32, i32
  }
}

module attributes {stable_mosaic.version = 11 : i64} {
  func.func @_linear_kernel(%arg0: i32, %arg1: i32, %arg2: memref<16x32xf32, #tpu.memory_space<vmem>>, %arg3: memref<32x128xbf16, #tpu.memory_space<vmem>>, %arg4: memref<1x128xf32, #tpu.memory_space<vmem>>, %arg5: memref<16x128xf32, #tpu.memory_space<vmem>>) attributes {dimension_semantics = [#tpu.dimension_semantics<parallel>, #tpu.dimension_semantics<parallel>], iteration_bounds = array<i64: 1, 1>, scalar_prefetch = 0 : i64, scratch_operands = 0 : i64, tpu.core_type = #tpu.core_type<tc>, window_params = [{transform_indices = @transform_0, window_bounds = array<i64: 16, 32>}, {transform_indices = @transform_1, window_bounds = array<i64: 32, 128>}, {transform_indices = @transform_2, window_bounds = array<i64: 1, 128>}, {transform_indices = @transform_3, window_bounds = array<i64: 16, 128>}]} {
    %c0 = arith.constant 0 : index
    %c0_0 = arith.constant 0 : index
    %0 = vector.load %arg2[%c0, %c0_0] : memref<16x32xf32, #tpu.memory_space<vmem>>, vector<16x32xf32>
    %1 = arith.truncf %0 : vector<16x32xf32> to vector<16x32xbf16>
    %c0_1 = arith.constant 0 : index
    %c0_2 = arith.constant 0 : index
    %2 = vector.load %arg3[%c0_1, %c0_2] : memref<32x128xbf16, #tpu.memory_space<vmem>>, vector<32x128xbf16>
    %cst = arith.constant dense<0.000000e+00> : vector<16x128xf32>
    %3 = tpu.matmul %1, %2, %cst {dimension_numbers = #tpu.dot_dimension_numbers<[1], [0], [0], [1], [0, 0, 1, 1], [], []>} : vector<16x32xbf16>, vector<32x128xbf16>, vector<16x128xf32> -> vector<16x128xf32>
    %c0_3 = arith.constant 0 : index
    %c0_4 = arith.constant 0 : index
    %4 = vector.load %arg4[%c0_3, %c0_4] : memref<1x128xf32, #tpu.memory_space<vmem>>, vector<1x128xf32>
    %5 = vector.broadcast %4 : vector<1x128xf32> to vector<16x128xf32>
    %6 = arith.addf %3, %5 : vector<16x128xf32>
    %c0_5 = arith.constant 0 : index
    %c0_6 = arith.constant 0 : index
    %7 = vector.load %arg5[%c0_5, %c0_6] : memref<16x128xf32, #tpu.memory_space<vmem>>, vector<16x128xf32>
    tpu.vector_store %arg5[%c0_5, %c0_6], %6 {strides = array<i32>} : memref<16x128xf32, #tpu.memory_space<vmem>>, vector<16x128xf32>,
    return
  }
  func.func @transform_0(%arg0: i32, %arg1: i32) -> (i32, i32) {
    %c0_i32 = arith.constant 0 : i32
    %c0_i32_0 = arith.constant 0 : i32
    return %arg0, %c0_i32 : i32, i32
  }
  func.func @transform_1(%arg0: i32, %arg1: i32) -> (i32, i32) {
    %c0_i32 = arith.constant 0 : i32
    %c0_i32_0 = arith.constant 0 : i32
    return %c0_i32, %arg1 : i32, i32
  }
  func.func @transform_2(%arg0: i32, %arg1: i32) -> (i32, i32) {
    %c0_i32 = arith.constant 0 : i32
    %c0_i32_0 = arith.constant 0 : i32
    return %c0_i32, %arg1 : i32, i32
  }
  func.func @transform_3(%arg0: i32, %arg1: i32) -> (i32, i32) {
    %c0_i32 = arith.constant 0 : i32
    return %arg0, %arg1 : i32, i32
  }
}

</mosaic_0001>

<llo_original>
// kernel: tpu_custom_call.1
$region0: #{tpu_custom_call.1}
  #allocation0 [shape = 'u32[]', space=smem, size = 0x4, offset = 0x4, fixed_abs, tag = 'smem constant byte address 0x4 - core index']
  #allocation1 [shape = 'u32[144,128]{1,0:T(1,128)}', space=vmem, size = 0x12000, scoped, tag = 'internal scratch']
  %s0 = inlined_call_operand.hbm [shape: f32[8,128], index: 0, kind: input, shape index: {}]
  %s1 = inlined_call_operand.hbm [shape: f32[8,128], index: 1, kind: input, shape index: {}]
  %s2 = inlined_call_operand.hbm [shape: f32[8,128], index: 2, kind: output, shape index: {}]
  %s3 = sld [smem:[#allocation0]]
  $region26: #{tpu_custom_call.1} parent=0
    _
  %s5 = ssub.s32 1, %s3
  %s6 = scalar_select 0, %s5, %s3
  $region1: #{tpu_custom_call.1} parent=0
    #allocation2 [shape = 'u8[4096]{0}', space=vmem, size = 0x1000, scoped, tag = 'input window, operand 0, single buffered']
    #allocation3 [shape = 's32[1]{0}', space=sflag, size = 0x4, scoped, tag = 'scoped memory for tpu_custom_call.1']
    #allocation4 [shape = 's32[1]{0}', space=sflag, size = 0x4, scoped, tag = 'scoped memory for tpu_custom_call.1']
    #allocation5 [shape = 'u8[4096]{0}', space=vmem, size = 0x1000, scoped, tag = 'input window, operand 1, single buffered']
    #allocation6 [shape = 's32[1]{0}', space=sflag, size = 0x4, scoped, tag = 'scoped memory for tpu_custom_call.1']
    #allocation7 [shape = 'u8[4096]{0}', space=vmem, size = 0x1000, scoped, tag = 'output window, operand 0, single buffered']
    %7 = vsyncpa [#allocation3], 0
    %8 = vsyncpa [#allocation6], 0
    %9 = vsyncpa [#allocation4], 0
    // Predicated region
    $region2: #{tpu_custom_call.1} parent=1 // pred_check
      _
    $region3: #{tpu_custom_call.1} parent=1 // pred_check_branch
      %11 = sbr.rel (0) target = $region5
    $region4: #{tpu_custom_call.1} parent=1 // pred_region
      %s13 = ssub.s32 128, 128
      %14 = vsyncadd [#allocation3], %s13
      %s16 = sshll.u32 [#allocation2], 4
      %s17 = int_to_ptr.vmem [resolvable:$true] %s16
      %19 = dma.hbm_to_vmem [thread:$0]  %s0, 128, %s17, [#allocation3]
    $region5: #{tpu_custom_call.1} parent=1 // pred_fallthru
      _
    // Predicated region
    $region6: #{tpu_custom_call.1} parent=1 // pred_check
      _
    $region7: #{tpu_custom_call.1} parent=1 // pred_check_branch
      %21 = sbr.rel (0) target = $region9
    $region8: #{tpu_custom_call.1} parent=1 // pred_region
      %s23 = ssub.s32 128, 128
      %24 = vsyncadd [#allocation6], %s23
      %s26 = sshll.u32 [#allocation5], 4
      %s27 = int_to_ptr.vmem [resolvable:$true] %s26
      %29 = dma.hbm_to_vmem [thread:$0]  %s1, 128, %s27, [#allocation6]
    $region9: #{tpu_custom_call.1} parent=1 // pred_fallthru
      _
    // Predicated region
    $region10: #{tpu_custom_call.1} parent=1 // pred_check
      _
    $region11: #{tpu_custom_call.1} parent=1 // pred_check_branch
      %31 = sbr.rel (0) target = $region13
    $region12: #{tpu_custom_call.1} parent=1 // pred_region
      %32 = dma.done [#allocation3], 128
    $region13: #{tpu_custom_call.1} parent=1 // pred_fallthru
      _
    // Predicated region
    $region14: #{tpu_custom_call.1} parent=1 // pred_check
      _
    $region15: #{tpu_custom_call.1} parent=1 // pred_check_branch
      %34 = sbr.rel (0) target = $region17
    $region16: #{tpu_custom_call.1} parent=1 // pred_region
      %35 = dma.done [#allocation6], 128
    $region17: #{tpu_custom_call.1} parent=1 // pred_fallthru
      _
    %v36 = vld [vmem:[#allocation2] sm:$0xff]
    %v37 = vld [vmem:[#allocation5] sm:$0xff]
    %v38 = vadd.f32 %v36, %v37
    %39 = vst [vmem:[#allocation7] sm:$0xff] %v38
    // Predicated region
    $region18: #{tpu_custom_call.1} parent=1 // pred_check
      _
    $region19: #{tpu_custom_call.1} parent=1 // pred_check_branch
      %41 = sbr.rel (0) target = $region21
    $region20: #{tpu_custom_call.1} parent=1 // pred_region
      %s43 = ssub.s32 128, 128
      %44 = vsyncadd [#allocation4], %s43
      %s46 = sshll.u32 [#allocation7], 4
      %s47 = int_to_ptr.vmem [resolvable:$true] %s46
      %49 = dma.vmem_to_hbm [thread:$0]  %s47, 128, %s2, [#allocation4]
    $region21: #{tpu_custom_call.1} parent=1 // pred_fallthru
      _
    // Predicated region
    $region22: #{tpu_custom_call.1} parent=1 // pred_check
      _
    $region23: #{tpu_custom_call.1} parent=1 // pred_check_branch
      %51 = sbr.rel (0) target = $region25
    $region24: #{tpu_custom_call.1} parent=1 // pred_region
      %52 = dma.done [#allocation4], 128
    $region25: #{tpu_custom_call.1} parent=1 // pred_fallthru
      _
    %53 = vsyncpa [#allocation3], 1
    %54 = vsyncpa [#allocation6], 1
    %55 = vsyncpa [#allocation4], 1

// kernel: forward.17
$region0: #{forward.17}
  #allocation0 [shape = 'u32[]', space=smem, size = 0x4, offset = 0x4, fixed_abs, tag = 'smem constant byte address 0x4 - core index']
  #allocation1 [shape = 'u32[144,128]{1,0:T(1,128)}', space=vmem, size = 0x12000, scoped, tag = 'internal scratch']
  %s0 = inlined_call_operand.vmem [shape: f32[16,32], index: 0, kind: input, shape index: {}]
  %s1 = inlined_call_operand.vmem [shape: f32[1,32], index: 1, kind: input, shape index: {}]
  %s2 = inlined_call_operand.vmem [shape: f32[1,32], index: 2, kind: input, shape index: {}]
  %s3 = inlined_call_operand.vmem [shape: f32[16,32], index: 3, kind: output, shape index: {}]
  %s4 = sld [smem:[#allocation0]]
  $region22: #{forward.17} parent=0
    _
  %s6 = ssub.s32 1, %s4
  %s7 = scalar_select 0, %s6, %s4
  // Predicated region
  $region2: #{forward.17} parent=0 // pred_check
    _
  $region3: #{forward.17} parent=0 // pred_check_branch
    %9 = sbr.rel (0) target = $region5
  $region4: #{forward.17} parent=0 // pred_region
    _
  $region5: #{forward.17} parent=0 // pred_fallthru
    _
  // Predicated region
  $region6: #{forward.17} parent=0 // pred_check
    _
  $region7: #{forward.17} parent=0 // pred_check_branch
    %11 = sbr.rel (0) target = $region9
  $region8: #{forward.17} parent=0 // pred_region
    _
  $region9: #{forward.17} parent=0 // pred_fallthru
    _
  // Predicated region
  $region10: #{forward.17} parent=0 // pred_check
    _
  $region11: #{forward.17} parent=0 // pred_check_branch
    %13 = sbr.rel (0) target = $region13
  $region12: #{forward.17} parent=0 // pred_region
    _
  $region13: #{forward.17} parent=0 // pred_fallthru
    _
  %v14 = vld [vmem:[%s0] sm:$0xff]
  %v15 = vld [vmem:[%s0 + $0x8] sm:$0xff]
  %vm16 = vcmask 261120
  %v17 = vsel %vm16, %v14, 0.0
  %18 = vadd.xlane.f32.xlu0 %v17
  %v19 = vpop.xlane.xlu0 %18
  %v20 = vsel %vm16, %v15, 0.0
  %21 = vadd.xlane.f32.xlu0 %v20
  %v22 = vpop.xlane.xlu0 %21
  %v23 = vrcp.pop 32.0
  %v24 = vmul.f32 %v19, %v23
  %v25 = vmul.f32 %v22, %v23
  %v26 = vsub.f32 %v14, %v24
  %v27 = vsub.f32 %v15, %v25
  %v28 = vmul.f32 %v26, %v26
  %v29 = vmul.f32 %v27, %v27
  %v30 = vsel %vm16, %v28, 0.0
  %31 = vadd.xlane.f32.xlu0 %v30
  %v32 = vpop.xlane.xlu0 %31
  %v33 = vsel %vm16, %v29, 0.0
  %34 = vadd.xlane.f32.xlu0 %v33
  %v35 = vpop.xlane.xlu0 %34
  %v36 = vmul.f32 %v32, %v23
  %v37 = vmul.f32 %v35, %v23
  %v38 = vadd.f32 %v36, 1e-05
  %v39 = vadd.f32 %v37, 1e-05
  %v40 = vrsqrt.pop %v38
  %v41 = vrsqrt.pop %v39
  %v42 = vmul.f32 %v26, %v40
  %v43 = vmul.f32 %v27, %v41
  %v44 = vld [vmem:[%s1] sm:$0x1]
  %v46 = vlaneseq
  %v47 = vshrl.u32 %v46, 7
  %v48 = vsub.s32 0, %v47
  %v49 = vrot.slane %v44, %v48
  %v51 = vmul.f32 %v42, %v49
  %v52 = vmul.f32 %v43, %v49
  %v53 = vld [vmem:[%s2] sm:$0x1]
  %v55 = vlaneseq
  %v56 = vshrl.u32 %v55, 7
  %v57 = vsub.s32 0, %v56
  %v58 = vrot.slane %v53, %v57
  %v60 = vadd.f32 %v51, %v58
  %v61 = vadd.f32 %v52, %v58
  %62 = vst.msk [vmem:[%s3] sm:$0xff] %vm16, %v60
  %63 = vst.msk [vmem:[%s3 + $0x8] sm:$0xff] %vm16, %v61
  // Predicated region
  $region14: #{forward.17} parent=0 // pred_check
    _
  $region15: #{forward.17} parent=0 // pred_check_branch
    %65 = sbr.rel (0) target = $region17
  $region16: #{forward.17} parent=0 // pred_region
    _
  $region17: #{forward.17} parent=0 // pred_fallthru
    _
  // Predicated region
  $region18: #{forward.17} parent=0 // pred_check
    _
  $region19: #{forward.17} parent=0 // pred_check_branch
    %67 = sbr.rel (0) target = $region21
  $region20: #{forward.17} parent=0 // pred_region
    _
  $region21: #{forward.17} parent=0 // pred_fallthru
    _

// kernel: forward.14
$region0: #{forward.14}
  #allocation0 [shape = 'u32[]', space=smem, size = 0x4, offset = 0x4, fixed_abs, tag = 'smem constant byte address 0x4 - core index']
  #allocation1 [shape = 'u32[144,128]{1,0:T(1,128)}', space=vmem, size = 0x12000, scoped, tag = 'internal scratch']
  %s0 = inlined_call_operand.vmem [shape: f32[16,32], index: 0, kind: input, shape index: {}]
  %s1 = inlined_call_operand.vmem [shape: bf16[32,64], index: 1, kind: input, shape index: {}]
  %s2 = inlined_call_operand.vmem [shape: f32[1,64], index: 2, kind: input, shape index: {}]
  %s3 = inlined_call_operand.vmem [shape: bf16[64,32], index: 3, kind: input, shape index: {}]
  %s4 = inlined_call_operand.vmem [shape: f32[1,32], index: 4, kind: input, shape index: {}]
  %s5 = inlined_call_operand.vmem [shape: f32[1,32], index: 5, kind: input, shape index: {}]
  %s6 = inlined_call_operand.vmem [shape: f32[1,32], index: 6, kind: input, shape index: {}]
  %s7 = inlined_call_operand.vmem [shape: f32[16,32], index: 7, kind: output, shape index: {}]
  %s8 = sld [smem:[#allocation0]]
  $region38: #{forward.14} parent=0
    _
  %s10 = ssub.s32 1, %s8
  %s11 = scalar_select 0, %s10, %s8
  // Predicated region
  $region2: #{forward.14} parent=0 // pred_check
    _
  $region3: #{forward.14} parent=0 // pred_check_branch
    %13 = sbr.rel (0) target = $region5
  $region4: #{forward.14} parent=0 // pred_region
    _
  $region5: #{forward.14} parent=0 // pred_fallthru
    _
  // Predicated region
  $region6: #{forward.14} parent=0 // pred_check
    _
  $region7: #{forward.14} parent=0 // pred_check_branch
    %15 = sbr.rel (0) target = $region9
  $region8: #{forward.14} parent=0 // pred_region
    _
  $region9: #{forward.14} parent=0 // pred_fallthru
    _
  // Predicated region
  $region10: #{forward.14} parent=0 // pred_check
    _
  $region11: #{forward.14} parent=0 // pred_check_branch
    %17 = sbr.rel (0) target = $region13
  $region12: #{forward.14} parent=0 // pred_region
    _
  $region13: #{forward.14} parent=0 // pred_fallthru
    _
  // Predicated region
  $region14: #{forward.14} parent=0 // pred_check
    _
  $region15: #{forward.14} parent=0 // pred_check_branch
    %19 = sbr.rel (0) target = $region17
  $region16: #{forward.14} parent=0 // pred_region
    _
  $region17: #{forward.14} parent=0 // pred_fallthru
    _
  // Predicated region
  $region18: #{forward.14} parent=0 // pred_check
    _
  $region19: #{forward.14} parent=0 // pred_check_branch
    %21 = sbr.rel (0) target = $region21
  $region20: #{forward.14} parent=0 // pred_region
    _
  $region21: #{forward.14} parent=0 // pred_fallthru
    _
  // Predicated region
  $region22: #{forward.14} parent=0 // pred_check
    _
  $region23: #{forward.14} parent=0 // pred_check_branch
    %23 = sbr.rel (0) target = $region25
  $region24: #{forward.14} parent=0 // pred_region
    _
  $region25: #{forward.14} parent=0 // pred_fallthru
    _
  // Predicated region
  $region26: #{forward.14} parent=0 // pred_check
    _
  $region27: #{forward.14} parent=0 // pred_check_branch
    %25 = sbr.rel (0) target = $region29
  $region28: #{forward.14} parent=0 // pred_region
    _
  $region29: #{forward.14} parent=0 // pred_fallthru
    _
  %v27 = vld [vmem:[%s0] sm:$0xff]
  %v28 = vld [vmem:[%s0 + $0x8] sm:$0xff]
  %v29 = vpack.c.bf16 %v28, %v27
  %v30 = vld [vmem:[%s1] sm:$0xf]
  %v31 = vld [vmem:[%s1 + $0x4] sm:$0xf]
  %v32 = vld [vmem:[%s1 + $0x8] sm:$0xf]
  %v33 = vld [vmem:[%s1 + $0xc] sm:$0xf]
  %v34 = vld [vmem:[%s2] sm:$0x1]
  %v36 = vlaneseq
  %v37 = vshrl.u32 %v36, 7
  %v38 = vsub.s32 0, %v37
  %v39 = vrot.slane %v34, %v38
  %v45 = vunpack.c.l.b16 %v30
  %v46 = vunpack.c.l.b16 %v31
  %v47 = vunpack.c.l.b16 %v32
  %v48 = vunpack.c.l.b16 %v33
  %v49 = vpack.c.b16 %v46, %v45
  %v50 = vpack.c.b16 %v48, %v47
  %vm53 = vcmask 261120
  %v55 = vsel %vm53, %v29, 0
  %57 = vmatprep.subr.bf16.mxu0 0
  %58 = vmatpush1.bf16.msra.mxu0 0
  %59 = vmatprep.subr.bf16.mxu0 0
  %60 = vmatpush1.bf16.msra.mxu0 0
  %61 = vmatprep.subr.bf16.mxu0 0
  %62 = vmatpush1.bf16.msra.mxu0 0
  %63 = vmatprep.subr.bf16.mxu0 0
  %64 = vmatpush1.bf16.msra.mxu0 0
  %65 = vmatprep.subr.bf16.mxu0 0
  %66 = vmatpush1.bf16.msra.mxu0 0
  %67 = vmatprep.subr.bf16.mxu0 0
  %68 = vmatpush1.bf16.msra.mxu0 0
  %69 = vmatprep.subr.bf16.mxu0 0
  %70 = vmatpush1.bf16.msra.mxu0 %v50
  %71 = vmatprep.subr.bf16.mxu0 0
  %72 = vmatpush1.bf16.msra.mxu0 %v49
  %73 = vmatprep.subr.bf16.mxu0 0
  %74 = vmatpush2.bf16.msra.mxu0 0
  %75 = vmatprep.subr.bf16.mxu0 0
  %76 = vmatpush2.bf16.msra.mxu0 0
  %77 = vmatprep.subr.bf16.mxu0 0
  %78 = vmatpush2.bf16.msra.mxu0 0
  %79 = vmatprep.subr.bf16.mxu0 0
  %80 = vmatpush2.bf16.msra.mxu0 0
  %81 = vmatprep.subr.bf16.mxu0 0
  %82 = vmatpush2.bf16.msra.mxu0 0
  %83 = vmatprep.subr.bf16.mxu0 0
  %84 = vmatpush2.bf16.msra.mxu0 0
  %85 = vmatprep.subr.bf16.mxu0 0
  %86 = vmatpush2.bf16.msra.mxu0 0
  %87 = vmatprep.subr.bf16.mxu0 0
  %88 = vmatpush2.bf16.msra.mxu0 0
  %89 = vmatprep.mubr.bf16.mxu0 0
  %90 = vmatmul.mubr.bf16.gmra.mxu0 %v55
  %v91 = vpop.f32.mrf.mxu0
  %v92 = vadd.f32 %v39, %v91
  %v93 = vpop.f32.mrf.mxu0
  %v94 = vpop.f32.mrf.mxu0
  %v95 = vadd.f32 %v39, %v94
  %v96 = vpop.f32.mrf.mxu0
  %97 = vdwg.mxu0
  %v98 = vmax.f32 %v92, 0.0
  %v99 = vmax.f32 %v95, 0.0
  %v100 = vpack.c.bf16 %v99, %v98
  %v101 = vld [vmem:[%s3] sm:$0xf]
  %v102 = vld [vmem:[%s3 + $0x4] sm:$0xf]
  %v103 = vld [vmem:[%s3 + $0x8] sm:$0xf]
  %v104 = vld [vmem:[%s3 + $0xc] sm:$0xf]
  %v105 = vld [vmem:[%s3 + $0x10] sm:$0xf]
  %v106 = vld [vmem:[%s3 + $0x14] sm:$0xf]
  %v107 = vld [vmem:[%s3 + $0x18] sm:$0xf]
  %v108 = vld [vmem:[%s3 + $0x1c] sm:$0xf]
  %v109 = vld [vmem:[%s4] sm:$0x1]
  %v111 = vlaneseq
  %v112 = vshrl.u32 %v111, 7
  %v113 = vsub.s32 0, %v112
  %v114 = vrot.slane %v109, %v113
  %v124 = vunpack.c.l.b16 %v101
  %v125 = vunpack.c.l.b16 %v102
  %v126 = vunpack.c.l.b16 %v103
  %v127 = vunpack.c.l.b16 %v104
  %v128 = vunpack.c.l.b16 %v105
  %v129 = vunpack.c.l.b16 %v106
  %v130 = vunpack.c.l.b16 %v107
  %v131 = vunpack.c.l.b16 %v108
  %v132 = vpack.c.b16 %v125, %v124
  %v133 = vpack.c.b16 %v127, %v126
  %v134 = vpack.c.b16 %v129, %v128
  %v135 = vpack.c.b16 %v131, %v130
  %vm140 = vcmask 523264
  %v142 = vsel %vm140, %v100, 0
  %144 = vmatprep.subr.bf16.mxu0 0
  %145 = vmatpush1.bf16.msra.mxu0 0
  %146 = vmatprep.subr.bf16.mxu0 0
  %147 = vmatpush1.bf16.msra.mxu0 0
  %148 = vmatprep.subr.bf16.mxu0 0
  %149 = vmatpush1.bf16.msra.mxu0 0
  %150 = vmatprep.subr.bf16.mxu0 0
  %151 = vmatpush1.bf16.msra.mxu0 0
  %152 = vmatprep.subr.bf16.mxu0 0
  %153 = vmatpush1.bf16.msra.mxu0 %v135
  %154 = vmatprep.subr.bf16.mxu0 0
  %155 = vmatpush1.bf16.msra.mxu0 %v134
  %156 = vmatprep.subr.bf16.mxu0 0
  %157 = vmatpush1.bf16.msra.mxu0 %v133
  %158 = vmatprep.subr.bf16.mxu0 0
  %159 = vmatpush1.bf16.msra.mxu0 %v132
  %160 = vmatprep.subr.bf16.mxu0 0
  %161 = vmatpush2.bf16.msra.mxu0 0
  %162 = vmatprep.subr.bf16.mxu0 0
  %163 = vmatpush2.bf16.msra.mxu0 0
  %164 = vmatprep.subr.bf16.mxu0 0
  %165 = vmatpush2.bf16.msra.mxu0 0
  %166 = vmatprep.subr.bf16.mxu0 0
  %167 = vmatpush2.bf16.msra.mxu0 0
  %168 = vmatprep.subr.bf16.mxu0 0
  %169 = vmatpush2.bf16.msra.mxu0 0
  %170 = vmatprep.subr.bf16.mxu0 0
  %171 = vmatpush2.bf16.msra.mxu0 0
  %172 = vmatprep.subr.bf16.mxu0 0
  %173 = vmatpush2.bf16.msra.mxu0 0
  %174 = vmatprep.subr.bf16.mxu0 0
  %175 = vmatpush2.bf16.msra.mxu0 0
  %176 = vmatprep.mubr.bf16.mxu0 0
  %177 = vmatmul.mubr.bf16.gmra.mxu0 %v142
  %v178 = vpop.f32.mrf.mxu0
  %v179 = vadd.f32 %v114, %v178
  %v180 = vpop.f32.mrf.mxu0
  %v181 = vpop.f32.mrf.mxu0
  %v182 = vadd.f32 %v114, %v181
  %v183 = vpop.f32.mrf.mxu0
  %184 = vdwg.mxu0
  %v185 = vadd.f32 %v179, %v27
  %v186 = vadd.f32 %v182, %v28
  %v187 = vsel %vm53, %v185, 0.0
  %188 = vadd.xlane.f32.xlu0 %v187
  %v189 = vpop.xlane.xlu0 %188
  %v190 = vsel %vm53, %v186, 0.0
  %191 = vadd.xlane.f32.xlu0 %v190
  %v192 = vpop.xlane.xlu0 %191
  %v193 = vrcp.pop 32.0
  %v194 = vmul.f32 %v189, %v193
  %v195 = vmul.f32 %v192, %v193
  %v196 = vsub.f32 %v185, %v194
  %v197 = vsub.f32 %v186, %v195
  %v198 = vmul.f32 %v196, %v196
  %v199 = vmul.f32 %v197, %v197
  %v200 = vsel %vm53, %v198, 0.0
  %201 = vadd.xlane.f32.xlu0 %v200
  %v202 = vpop.xlane.xlu0 %201
  %v203 = vsel %vm53, %v199, 0.0
  %204 = vadd.xlane.f32.xlu0 %v203
  %v205 = vpop.xlane.xlu0 %204
  %v206 = vmul.f32 %v202, %v193
  %v207 = vmul.f32 %v205, %v193
  %v208 = vadd.f32 %v206, 1e-05
  %v209 = vadd.f32 %v207, 1e-05
  %v210 = vrsqrt.pop %v208
  %v211 = vrsqrt.pop %v209
  %v212 = vmul.f32 %v196, %v210
  %v213 = vmul.f32 %v197, %v211
  %v214 = vld [vmem:[%s5] sm:$0x1]
  %v216 = vlaneseq
  %v217 = vshrl.u32 %v216, 7
  %v218 = vsub.s32 0, %v217
  %v219 = vrot.slane %v214, %v218
  %v221 = vmul.f32 %v212, %v219
  %v222 = vmul.f32 %v213, %v219
  %v223 = vld [vmem:[%s6] sm:$0x1]
  %v225 = vlaneseq
  %v226 = vshrl.u32 %v225, 7
  %v227 = vsub.s32 0, %v226
  %v228 = vrot.slane %v223, %v227
  %v230 = vadd.f32 %v221, %v228
  %v231 = vadd.f32 %v222, %v228
  %232 = vst.msk [vmem:[%s7] sm:$0xff] %vm53, %v230
  %233 = vst.msk [vmem:[%s7 + $0x8] sm:$0xff] %vm53, %v231
  // Predicated region
  $region30: #{forward.14} parent=0 // pred_check
    _
  $region31: #{forward.14} parent=0 // pred_check_branch
    %235 = sbr.rel (0) target = $region33
  $region32: #{forward.14} parent=0 // pred_region
    _
  $region33: #{forward.14} parent=0 // pred_fallthru
    _
  // Predicated region
  $region34: #{forward.14} parent=0 // pred_check
    _
  $region35: #{forward.14} parent=0 // pred_check_branch
    %237 = sbr.rel (0) target = $region37
  $region36: #{forward.14} parent=0 // pred_region
    _
  $region37: #{forward.14} parent=0 // pred_fallthru
    _

// kernel: forward.25
$region0: #{forward.25}
  #allocation0 [shape = 'u32[]', space=smem, size = 0x4, offset = 0x4, fixed_abs, tag = 'smem constant byte address 0x4 - core index']
  #allocation1 [shape = 'u32[144,128]{1,0:T(1,128)}', space=vmem, size = 0x12000, scoped, tag = 'internal scratch']
  %s0 = inlined_call_operand.vmem [shape: f32[16,32], index: 0, kind: input, shape index: {}]
  %s1 = inlined_call_operand.vmem [shape: bf16[32,128], index: 1, kind: input, shape index: {}]
  %s2 = inlined_call_operand.vmem [shape: f32[1,128], index: 2, kind: input, shape index: {}]
  %s3 = inlined_call_operand.vmem [shape: f32[16,128], index: 3, kind: output, shape index: {}]
  %s4 = sld [smem:[#allocation0]]
  $region22: #{forward.25} parent=0
    _
  %s6 = ssub.s32 1, %s4
  %s7 = scalar_select 0, %s6, %s4
  // Predicated region
  $region2: #{forward.25} parent=0 // pred_check
    _
  $region3: #{forward.25} parent=0 // pred_check_branch
    %9 = sbr.rel (0) target = $region5
  $region4: #{forward.25} parent=0 // pred_region
    _
  $region5: #{forward.25} parent=0 // pred_fallthru
    _
  // Predicated region
  $region6: #{forward.25} parent=0 // pred_check
    _
  $region7: #{forward.25} parent=0 // pred_check_branch
    %11 = sbr.rel (0) target = $region9
  $region8: #{forward.25} parent=0 // pred_region
    _
  $region9: #{forward.25} parent=0 // pred_fallthru
    _
  // Predicated region
  $region10: #{forward.25} parent=0 // pred_check
    _
  $region11: #{forward.25} parent=0 // pred_check_branch
    %13 = sbr.rel (0) target = $region13
  $region12: #{forward.25} parent=0 // pred_region
    _
  $region13: #{forward.25} parent=0 // pred_fallthru
    _
  %v15 = vld [vmem:[%s0] sm:$0xff]
  %v16 = vld [vmem:[%s0 + $0x8] sm:$0xff]
  %v17 = vpack.c.bf16 %v16, %v15
  %v18 = vld [vmem:[%s1] sm:$0xf]
  %v19 = vld [vmem:[%s1 + $0x4] sm:$0xf]
  %v20 = vld [vmem:[%s1 + $0x8] sm:$0xf]
  %v21 = vld [vmem:[%s1 + $0xc] sm:$0xf]
  %v22 = vld [vmem:[%s2] sm:$0x1]
  %v24 = vlaneseq
  %v25 = vshrl.u32 %v24, 7
  %v26 = vsub.s32 0, %v25
  %v27 = vrot.slane %v22, %v26
  %v33 = vunpack.c.l.b16 %v18
  %v34 = vunpack.c.l.b16 %v19
  %v35 = vunpack.c.l.b16 %v20
  %v36 = vunpack.c.l.b16 %v21
  %v37 = vpack.c.b16 %v34, %v33
  %v38 = vpack.c.b16 %v36, %v35
  %vm41 = vcmask 261120
  %v43 = vsel %vm41, %v17, 0
  %45 = vmatprep.subr.bf16.mxu0 0
  %46 = vmatpush1.bf16.msra.mxu0 0
  %47 = vmatprep.subr.bf16.mxu0 0
  %48 = vmatpush1.bf16.msra.mxu0 0
  %49 = vmatprep.subr.bf16.mxu0 0
  %50 = vmatpush1.bf16.msra.mxu0 0
  %51 = vmatprep.subr.bf16.mxu0 0
  %52 = vmatpush1.bf16.msra.mxu0 0
  %53 = vmatprep.subr.bf16.mxu0 0
  %54 = vmatpush1.bf16.msra.mxu0 0
  %55 = vmatprep.subr.bf16.mxu0 0
  %56 = vmatpush1.bf16.msra.mxu0 0
  %57 = vmatprep.subr.bf16.mxu0 0
  %58 = vmatpush1.bf16.msra.mxu0 %v38
  %59 = vmatprep.subr.bf16.mxu0 0
  %60 = vmatpush1.bf16.msra.mxu0 %v37
  %61 = vmatprep.subr.bf16.mxu0 0
  %62 = vmatpush2.bf16.msra.mxu0 0
  %63 = vmatprep.subr.bf16.mxu0 0
  %64 = vmatpush2.bf16.msra.mxu0 0
  %65 = vmatprep.subr.bf16.mxu0 0
  %66 = vmatpush2.bf16.msra.mxu0 0
  %67 = vmatprep.subr.bf16.mxu0 0
  %68 = vmatpush2.bf16.msra.mxu0 0
  %69 = vmatprep.subr.bf16.mxu0 0
  %70 = vmatpush2.bf16.msra.mxu0 0
  %71 = vmatprep.subr.bf16.mxu0 0
  %72 = vmatpush2.bf16.msra.mxu0 0
  %73 = vmatprep.subr.bf16.mxu0 0
  %74 = vmatpush2.bf16.msra.mxu0 0
  %75 = vmatprep.subr.bf16.mxu0 0
  %76 = vmatpush2.bf16.msra.mxu0 0
  %77 = vmatprep.mubr.bf16.mxu0 0
  %78 = vmatmul.mubr.bf16.gmra.mxu0 %v43
  %v79 = vpop.f32.mrf.mxu0
  %v80 = vadd.f32 %v27, %v79
  %v81 = vpop.f32.mrf.mxu0
  %v82 = vpop.f32.mrf.mxu0
  %v83 = vadd.f32 %v27, %v82
  %v84 = vpop.f32.mrf.mxu0
  %85 = vdwg.mxu0
  %86 = vst [vmem:[%s3] sm:$0xff] %v80
  %87 = vst [vmem:[%s3 + $0x8] sm:$0xff] %v83
  // Predicated region
  $region14: #{forward.25} parent=0 // pred_check
    _
  $region15: #{forward.25} parent=0 // pred_check_branch
    %89 = sbr.rel (0) target = $region17
  $region16: #{forward.25} parent=0 // pred_region
    _
  $region17: #{forward.25} parent=0 // pred_fallthru
    _
  // Predicated region
  $region18: #{forward.25} parent=0 // pred_check
    _
  $region19: #{forward.25} parent=0 // pred_check_branch
    %91 = sbr.rel (0) target = $region21
  $region20: #{forward.25} parent=0 // pred_region
    _
  $region21: #{forward.25} parent=0 // pred_fallthru
    _

// kernel: forward.13
$region0: #{forward.13}
  #allocation0 [shape = 'u32[]', space=smem, size = 0x4, offset = 0x4, fixed_abs, tag = 'smem constant byte address 0x4 - core index']
  #allocation1 [shape = 'u32[144,128]{1,0:T(1,128)}', space=vmem, size = 0x12000, scoped, tag = 'internal scratch']
  %s0 = inlined_call_operand.vmem [shape: f32[2,8,32], index: 0, kind: input, shape index: {}]
  %s1 = inlined_call_operand.vmem [shape: bf16[4,32,8], index: 1, kind: input, shape index: {}]
  %s2 = inlined_call_operand.vmem [shape: bf16[4,32,8], index: 2, kind: input, shape index: {}]
  %s3 = inlined_call_operand.vmem [shape: bf16[4,32,8], index: 3, kind: input, shape index: {}]
  %s4 = inlined_call_operand.vmem [shape: f32[4,1,8], index: 4, kind: input, shape index: {}]
  %s5 = inlined_call_operand.vmem [shape: f32[4,1,8], index: 5, kind: input, shape index: {}]
  %s6 = inlined_call_operand.vmem [shape: f32[4,1,8], index: 6, kind: input, shape index: {}]
  %s7 = inlined_call_operand.vmem [shape: bf16[4,8,32], index: 7, kind: input, shape index: {}]
  %s8 = inlined_call_operand.vmem [shape: f32[1,32], index: 8, kind: input, shape index: {}]
  %s9 = inlined_call_operand.vmem [shape: f32[1,32], index: 9, kind: input, shape index: {}]
  %s10 = inlined_call_operand.vmem [shape: f32[1,32], index: 10, kind: input, shape index: {}]
  %s11 = inlined_call_operand.vmem [shape: f32[2,8,32], index: 11, kind: output, shape index: {}]
  %s12 = sld [smem:[#allocation0]]
  $region77: #{forward.13} parent=0
    _
  %s14 = ssub.s32 1, %s12
  %s15 = scalar_select 0, %s14, %s12
  loop: start=0, step=1, limit=4
  $region2: #{forward.13} parent=0 // loop_pre_header
    _
  $region3: #{forward.13} parent=0 // loop_header
    %s17 = sphi 0, %s21
    %p18 = scmp.ge.s32.totalorder %s17, 4
    %s27 = sphi 0, %s29
    %s30 = sphi 0, %s27
    %s31 = sphi 0, %s30
    %s47 = sphi 0, %s31
    %s51 = sphi 0, %s51
    %s53 = sphi 0, %s51
    %s54 = sphi 0, %s53
    %s68 = sphi 0, %s54
    %s72 = sphi 0, %s72
    %s74 = sphi 0, %s72
    %s75 = sphi 0, %s74
    %s89 = sphi 0, %s75
    %s93 = sphi 0, %s93
    %s95 = sphi 0, %s93
    %s96 = sphi 0, %s95
    %s110 = sphi 0, %s96
    %s114 = sphi 0, %s114
    %s116 = sphi 0, %s114
    %s117 = sphi 0, %s116
    %s131 = sphi 0, %s117
    %s135 = sphi 0, %s135
    %s137 = sphi 0, %s135
    %s138 = sphi 0, %s137
    %s152 = sphi 0, %s138
    %s156 = sphi 0, %s156
    %s158 = sphi 0, %s156
    %s159 = sphi 0, %s158
    %s173 = sphi 0, %s159
    %s177 = sphi 0, %s177
    %s179 = sphi 0, %s177
    %s180 = sphi 0, %s179
    %s194 = sphi 0, %s180
    %s198 = sphi 0, %s198
    %s200 = sphi 0, %s198
    %s201 = sphi 0, %s200
    %s215 = sphi 0, %s201
    %s219 = sphi 0, %s219
    %s221 = sphi 0, %s219
    %s222 = sphi 0, %s221
    %s236 = sphi 0, %s222
    %s240 = sphi 0, %s240
    %s242 = sphi 0, %s240
    %s243 = sphi 0, %s242
    %s257 = sphi 0, %s243
    %s263 = sphi 0, %s265
    %s266 = sphi 0, %s263
    %s267 = sphi 0, %s266
    %s283 = sphi 0, %s267
  $region4: #{forward.13} parent=0 // loop_header_branch
    %20 = sbr.rel (%p18) target = $region8
  $region5: #{forward.13} parent=0 // loop_body
    %s22 = ssub.s32 %s17, 1
    %s23 = ssub.s32 %s17, 2
    %s24 = sadd.s32 %s17, 1
    %s25 = ssub.s32 %s17, %s24
    %p26 = scmp.eq.s32.totalorder %s25, 0
    %s28 = sadd.s32 %s27, 1
    %s29 = scalar_select %p26, %s27, %s28
    %p32 = pneg %p26
    %p33 = scmp.eq.s32.totalorder %s17, 1
    %p34 = por %p32, %p33
    %p35 = scmp.ne.s32.totalorder %s27, %s30
    %p36 = scmp.eq.s32.totalorder %s17, 0
    %p37 = por %p35, %p36
    %p38 = scmp.ne.s32.totalorder %s27, %s30
    %p39 = scmp.eq.s32.totalorder %s22, 1
    %p40 = por %p38, %p39
    %p41 = scmp.ne.s32.totalorder %s30, %s31
    %p42 = scmp.eq.s32.totalorder %s22, 0
    %p43 = por %p41, %p42
    %p44 = scmp.ne.s32.totalorder %s30, %s31
    %p45 = scmp.eq.s32.totalorder %s23, 1
    %p46 = por %p44, %p45
    %p48 = scmp.ne.s32.totalorder %s31, %s47
    %p49 = scmp.eq.s32.totalorder %s23, 0
    %p50 = por %p48, %p49
    %s52 = sadd.s32 %s51, 1
    %p55 = scmp.eq.s32.totalorder %s17, 1
    %p56 = scmp.ne.s32.totalorder %s51, %s53
    %p57 = scmp.eq.s32.totalorder %s17, 0
    %p58 = por %p56, %p57
    %p59 = scmp.ne.s32.totalorder %s51, %s53
    %p60 = scmp.eq.s32.totalorder %s22, 1
    %p61 = por %p59, %p60
    %p62 = scmp.ne.s32.totalorder %s53, %s54
    %p63 = scmp.eq.s32.totalorder %s22, 0
    %p64 = por %p62, %p63
    %p65 = scmp.ne.s32.totalorder %s53, %s54
    %p66 = scmp.eq.s32.totalorder %s23, 1
    %p67 = por %p65, %p66
    %p69 = scmp.ne.s32.totalorder %s54, %s68
    %p70 = scmp.eq.s32.totalorder %s23, 0
    %p71 = por %p69, %p70
    %s73 = sadd.s32 %s72, 1
    %p76 = scmp.eq.s32.totalorder %s17, 1
    %p77 = scmp.ne.s32.totalorder %s72, %s74
    %p78 = scmp.eq.s32.totalorder %s17, 0
    %p79 = por %p77, %p78
    %p80 = scmp.ne.s32.totalorder %s72, %s74
    %p81 = scmp.eq.s32.totalorder %s22, 1
    %p82 = por %p80, %p81
    %p83 = scmp.ne.s32.totalorder %s74, %s75
    %p84 = scmp.eq.s32.totalorder %s22, 0
    %p85 = por %p83, %p84
    %p86 = scmp.ne.s32.totalorder %s74, %s75
    %p87 = scmp.eq.s32.totalorder %s23, 1
    %p88 = por %p86, %p87
    %p90 = scmp.ne.s32.totalorder %s75, %s89
    %p91 = scmp.eq.s32.totalorder %s23, 0
    %p92 = por %p90, %p91
    %s94 = sadd.s32 %s93, 1
    %p97 = scmp.eq.s32.totalorder %s17, 1
    %p98 = scmp.ne.s32.totalorder %s93, %s95
    %p99 = scmp.eq.s32.totalorder %s17, 0
    %p100 = por %p98, %p99
    %p101 = scmp.ne.s32.totalorder %s93, %s95
    %p102 = scmp.eq.s32.totalorder %s22, 1
    %p103 = por %p101, %p102
    %p104 = scmp.ne.s32.totalorder %s95, %s96
    %p105 = scmp.eq.s32.totalorder %s22, 0
    %p106 = por %p104, %p105
    %p107 = scmp.ne.s32.totalorder %s95, %s96
    %p108 = scmp.eq.s32.totalorder %s23, 1
    %p109 = por %p107, %p108
    %p111 = scmp.ne.s32.totalorder %s96, %s110
    %p112 = scmp.eq.s32.totalorder %s23, 0
    %p113 = por %p111, %p112
    %s115 = sadd.s32 %s114, 1
    %p118 = scmp.eq.s32.totalorder %s17, 1
    %p119 = scmp.ne.s32.totalorder %s114, %s116
    %p120 = scmp.eq.s32.totalorder %s17, 0
    %p121 = por %p119, %p120
    %p122 = scmp.ne.s32.totalorder %s114, %s116
    %p123 = scmp.eq.s32.totalorder %s22, 1
    %p124 = por %p122, %p123
    %p125 = scmp.ne.s32.totalorder %s116, %s117
    %p126 = scmp.eq.s32.totalorder %s22, 0
    %p127 = por %p125, %p126
    %p128 = scmp.ne.s32.totalorder %s116, %s117
    %p129 = scmp.eq.s32.totalorder %s23, 1
    %p130 = por %p128, %p129
    %p132 = scmp.ne.s32.totalorder %s117, %s131
    %p133 = scmp.eq.s32.totalorder %s23, 0
    %p134 = por %p132, %p133
    %s136 = sadd.s32 %s135, 1
    %p139 = scmp.eq.s32.totalorder %s17, 1
    %p140 = scmp.ne.s32.totalorder %s135, %s137
    %p141 = scmp.eq.s32.totalorder %s17, 0
    %p142 = por %p140, %p141
    %p143 = scmp.ne.s32.totalorder %s135, %s137
    %p144 = scmp.eq.s32.totalorder %s22, 1
    %p145 = por %p143, %p144
    %p146 = scmp.ne.s32.totalorder %s137, %s138
    %p147 = scmp.eq.s32.totalorder %s22, 0
    %p148 = por %p146, %p147
    %p149 = scmp.ne.s32.totalorder %s137, %s138
    %p150 = scmp.eq.s32.totalorder %s23, 1
    %p151 = por %p149, %p150
    %p153 = scmp.ne.s32.totalorder %s138, %s152
    %p154 = scmp.eq.s32.totalorder %s23, 0
    %p155 = por %p153, %p154
    %s157 = sadd.s32 %s156, 1
    %p160 = scmp.eq.s32.totalorder %s17, 1
    %p161 = scmp.ne.s32.totalorder %s156, %s158
    %p162 = scmp.eq.s32.totalorder %s17, 0
    %p163 = por %p161, %p162
    %p164 = scmp.ne.s32.totalorder %s156, %s158
    %p165 = scmp.eq.s32.totalorder %s22, 1
    %p166 = por %p164, %p165
    %p167 = scmp.ne.s32.totalorder %s158, %s159
    %p168 = scmp.eq.s32.totalorder %s22, 0
    %p169 = por %p167, %p168
    %p170 = scmp.ne.s32.totalorder %s158, %s159
    %p171 = scmp.eq.s32.totalorder %s23, 1
    %p172 = por %p170, %p171
    %p174 = scmp.ne.s32.totalorder %s159, %s173
    %p175 = scmp.eq.s32.totalorder %s23, 0
    %p176 = por %p174, %p175
    %s178 = sadd.s32 %s177, 1
    %p181 = scmp.eq.s32.totalorder %s17, 1
    %p182 = scmp.ne.s32.totalorder %s177, %s179
    %p183 = scmp.eq.s32.totalorder %s17, 0
    %p184 = por %p182, %p183
    %p185 = scmp.ne.s32.totalorder %s177, %s179
    %p186 = scmp.eq.s32.totalorder %s22, 1
    %p187 = por %p185, %p186
    %p188 = scmp.ne.s32.totalorder %s179, %s180
    %p189 = scmp.eq.s32.totalorder %s22, 0
    %p190 = por %p188, %p189
    %p191 = scmp.ne.s32.totalorder %s179, %s180
    %p192 = scmp.eq.s32.totalorder %s23, 1
    %p193 = por %p191, %p192
    %p195 = scmp.ne.s32.totalorder %s180, %s194
    %p196 = scmp.eq.s32.totalorder %s23, 0
    %p197 = por %p195, %p196
    %s199 = sadd.s32 %s198, 1
    %p202 = scmp.eq.s32.totalorder %s17, 1
    %p203 = scmp.ne.s32.totalorder %s198, %s200
    %p204 = scmp.eq.s32.totalorder %s17, 0
    %p205 = por %p203, %p204
    %p206 = scmp.ne.s32.totalorder %s198, %s200
    %p207 = scmp.eq.s32.totalorder %s22, 1
    %p208 = por %p206, %p207
    %p209 = scmp.ne.s32.totalorder %s200, %s201
    %p210 = scmp.eq.s32.totalorder %s22, 0
    %p211 = por %p209, %p210
    %p212 = scmp.ne.s32.totalorder %s200, %s201
    %p213 = scmp.eq.s32.totalorder %s23, 1
    %p214 = por %p212, %p213
    %p216 = scmp.ne.s32.totalorder %s201, %s215
    %p217 = scmp.eq.s32.totalorder %s23, 0
    %p218 = por %p216, %p217
    %s220 = sadd.s32 %s219, 1
    %p223 = scmp.eq.s32.totalorder %s17, 1
    %p224 = scmp.ne.s32.totalorder %s219, %s221
    %p225 = scmp.eq.s32.totalorder %s17, 0
    %p226 = por %p224, %p225
    %p227 = scmp.ne.s32.totalorder %s219, %s221
    %p228 = scmp.eq.s32.totalorder %s22, 1
    %p229 = por %p227, %p228
    %p230 = scmp.ne.s32.totalorder %s221, %s222
    %p231 = scmp.eq.s32.totalorder %s22, 0
    %p232 = por %p230, %p231
    %p233 = scmp.ne.s32.totalorder %s221, %s222
    %p234 = scmp.eq.s32.totalorder %s23, 1
    %p235 = por %p233, %p234
    %p237 = scmp.ne.s32.totalorder %s222, %s236
    %p238 = scmp.eq.s32.totalorder %s23, 0
    %p239 = por %p237, %p238
    %s241 = sadd.s32 %s240, 1
    %p244 = scmp.eq.s32.totalorder %s17, 1
    %p245 = scmp.ne.s32.totalorder %s240, %s242
    %p246 = scmp.eq.s32.totalorder %s17, 0
    %p247 = por %p245, %p246
    %p248 = scmp.ne.s32.totalorder %s240, %s242
    %p249 = scmp.eq.s32.totalorder %s22, 1
    %p250 = por %p248, %p249
    %p251 = scmp.ne.s32.totalorder %s242, %s243
    %p252 = scmp.eq.s32.totalorder %s22, 0
    %p253 = por %p251, %p252
    %p254 = scmp.ne.s32.totalorder %s242, %s243
    %p255 = scmp.eq.s32.totalorder %s23, 1
    %p256 = por %p254, %p255
    %p258 = scmp.ne.s32.totalorder %s243, %s257
    %p259 = scmp.eq.s32.totalorder %s23, 0
    %p260 = por %p258, %p259
    %s261 = ssub.s32 %s17, %s24
    %p262 = scmp.eq.s32.totalorder %s261, 0
    %s264 = sadd.s32 %s263, 1
    %s265 = scalar_select %p262, %s263, %s264
    %p268 = pneg %p262
    %p269 = scmp.eq.s32.totalorder %s17, 1
    %p270 = por %p268, %p269
    %p271 = scmp.ne.s32.totalorder %s263, %s266
    %p272 = scmp.eq.s32.totalorder %s17, 0
    %p273 = por %p271, %p272
    %p274 = scmp.ne.s32.totalorder %s263, %s266
    %p275 = scmp.eq.s32.totalorder %s22, 1
    %p276 = por %p274, %p275
    %p277 = scmp.ne.s32.totalorder %s266, %s267
    %p278 = scmp.eq.s32.totalorder %s22, 0
    %p279 = por %p277, %p278
    %p280 = scmp.ne.s32.totalorder %s266, %s267
    %p281 = scmp.eq.s32.totalorder %s23, 1
    %p282 = por %p280, %p281
    %p284 = scmp.ne.s32.totalorder %s267, %s283
    %p285 = scmp.eq.s32.totalorder %s23, 0
    %p286 = por %p284, %p285
    %p287 = scmp.le.s32.totalorder 1, %s17
    %p288 = scmp.lt.s32.totalorder %s17, 3
    %p289 = pnand %p287, %p288
    %p290 = pneg %p289
    // Predicated region
    $region9: #{forward.13} parent=5 // pred_check
      _
    $region10: #{forward.13} parent=5 // pred_check_branch
      %292 = sbr.rel (%p289) target = $region12
    $region11: #{forward.13} parent=5 // pred_region
      %s293 = ssub.s32 %s17, 1
      // Predicated region
      $region13: #{forward.13} parent=11 // pred_check
        %p294 = pneg %p64
      $region14: #{forward.13} parent=11 // pred_check_branch
        %296 = sbr.rel (%p294) target = $region16
      $region15: #{forward.13} parent=11 // pred_region
        _
      $region16: #{forward.13} parent=11 // pred_fallthru
        _
      // Predicated region
      $region17: #{forward.13} parent=11 // pred_check
        %p297 = pneg %p85
      $region18: #{forward.13} parent=11 // pred_check_branch
        %299 = sbr.rel (%p297) target = $region20
      $region19: #{forward.13} parent=11 // pred_region
        _
      $region20: #{forward.13} parent=11 // pred_fallthru
        _
      // Predicated region
      $region21: #{forward.13} parent=11 // pred_check
        %p300 = pneg %p106
      $region22: #{forward.13} parent=11 // pred_check_branch
        %302 = sbr.rel (%p300) target = $region24
      $region23: #{forward.13} parent=11 // pred_region
        _
      $region24: #{forward.13} parent=11 // pred_fallthru
        _
      // Predicated region
      $region25: #{forward.13} parent=11 // pred_check
        %p303 = pneg %p127
      $region26: #{forward.13} parent=11 // pred_check_branch
        %305 = sbr.rel (%p303) target = $region28
      $region27: #{forward.13} parent=11 // pred_region
        _
      $region28: #{forward.13} parent=11 // pred_fallthru
        _
      // Predicated region
      $region29: #{forward.13} parent=11 // pred_check
        %p306 = pneg %p148
      $region30: #{forward.13} parent=11 // pred_check_branch
        %308 = sbr.rel (%p306) target = $region32
      $region31: #{forward.13} parent=11 // pred_region
        _
      $region32: #{forward.13} parent=11 // pred_fallthru
        _
      // Predicated region
      $region33: #{forward.13} parent=11 // pred_check
        %p309 = pneg %p169
      $region34: #{forward.13} parent=11 // pred_check_branch
        %311 = sbr.rel (%p309) target = $region36
      $region35: #{forward.13} parent=11 // pred_region
        _
      $region36: #{forward.13} parent=11 // pred_fallthru
        _
      // Predicated region
      $region37: #{forward.13} parent=11 // pred_check
        %p312 = pneg %p190
      $region38: #{forward.13} parent=11 // pred_check_branch
        %314 = sbr.rel (%p312) target = $region40
      $region39: #{forward.13} parent=11 // pred_region
        _
      $region40: #{forward.13} parent=11 // pred_fallthru
        _
      // Predicated region
      $region41: #{forward.13} parent=11 // pred_check
        %p315 = pneg %p211
      $region42: #{forward.13} parent=11 // pred_check_branch
        %317 = sbr.rel (%p315) target = $region44
      $region43: #{forward.13} parent=11 // pred_region
        _
      $region44: #{forward.13} parent=11 // pred_fallthru
        _
      // Predicated region
      $region45: #{forward.13} parent=11 // pred_check
        %p318 = pneg %p232
      $region46: #{forward.13} parent=11 // pred_check_branch
        %320 = sbr.rel (%p318) target = $region48
      $region47: #{forward.13} parent=11 // pred_region
        _
      $region48: #{forward.13} parent=11 // pred_fallthru
        _
      // Predicated region
      $region49: #{forward.13} parent=11 // pred_check
        %p321 = pneg %p253
      $region50: #{forward.13} parent=11 // pred_check_branch
        %323 = sbr.rel (%p321) target = $region52
      $region51: #{forward.13} parent=11 // pred_region
        _
      $region52: #{forward.13} parent=11 // pred_fallthru
        _
    $region12: #{forward.13} parent=5 // pred_fallthru
      _
    %p324 = scmp.lt.s32.totalorder %s17, 2
    // Predicated region
    $region53: #{forward.13} parent=5 // pred_check
      %p325 = pneg %p324
    $region54: #{forward.13} parent=5 // pred_check_branch
      %327 = sbr.rel (%p325) target = $region56
    $region55: #{forward.13} parent=5 // pred_region
      // Predicated region
      $region57: #{forward.13} parent=55 // pred_check
        %p328 = pneg %p37
      $region58: #{forward.13} parent=55 // pred_check_branch
        %330 = sbr.rel (%p328) target = $region60
      $region59: #{forward.13} parent=55 // pred_region
        %p331 = scmp.lt.s32.totalorder %s17, 1
        %s332 = scalar_select %p331, %s17, 1
        %s333 = smul.addr %s332, 8
        %s334 = scalar_lea.vmem %s0, %s333
      $region60: #{forward.13} parent=55 // pred_fallthru
        _
    $region56: #{forward.13} parent=5 // pred_fallthru
      _
    %p335 = scmp.le.s32.totalorder 1, %s17
    %p336 = scmp.lt.s32.totalorder %s17, 3
    %p337 = pnand %p335, %p336
    %p338 = pneg %p337
    // Predicated region
    $region61: #{forward.13} parent=5 // pred_check
      _
    $region62: #{forward.13} parent=5 // pred_check_branch
      %340 = sbr.rel (%p337) target = $region64
    $region63: #{forward.13} parent=5 // pred_region
      %s341 = ssub.s32 %s17, 1
      %p342 = scmp.lt.s32.totalorder %s22, 1
      %s343 = scalar_select %p342, %s22, 1
      %s344 = smul.addr %s343, 8
      %s345 = scalar_lea.vmem %s0, %s344
      %p346 = pneg %p43
      %p347 = pneg %p40
      %p348 = pneg %p64
      %p349 = pneg %p61
      %p350 = pneg %p85
      %p351 = pneg %p82
      %p352 = pneg %p106
      %p353 = pneg %p103
      %p354 = pneg %p127
      %p355 = pneg %p124
      %p356 = pneg %p148
      %p357 = pneg %p145
      %p358 = pneg %p169
      %p359 = pneg %p166
      %p360 = pneg %p190
      %p361 = pneg %p187
      %p362 = pneg %p211
      %p363 = pneg %p208
      %p364 = pneg %p232
      %p365 = pneg %p229
      %p366 = pneg %p253
      %p367 = pneg %p250
      %p368 = pneg %p279
      %p369 = pneg %p276
      %p370 = scmp.lt.s32.totalorder %s22, 1
      %s371 = scalar_select %p370, %s22, 1
      %s372 = smul.addr %s371, 8
      %s373 = scalar_lea.vmem %s11, %s372
      %p374 = scmp.lt.s32.totalorder %s22, 1
      %s375 = scalar_select %p374, %s22, 1
      %s376 = smul.addr %s375, 8
      %s377 = scalar_lea.vmem %s0, %s376
      %p378 = scmp.lt.s32.totalorder %s22, 1
      %s379 = scalar_select %p378, %s22, 1
      %s380 = smul.addr %s379, 8
      %s381 = scalar_lea.vmem %s11, %s380
      %v383 = vld [vmem:[%s377] sm:$0xff]
      %v384 = vpack.c.bf16 %v383, %v383
      %v385 = vld [vmem:[%s1] sm:$0xf]
      %v386 = vld [vmem:[%s1 + $0x4] sm:$0xf]
      %v387 = vld [vmem:[%s1 + $0x8] sm:$0xf]
      %v388 = vld [vmem:[%s1 + $0xc] sm:$0xf]
      %v389 = vld [vmem:[%s4] sm:$0x1]
      %v391 = vlaneseq
      %v392 = vshrl.u32 %v391, 7
      %v393 = vsub.s32 0, %v392
      %v394 = vrot.slane %v389, %v393
      %v400 = vunpack.c.l.b16 %v385
      %v401 = vunpack.c.l.b16 %v386
      %v402 = vunpack.c.l.b16 %v387
      %v403 = vunpack.c.l.b16 %v388
      %v404 = vpack.c.b16 %v401, %v400
      %v405 = vpack.c.b16 %v403, %v402
      %vm408 = vcmask 261120
      %v410 = vsel %vm408, %v384, 0
      %412 = vmatprep.subr.bf16.mxu0 0
      %413 = vmatpush1.bf16.msra.mxu0 0
      %414 = vmatprep.subr.bf16.mxu0 0
      %415 = vmatpush1.bf16.msra.mxu0 0
      %416 = vmatprep.subr.bf16.mxu0 0
      %417 = vmatpush1.bf16.msra.mxu0 0
      %418 = vmatprep.subr.bf16.mxu0 0
      %419 = vmatpush1.bf16.msra.mxu0 0
      %420 = vmatprep.subr.bf16.mxu0 0
      %421 = vmatpush1.bf16.msra.mxu0 0
      %422 = vmatprep.subr.bf16.mxu0 0
      %423 = vmatpush1.bf16.msra.mxu0 0
      %424 = vmatprep.subr.bf16.mxu0 0
      %425 = vmatpush1.bf16.msra.mxu0 %v405
      %426 = vmatprep.subr.bf16.mxu0 0
      %427 = vmatpush1.bf16.msra.mxu0 %v404
      %428 = vmatprep.subr.bf16.mxu0 0
      %429 = vmatpush2.bf16.msra.mxu0 0
      %430 = vmatprep.subr.bf16.mxu0 0
      %431 = vmatpush2.bf16.msra.mxu0 0
      %432 = vmatprep.subr.bf16.mxu0 0
      %433 = vmatpush2.bf16.msra.mxu0 0
      %434 = vmatprep.subr.bf16.mxu0 0
      %435 = vmatpush2.bf16.msra.mxu0 0
      %436 = vmatprep.subr.bf16.mxu0 0
      %437 = vmatpush2.bf16.msra.mxu0 0
      %438 = vmatprep.subr.bf16.mxu0 0
      %439 = vmatpush2.bf16.msra.mxu0 0
      %440 = vmatprep.subr.bf16.mxu0 0
      %441 = vmatpush2.bf16.msra.mxu0 0
      %442 = vmatprep.subr.bf16.mxu0 0
      %443 = vmatpush2.bf16.msra.mxu0 0
      %444 = vmatprep.mubr.bf16.mxu0 0
      %445 = vmatmul.mubr.bf16.gmra.mxu0 %v410
      %v446 = vpop.f32.mrf.mxu0
      %v447 = vadd.f32 %v394, %v446
      %v448 = vpop.f32.mrf.mxu0
      %v449 = vpop.f32.mrf.mxu0
      %v450 = vpop.f32.mrf.mxu0
      %451 = vdwg.mxu0
      %v452 = vld [vmem:[%s2] sm:$0xf]
      %v453 = vld [vmem:[%s2 + $0x4] sm:$0xf]
      %v454 = vld [vmem:[%s2 + $0x8] sm:$0xf]
      %v455 = vld [vmem:[%s2 + $0xc] sm:$0xf]
      %v456 = vld [vmem:[%s5] sm:$0x1]
      %v458 = vlaneseq
      %v459 = vshrl.u32 %v458, 7
      %v460 = vsub.s32 0, %v459
      %v461 = vrot.slane %v456, %v460
      %v467 = vunpack.c.l.b16 %v452
      %v468 = vunpack.c.l.b16 %v453
      %v469 = vunpack.c.l.b16 %v454
      %v470 = vunpack.c.l.b16 %v455
      %v471 = vpack.c.b16 %v468, %v467
      %v472 = vpack.c.b16 %v470, %v469
      %475 = vmatprep.subr.bf16.mxu0 0
      %476 = vmatpush1.bf16.msra.mxu0 0
      %477 = vmatprep.subr.bf16.mxu0 0
      %478 = vmatpush1.bf16.msra.mxu0 0
      %479 = vmatprep.subr.bf16.mxu0 0
      %480 = vmatpush1.bf16.msra.mxu0 0
      %481 = vmatprep.subr.bf16.mxu0 0
      %482 = vmatpush1.bf16.msra.mxu0 0
      %483 = vmatprep.subr.bf16.mxu0 0
      %484 = vmatpush1.bf16.msra.mxu0 0
      %485 = vmatprep.subr.bf16.mxu0 0
      %486 = vmatpush1.bf16.msra.mxu0 0
      %487 = vmatprep.subr.bf16.mxu0 0
      %488 = vmatpush1.bf16.msra.mxu0 %v472
      %489 = vmatprep.subr.bf16.mxu0 0
      %490 = vmatpush1.bf16.msra.mxu0 %v471
      %491 = vmatprep.subr.bf16.mxu0 0
      %492 = vmatpush2.bf16.msra.mxu0 0
      %493 = vmatprep.subr.bf16.mxu0 0
      %494 = vmatpush2.bf16.msra.mxu0 0
      %495 = vmatprep.subr.bf16.mxu0 0
      %496 = vmatpush2.bf16.msra.mxu0 0
      %497 = vmatprep.subr.bf16.mxu0 0
      %498 = vmatpush2.bf16.msra.mxu0 0
      %499 = vmatprep.subr.bf16.mxu0 0
      %500 = vmatpush2.bf16.msra.mxu0 0
      %501 = vmatprep.subr.bf16.mxu0 0
      %502 = vmatpush2.bf16.msra.mxu0 0
      %503 = vmatprep.subr.bf16.mxu0 0
      %504 = vmatpush2.bf16.msra.mxu0 0
      %505 = vmatprep.subr.bf16.mxu0 0
      %506 = vmatpush2.bf16.msra.mxu0 0
      %507 = vmatprep.mubr.bf16.mxu0 0
      %508 = vmatmul.mubr.bf16.gmra.mxu0 %v410
      %v509 = vpop.f32.mrf.mxu0
      %v510 = vadd.f32 %v461, %v509
      %v511 = vpop.f32.mrf.mxu0
      %v512 = vpop.f32.mrf.mxu0
      %v513 = vpop.f32.mrf.mxu0
      %514 = vdwg.mxu0
      %v515 = vld [vmem:[%s3] sm:$0xf]
      %v516 = vld [vmem:[%s3 + $0x4] sm:$0xf]
      %v517 = vld [vmem:[%s3 + $0x8] sm:$0xf]
      %v518 = vld [vmem:[%s3 + $0xc] sm:$0xf]
      %v519 = vld [vmem:[%s6] sm:$0x1]
      %v521 = vlaneseq
      %v522 = vshrl.u32 %v521, 7
      %v523 = vsub.s32 0, %v522
      %v524 = vrot.slane %v519, %v523
      %v530 = vunpack.c.l.b16 %v515
      %v531 = vunpack.c.l.b16 %v516
      %v532 = vunpack.c.l.b16 %v517
      %v533 = vunpack.c.l.b16 %v518
      %v534 = vpack.c.b16 %v531, %v530
      %v535 = vpack.c.b16 %v533, %v532
      %538 = vmatprep.subr.bf16.mxu0 0
      %539 = vmatpush1.bf16.msra.mxu0 0
      %540 = vmatprep.subr.bf16.mxu0 0
      %541 = vmatpush1.bf16.msra.mxu0 0
      %542 = vmatprep.subr.bf16.mxu0 0
      %543 = vmatpush1.bf16.msra.mxu0 0
      %544 = vmatprep.subr.bf16.mxu0 0
      %545 = vmatpush1.bf16.msra.mxu0 0
      %546 = vmatprep.subr.bf16.mxu0 0
      %547 = vmatpush1.bf16.msra.mxu0 0
      %548 = vmatprep.subr.bf16.mxu0 0
      %549 = vmatpush1.bf16.msra.mxu0 0
      %550 = vmatprep.subr.bf16.mxu0 0
      %551 = vmatpush1.bf16.msra.mxu0 %v535
      %552 = vmatprep.subr.bf16.mxu0 0
      %553 = vmatpush1.bf16.msra.mxu0 %v534
      %554 = vmatprep.subr.bf16.mxu0 0
      %555 = vmatpush2.bf16.msra.mxu0 0
      %556 = vmatprep.subr.bf16.mxu0 0
      %557 = vmatpush2.bf16.msra.mxu0 0
      %558 = vmatprep.subr.bf16.mxu0 0
      %559 = vmatpush2.bf16.msra.mxu0 0
      %560 = vmatprep.subr.bf16.mxu0 0
      %561 = vmatpush2.bf16.msra.mxu0 0
      %562 = vmatprep.subr.bf16.mxu0 0
      %563 = vmatpush2.bf16.msra.mxu0 0
      %564 = vmatprep.subr.bf16.mxu0 0
      %565 = vmatpush2.bf16.msra.mxu0 0
      %566 = vmatprep.subr.bf16.mxu0 0
      %567 = vmatpush2.bf16.msra.mxu0 0
      %568 = vmatprep.subr.bf16.mxu0 0
      %569 = vmatpush2.bf16.msra.mxu0 0
      %570 = vmatprep.mubr.bf16.mxu0 0
      %571 = vmatmul.mubr.bf16.gmra.mxu0 %v410
      %v572 = vpop.f32.mrf.mxu0
      %v573 = vadd.f32 %v524, %v572
      %v574 = vpop.f32.mrf.mxu0
      %v575 = vpop.f32.mrf.mxu0
      %v576 = vpop.f32.mrf.mxu0
      %577 = vdwg.mxu0
      %v578 = vpack.c.bf16 %v447, %v447
      %v579 = vpack.c.bf16 %v510, %v510
      %vm580 = vcmask 64512
      %v582 = vsel %vm580, %v578, 0
      %v585 = vsel %vm580, %v579, 0
      %587 = vmatprep.subr.bf16.mxu0 0
      %588 = vmatpush1.bf16.xpose.msra.mxu0 0
      %589 = vmatprep.subr.bf16.mxu0 0
      %590 = vmatpush1.bf16.xpose.msra.mxu0 0
      %591 = vmatprep.subr.bf16.mxu0 0
      %592 = vmatpush1.bf16.xpose.msra.mxu0 0
      %593 = vmatprep.subr.bf16.mxu0 0
      %594 = vmatpush1.bf16.xpose.msra.mxu0 0
      %595 = vmatprep.subr.bf16.mxu0 0
      %596 = vmatpush1.bf16.xpose.msra.mxu0 0
      %597 = vmatprep.subr.bf16.mxu0 0
      %598 = vmatpush1.bf16.xpose.msra.mxu0 0
      %599 = vmatprep.subr.bf16.mxu0 0
      %600 = vmatpush1.bf16.xpose.msra.mxu0 0
      %601 = vmatprep.subr.bf16.mxu0 0
      %602 = vmatpush1.bf16.xpose.msra.mxu0 %v585
      %603 = vmatprep.subr.bf16.mxu0 0
      %604 = vmatpush2.bf16.xpose.msra.mxu0 0
      %605 = vmatprep.subr.bf16.mxu0 0
      %606 = vmatpush2.bf16.xpose.msra.mxu0 0
      %607 = vmatprep.subr.bf16.mxu0 0
      %608 = vmatpush2.bf16.xpose.msra.mxu0 0
      %609 = vmatprep.subr.bf16.mxu0 0
      %610 = vmatpush2.bf16.xpose.msra.mxu0 0
      %611 = vmatprep.subr.bf16.mxu0 0
      %612 = vmatpush2.bf16.xpose.msra.mxu0 0
      %613 = vmatprep.subr.bf16.mxu0 0
      %614 = vmatpush2.bf16.xpose.msra.mxu0 0
      %615 = vmatprep.subr.bf16.mxu0 0
      %616 = vmatpush2.bf16.xpose.msra.mxu0 0
      %617 = vmatprep.subr.bf16.mxu0 0
      %618 = vmatpush2.bf16.xpose.msra.mxu0 0
      %619 = vmatprep.mubr.bf16.mxu0 0
      %620 = vmatmul.mubr.bf16.gmra.mxu0 %v582
      %v621 = vpop.f32.mrf.mxu0
      %v622 = vadd.f32 0.0, %v621
      %v623 = vpop.f32.mrf.mxu0
      %v624 = vpop.f32.mrf.mxu0
      %v625 = vpop.f32.mrf.mxu0
      %626 = vdwg.mxu0
      %v627 = vmul.f32 %v622, 0.35355338
      %v628 = vsel %vm580, %v627, -inf
      %629 = vmax.xlane.f32.xlu0 %v628
      %v630 = vpop.xlane.xlu0 %629
      %v631 = vsub.f32 %v627, %v630
      %v632 = vmul.f32 %v631, 1.442695
      %v633 = vpow.pop %v632
      %v634 = vsel %vm580, %v633, 0.0
      %635 = vadd.xlane.f32.xlu0 %v634
      %v636 = vpop.xlane.xlu0 %635
      %v637 = vrcp.pop %v636
      %v638 = vmul.f32 %v633, %v637
      %v639 = vpack.c.bf16 %v638, %v638
      %v640 = vpack.c.bf16 %v573, %v573
      %v642 = vsel %vm580, %v639, 0
      %vm644 = vcmask 1043456
      %v646 = vsel %vm644, %v640, 0
      %648 = vmatprep.subr.bf16.mxu0 0
      %649 = vmatpush1.bf16.msra.mxu0 0
      %650 = vmatprep.subr.bf16.mxu0 0
      %651 = vmatpush1.bf16.msra.mxu0 0
      %652 = vmatprep.subr.bf16.mxu0 0
      %653 = vmatpush1.bf16.msra.mxu0 0
      %654 = vmatprep.subr.bf16.mxu0 0
      %655 = vmatpush1.bf16.msra.mxu0 0
      %656 = vmatprep.subr.bf16.mxu0 0
      %657 = vmatpush1.bf16.msra.mxu0 0
      %658 = vmatprep.subr.bf16.mxu0 0
      %659 = vmatpush1.bf16.msra.mxu0 0
      %660 = vmatprep.subr.bf16.mxu0 0
      %661 = vmatpush1.bf16.msra.mxu0 0
      %662 = vmatprep.subr.bf16.mxu0 0
      %663 = vmatpush1.bf16.msra.mxu0 %v646
      %664 = vmatprep.subr.bf16.mxu0 0
      %665 = vmatpush2.bf16.msra.mxu0 0
      %666 = vmatprep.subr.bf16.mxu0 0
      %667 = vmatpush2.bf16.msra.mxu0 0
      %668 = vmatprep.subr.bf16.mxu0 0
      %669 = vmatpush2.bf16.msra.mxu0 0
      %670 = vmatprep.subr.bf16.mxu0 0
      %671 = vmatpush2.bf16.msra.mxu0 0
      %672 = vmatprep.subr.bf16.mxu0 0
      %673 = vmatpush2.bf16.msra.mxu0 0
      %674 = vmatprep.subr.bf16.mxu0 0
      %675 = vmatpush2.bf16.msra.mxu0 0
      %676 = vmatprep.subr.bf16.mxu0 0
      %677 = vmatpush2.bf16.msra.mxu0 0
      %678 = vmatprep.subr.bf16.mxu0 0
      %679 = vmatpush2.bf16.msra.mxu0 0
      %680 = vmatprep.mubr.bf16.mxu0 0
      %681 = vmatmul.mubr.bf16.gmra.mxu0 %v642
      %v682 = vpop.f32.mrf.mxu0
      %v683 = vadd.f32 0.0, %v682
      %v684 = vpop.f32.mrf.mxu0
      %v685 = vpop.f32.mrf.mxu0
      %v686 = vpop.f32.mrf.mxu0
      %687 = vdwg.mxu0
      %v688 = vpack.c.bf16 %v683, %v683
      %v689 = vld [vmem:[%s7] sm:$0xf]
      %s690 = scalar_lea.vmem %s1, 16
      %v691 = vld [vmem:[%s690] sm:$0xf]
      %v692 = vld [vmem:[%s690 + $0x4] sm:$0xf]
      %v693 = vld [vmem:[%s690 + $0x8] sm:$0xf]
      %v694 = vld [vmem:[%s690 + $0xc] sm:$0xf]
      %s695 = scalar_lea.vmem %s4, 1
      %v696 = vld [vmem:[%s695] sm:$0x1]
      %v698 = vlaneseq
      %v699 = vshrl.u32 %v698, 7
      %v700 = vsub.s32 0, %v699
      %v701 = vrot.slane %v696, %v700
      %v707 = vunpack.c.l.b16 %v691
      %v708 = vunpack.c.l.b16 %v692
      %v709 = vunpack.c.l.b16 %v693
      %v710 = vunpack.c.l.b16 %v694
      %v711 = vpack.c.b16 %v708, %v707
      %v712 = vpack.c.b16 %v710, %v709
      %715 = vmatprep.subr.bf16.mxu0 0
      %716 = vmatpush1.bf16.msra.mxu0 0
      %717 = vmatprep.subr.bf16.mxu0 0
      %718 = vmatpush1.bf16.msra.mxu0 0
      %719 = vmatprep.subr.bf16.mxu0 0
      %720 = vmatpush1.bf16.msra.mxu0 0
      %721 = vmatprep.subr.bf16.mxu0 0
      %722 = vmatpush1.bf16.msra.mxu0 0
      %723 = vmatprep.subr.bf16.mxu0 0
      %724 = vmatpush1.bf16.msra.mxu0 0
      %725 = vmatprep.subr.bf16.mxu0 0
      %726 = vmatpush1.bf16.msra.mxu0 0
      %727 = vmatprep.subr.bf16.mxu0 0
      %728 = vmatpush1.bf16.msra.mxu0 %v712
      %729 = vmatprep.subr.bf16.mxu0 0
      %730 = vmatpush1.bf16.msra.mxu0 %v711
      %731 = vmatprep.subr.bf16.mxu0 0
      %732 = vmatpush2.bf16.msra.mxu0 0
      %733 = vmatprep.subr.bf16.mxu0 0
      %734 = vmatpush2.bf16.msra.mxu0 0
      %735 = vmatprep.subr.bf16.mxu0 0
      %736 = vmatpush2.bf16.msra.mxu0 0
      %737 = vmatprep.subr.bf16.mxu0 0
      %738 = vmatpush2.bf16.msra.mxu0 0
      %739 = vmatprep.subr.bf16.mxu0 0
      %740 = vmatpush2.bf16.msra.mxu0 0
      %741 = vmatprep.subr.bf16.mxu0 0
      %742 = vmatpush2.bf16.msra.mxu0 0
      %743 = vmatprep.subr.bf16.mxu0 0
      %744 = vmatpush2.bf16.msra.mxu0 0
      %745 = vmatprep.subr.bf16.mxu0 0
      %746 = vmatpush2.bf16.msra.mxu0 0
      %747 = vmatprep.mubr.bf16.mxu0 0
      %748 = vmatmul.mubr.bf16.gmra.mxu0 %v410
      %v749 = vpop.f32.mrf.mxu0
      %v750 = vadd.f32 %v701, %v749
      %v751 = vpop.f32.mrf.mxu0
      %v752 = vpop.f32.mrf.mxu0
      %v753 = vpop.f32.mrf.mxu0
      %754 = vdwg.mxu0
      %s755 = scalar_lea.vmem %s2, 16
      %v756 = vld [vmem:[%s755] sm:$0xf]
      %v757 = vld [vmem:[%s755 + $0x4] sm:$0xf]
      %v758 = vld [vmem:[%s755 + $0x8] sm:$0xf]
      %v759 = vld [vmem:[%s755 + $0xc] sm:$0xf]
      %s760 = scalar_lea.vmem %s5, 1
      %v761 = vld [vmem:[%s760] sm:$0x1]
      %v763 = vlaneseq
      %v764 = vshrl.u32 %v763, 7
      %v765 = vsub.s32 0, %v764
      %v766 = vrot.slane %v761, %v765
      %v772 = vunpack.c.l.b16 %v756
      %v773 = vunpack.c.l.b16 %v757
      %v774 = vunpack.c.l.b16 %v758
      %v775 = vunpack.c.l.b16 %v759
      %v776 = vpack.c.b16 %v773, %v772
      %v777 = vpack.c.b16 %v775, %v774
      %780 = vmatprep.subr.bf16.mxu0 0
      %781 = vmatpush1.bf16.msra.mxu0 0
      %782 = vmatprep.subr.bf16.mxu0 0
      %783 = vmatpush1.bf16.msra.mxu0 0
      %784 = vmatprep.subr.bf16.mxu0 0
      %785 = vmatpush1.bf16.msra.mxu0 0
      %786 = vmatprep.subr.bf16.mxu0 0
      %787 = vmatpush1.bf16.msra.mxu0 0
      %788 = vmatprep.subr.bf16.mxu0 0
      %789 = vmatpush1.bf16.msra.mxu0 0
      %790 = vmatprep.subr.bf16.mxu0 0
      %791 = vmatpush1.bf16.msra.mxu0 0
      %792 = vmatprep.subr.bf16.mxu0 0
      %793 = vmatpush1.bf16.msra.mxu0 %v777
      %794 = vmatprep.subr.bf16.mxu0 0
      %795 = vmatpush1.bf16.msra.mxu0 %v776
      %796 = vmatprep.subr.bf16.mxu0 0
      %797 = vmatpush2.bf16.msra.mxu0 0
      %798 = vmatprep.subr.bf16.mxu0 0
      %799 = vmatpush2.bf16.msra.mxu0 0
      %800 = vmatprep.subr.bf16.mxu0 0
      %801 = vmatpush2.bf16.msra.mxu0 0
      %802 = vmatprep.subr.bf16.mxu0 0
      %803 = vmatpush2.bf16.msra.mxu0 0
      %804 = vmatprep.subr.bf16.mxu0 0
      %805 = vmatpush2.bf16.msra.mxu0 0
      %806 = vmatprep.subr.bf16.mxu0 0
      %807 = vmatpush2.bf16.msra.mxu0 0
      %808 = vmatprep.subr.bf16.mxu0 0
      %809 = vmatpush2.bf16.msra.mxu0 0
      %810 = vmatprep.subr.bf16.mxu0 0
      %811 = vmatpush2.bf16.msra.mxu0 0
      %812 = vmatprep.mubr.bf16.mxu0 0
      %813 = vmatmul.mubr.bf16.gmra.mxu0 %v410
      %v814 = vpop.f32.mrf.mxu0
      %v815 = vadd.f32 %v766, %v814
      %v816 = vpop.f32.mrf.mxu0
      %v817 = vpop.f32.mrf.mxu0
      %v818 = vpop.f32.mrf.mxu0
      %819 = vdwg.mxu0
      %s820 = scalar_lea.vmem %s3, 16
      %v821 = vld [vmem:[%s820] sm:$0xf]
      %v822 = vld [vmem:[%s820 + $0x4] sm:$0xf]
      %v823 = vld [vmem:[%s820 + $0x8] sm:$0xf]
      %v824 = vld [vmem:[%s820 + $0xc] sm:$0xf]
      %s825 = scalar_lea.vmem %s6, 1
      %v826 = vld [vmem:[%s825] sm:$0x1]
      %v828 = vlaneseq
      %v829 = vshrl.u32 %v828, 7
      %v830 = vsub.s32 0, %v829
      %v831 = vrot.slane %v826, %v830
      %v837 = vunpack.c.l.b16 %v821
      %v838 = vunpack.c.l.b16 %v822
      %v839 = vunpack.c.l.b16 %v823
      %v840 = vunpack.c.l.b16 %v824
      %v841 = vpack.c.b16 %v838, %v837
      %v842 = vpack.c.b16 %v840, %v839
      %845 = vmatprep.subr.bf16.mxu0 0
      %846 = vmatpush1.bf16.msra.mxu0 0
      %847 = vmatprep.subr.bf16.mxu0 0
      %848 = vmatpush1.bf16.msra.mxu0 0
      %849 = vmatprep.subr.bf16.mxu0 0
      %850 = vmatpush1.bf16.msra.mxu0 0
      %851 = vmatprep.subr.bf16.mxu0 0
      %852 = vmatpush1.bf16.msra.mxu0 0
      %853 = vmatprep.subr.bf16.mxu0 0
      %854 = vmatpush1.bf16.msra.mxu0 0
      %855 = vmatprep.subr.bf16.mxu0 0
      %856 = vmatpush1.bf16.msra.mxu0 0
      %857 = vmatprep.subr.bf16.mxu0 0
      %858 = vmatpush1.bf16.msra.mxu0 %v842
      %859 = vmatprep.subr.bf16.mxu0 0
      %860 = vmatpush1.bf16.msra.mxu0 %v841
      %861 = vmatprep.subr.bf16.mxu0 0
      %862 = vmatpush2.bf16.msra.mxu0 0
      %863 = vmatprep.subr.bf16.mxu0 0
      %864 = vmatpush2.bf16.msra.mxu0 0
      %865 = vmatprep.subr.bf16.mxu0 0
      %866 = vmatpush2.bf16.msra.mxu0 0
      %867 = vmatprep.subr.bf16.mxu0 0
      %868 = vmatpush2.bf16.msra.mxu0 0
      %869 = vmatprep.subr.bf16.mxu0 0
      %870 = vmatpush2.bf16.msra.mxu0 0
      %871 = vmatprep.subr.bf16.mxu0 0
      %872 = vmatpush2.bf16.msra.mxu0 0
      %873 = vmatprep.subr.bf16.mxu0 0
      %874 = vmatpush2.bf16.msra.mxu0 0
      %875 = vmatprep.subr.bf16.mxu0 0
      %876 = vmatpush2.bf16.msra.mxu0 0
      %877 = vmatprep.mubr.bf16.mxu0 0
      %878 = vmatmul.mubr.bf16.gmra.mxu0 %v410
      %v879 = vpop.f32.mrf.mxu0
      %v880 = vadd.f32 %v831, %v879
      %v881 = vpop.f32.mrf.mxu0
      %v882 = vpop.f32.mrf.mxu0
      %v883 = vpop.f32.mrf.mxu0
      %884 = vdwg.mxu0
      %v885 = vpack.c.bf16 %v750, %v750
      %v886 = vpack.c.bf16 %v815, %v815
      %v888 = vsel %vm580, %v885, 0
      %v891 = vsel %vm580, %v886, 0
      %893 = vmatprep.subr.bf16.mxu0 0
      %894 = vmatpush1.bf16.xpose.msra.mxu0 0
      %895 = vmatprep.subr.bf16.mxu0 0
      %896 = vmatpush1.bf16.xpose.msra.mxu0 0
      %897 = vmatprep.subr.bf16.mxu0 0
      %898 = vmatpush1.bf16.xpose.msra.mxu0 0
      %899 = vmatprep.subr.bf16.mxu0 0
      %900 = vmatpush1.bf16.xpose.msra.mxu0 0
      %901 = vmatprep.subr.bf16.mxu0 0
      %902 = vmatpush1.bf16.xpose.msra.mxu0 0
      %903 = vmatprep.subr.bf16.mxu0 0
      %904 = vmatpush1.bf16.xpose.msra.mxu0 0
      %905 = vmatprep.subr.bf16.mxu0 0
      %906 = vmatpush1.bf16.xpose.msra.mxu0 0
      %907 = vmatprep.subr.bf16.mxu0 0
      %908 = vmatpush1.bf16.xpose.msra.mxu0 %v891
      %909 = vmatprep.subr.bf16.mxu0 0
      %910 = vmatpush2.bf16.xpose.msra.mxu0 0
      %911 = vmatprep.subr.bf16.mxu0 0
      %912 = vmatpush2.bf16.xpose.msra.mxu0 0
      %913 = vmatprep.subr.bf16.mxu0 0
      %914 = vmatpush2.bf16.xpose.msra.mxu0 0
      %915 = vmatprep.subr.bf16.mxu0 0
      %916 = vmatpush2.bf16.xpose.msra.mxu0 0
      %917 = vmatprep.subr.bf16.mxu0 0
      %918 = vmatpush2.bf16.xpose.msra.mxu0 0
      %919 = vmatprep.subr.bf16.mxu0 0
      %920 = vmatpush2.bf16.xpose.msra.mxu0 0
      %921 = vmatprep.subr.bf16.mxu0 0
      %922 = vmatpush2.bf16.xpose.msra.mxu0 0
      %923 = vmatprep.subr.bf16.mxu0 0
      %924 = vmatpush2.bf16.xpose.msra.mxu0 0
      %925 = vmatprep.mubr.bf16.mxu0 0
      %926 = vmatmul.mubr.bf16.gmra.mxu0 %v888
      %v927 = vpop.f32.mrf.mxu0
      %v928 = vadd.f32 0.0, %v927
      %v929 = vpop.f32.mrf.mxu0
      %v930 = vpop.f32.mrf.mxu0
      %v931 = vpop.f32.mrf.mxu0
      %932 = vdwg.mxu0
      %v933 = vmul.f32 %v928, 0.35355338
      %v934 = vsel %vm580, %v933, -inf
      %935 = vmax.xlane.f32.xlu0 %v934
      %v936 = vpop.xlane.xlu0 %935
      %v937 = vsub.f32 %v933, %v936
      %v938 = vmul.f32 %v937, 1.442695
      %v939 = vpow.pop %v938
      %v940 = vsel %vm580, %v939, 0.0
      %941 = vadd.xlane.f32.xlu0 %v940
      %v942 = vpop.xlane.xlu0 %941
      %v943 = vrcp.pop %v942
      %v944 = vmul.f32 %v939, %v943
      %v945 = vpack.c.bf16 %v944, %v944
      %v946 = vpack.c.bf16 %v880, %v880
      %v948 = vsel %vm580, %v945, 0
      %v951 = vsel %vm644, %v946, 0
      %953 = vmatprep.subr.bf16.mxu0 0
      %954 = vmatpush1.bf16.msra.mxu0 0
      %955 = vmatprep.subr.bf16.mxu0 0
      %956 = vmatpush1.bf16.msra.mxu0 0
      %957 = vmatprep.subr.bf16.mxu0 0
      %958 = vmatpush1.bf16.msra.mxu0 0
      %959 = vmatprep.subr.bf16.mxu0 0
      %960 = vmatpush1.bf16.msra.mxu0 0
      %961 = vmatprep.subr.bf16.mxu0 0
      %962 = vmatpush1.bf16.msra.mxu0 0
      %963 = vmatprep.subr.bf16.mxu0 0
      %964 = vmatpush1.bf16.msra.mxu0 0
      %965 = vmatprep.subr.bf16.mxu0 0
      %966 = vmatpush1.bf16.msra.mxu0 0
      %967 = vmatprep.subr.bf16.mxu0 0
      %968 = vmatpush1.bf16.msra.mxu0 %v951
      %969 = vmatprep.subr.bf16.mxu0 0
      %970 = vmatpush2.bf16.msra.mxu0 0
      %971 = vmatprep.subr.bf16.mxu0 0
      %972 = vmatpush2.bf16.msra.mxu0 0
      %973 = vmatprep.subr.bf16.mxu0 0
      %974 = vmatpush2.bf16.msra.mxu0 0
      %975 = vmatprep.subr.bf16.mxu0 0
      %976 = vmatpush2.bf16.msra.mxu0 0
      %977 = vmatprep.subr.bf16.mxu0 0
      %978 = vmatpush2.bf16.msra.mxu0 0
      %979 = vmatprep.subr.bf16.mxu0 0
      %980 = vmatpush2.bf16.msra.mxu0 0
      %981 = vmatprep.subr.bf16.mxu0 0
      %982 = vmatpush2.bf16.msra.mxu0 0
      %983 = vmatprep.subr.bf16.mxu0 0
      %984 = vmatpush2.bf16.msra.mxu0 0
      %985 = vmatprep.mubr.bf16.mxu0 0
      %986 = vmatmul.mubr.bf16.gmra.mxu0 %v948
      %v987 = vpop.f32.mrf.mxu0
      %v988 = vadd.f32 0.0, %v987
      %v989 = vpop.f32.mrf.mxu0
      %v990 = vpop.f32.mrf.mxu0
      %v991 = vpop.f32.mrf.mxu0
      %992 = vdwg.mxu0
      %v993 = vpack.c.bf16 %v988, %v988
      %s994 = scalar_lea.vmem %s7, 4
      %v995 = vld [vmem:[%s994] sm:$0xf]
      %v997 = vsel %vm580, %v993, 0
      %v1000 = vsel %vm644, %v995, 0
      %1002 = vmatprep.subr.bf16.mxu0 0
      %1003 = vmatpush1.bf16.msra.mxu0 0
      %1004 = vmatprep.subr.bf16.mxu0 0
      %1005 = vmatpush1.bf16.msra.mxu0 0
      %1006 = vmatprep.subr.bf16.mxu0 0
      %1007 = vmatpush1.bf16.msra.mxu0 0
      %1008 = vmatprep.subr.bf16.mxu0 0
      %1009 = vmatpush1.bf16.msra.mxu0 0
      %1010 = vmatprep.subr.bf16.mxu0 0
      %1011 = vmatpush1.bf16.msra.mxu0 0
      %1012 = vmatprep.subr.bf16.mxu0 0
      %1013 = vmatpush1.bf16.msra.mxu0 0
      %1014 = vmatprep.subr.bf16.mxu0 0
      %1015 = vmatpush1.bf16.msra.mxu0 0
      %1016 = vmatprep.subr.bf16.mxu0 0
      %1017 = vmatpush1.bf16.msra.mxu0 %v1000
      %1018 = vmatprep.subr.bf16.mxu0 0
      %1019 = vmatpush2.bf16.msra.mxu0 0
      %1020 = vmatprep.subr.bf16.mxu0 0
      %1021 = vmatpush2.bf16.msra.mxu0 0
      %1022 = vmatprep.subr.bf16.mxu0 0
      %1023 = vmatpush2.bf16.msra.mxu0 0
      %1024 = vmatprep.subr.bf16.mxu0 0
      %1025 = vmatpush2.bf16.msra.mxu0 0
      %1026 = vmatprep.subr.bf16.mxu0 0
      %1027 = vmatpush2.bf16.msra.mxu0 0
      %1028 = vmatprep.subr.bf16.mxu0 0
      %1029 = vmatpush2.bf16.msra.mxu0 0
      %1030 = vmatprep.subr.bf16.mxu0 0
      %1031 = vmatpush2.bf16.msra.mxu0 0
      %1032 = vmatprep.subr.bf16.mxu0 0
      %1033 = vmatpush2.bf16.msra.mxu0 0
      %1034 = vmatprep.mubr.bf16.mxu0 0
      %1035 = vmatmul.mubr.bf16.gmra.mxu0 %v997
      %v1036 = vpop.f32.mrf.mxu0
      %v1037 = vadd.f32 0.0, %v1036
      %v1038 = vpop.f32.mrf.mxu0
      %v1039 = vpop.f32.mrf.mxu0
      %v1040 = vpop.f32.mrf.mxu0
      %1041 = vdwg.mxu0
      %v1043 = vsel %vm580, %v688, 0
      %v1046 = vsel %vm644, %v689, 0
      %1048 = vmatprep.subr.bf16.mxu0 0
      %1049 = vmatpush1.bf16.msra.mxu0 0
      %1050 = vmatprep.subr.bf16.mxu0 0
      %1051 = vmatpush1.bf16.msra.mxu0 0
      %1052 = vmatprep.subr.bf16.mxu0 0
      %1053 = vmatpush1.bf16.msra.mxu0 0
      %1054 = vmatprep.subr.bf16.mxu0 0
      %1055 = vmatpush1.bf16.msra.mxu0 0
      %1056 = vmatprep.subr.bf16.mxu0 0
      %1057 = vmatpush1.bf16.msra.mxu0 0
      %1058 = vmatprep.subr.bf16.mxu0 0
      %1059 = vmatpush1.bf16.msra.mxu0 0
      %1060 = vmatprep.subr.bf16.mxu0 0
      %1061 = vmatpush1.bf16.msra.mxu0 0
      %1062 = vmatprep.subr.bf16.mxu0 0
      %1063 = vmatpush1.bf16.msra.mxu0 %v1046
      %1064 = vmatprep.subr.bf16.mxu0 0
      %1065 = vmatpush2.bf16.msra.mxu0 0
      %1066 = vmatprep.subr.bf16.mxu0 0
      %1067 = vmatpush2.bf16.msra.mxu0 0
      %1068 = vmatprep.subr.bf16.mxu0 0
      %1069 = vmatpush2.bf16.msra.mxu0 0
      %1070 = vmatprep.subr.bf16.mxu0 0
      %1071 = vmatpush2.bf16.msra.mxu0 0
      %1072 = vmatprep.subr.bf16.mxu0 0
      %1073 = vmatpush2.bf16.msra.mxu0 0
      %1074 = vmatprep.subr.bf16.mxu0 0
      %1075 = vmatpush2.bf16.msra.mxu0 0
      %1076 = vmatprep.subr.bf16.mxu0 0
      %1077 = vmatpush2.bf16.msra.mxu0 0
      %1078 = vmatprep.subr.bf16.mxu0 0
      %1079 = vmatpush2.bf16.msra.mxu0 0
      %1080 = vmatprep.mubr.bf16.mxu0 0
      %1081 = vmatmul.mubr.bf16.gmra.mxu0 %v1043
      %v1082 = vpop.f32.mrf.mxu0
      %v1083 = vadd.f32 %v1037, %v1082
      %v1084 = vpop.f32.mrf.mxu0
      %v1085 = vpop.f32.mrf.mxu0
      %v1086 = vpop.f32.mrf.mxu0
      %1087 = vdwg.mxu0
      %s1088 = scalar_lea.vmem %s1, 32
      %v1089 = vld [vmem:[%s1088] sm:$0xf]
      %v1090 = vld [vmem:[%s1088 + $0x4] sm:$0xf]
      %v1091 = vld [vmem:[%s1088 + $0x8] sm:$0xf]
      %v1092 = vld [vmem:[%s1088 + $0xc] sm:$0xf]
      %s1093 = scalar_lea.vmem %s4, 2
      %v1094 = vld [vmem:[%s1093] sm:$0x1]
      %v1096 = vlaneseq
      %v1097 = vshrl.u32 %v1096, 7
      %v1098 = vsub.s32 0, %v1097
      %v1099 = vrot.slane %v1094, %v1098
      %v1105 = vunpack.c.l.b16 %v1089
      %v1106 = vunpack.c.l.b16 %v1090
      %v1107 = vunpack.c.l.b16 %v1091
      %v1108 = vunpack.c.l.b16 %v1092
      %v1109 = vpack.c.b16 %v1106, %v1105
      %v1110 = vpack.c.b16 %v1108, %v1107
      %1113 = vmatprep.subr.bf16.mxu0 0
      %1114 = vmatpush1.bf16.msra.mxu0 0
      %1115 = vmatprep.subr.bf16.mxu0 0
      %1116 = vmatpush1.bf16.msra.mxu0 0
      %1117 = vmatprep.subr.bf16.mxu0 0
      %1118 = vmatpush1.bf16.msra.mxu0 0
      %1119 = vmatprep.subr.bf16.mxu0 0
      %1120 = vmatpush1.bf16.msra.mxu0 0
      %1121 = vmatprep.subr.bf16.mxu0 0
      %1122 = vmatpush1.bf16.msra.mxu0 0
      %1123 = vmatprep.subr.bf16.mxu0 0
      %1124 = vmatpush1.bf16.msra.mxu0 0
      %1125 = vmatprep.subr.bf16.mxu0 0
      %1126 = vmatpush1.bf16.msra.mxu0 %v1110
      %1127 = vmatprep.subr.bf16.mxu0 0
      %1128 = vmatpush1.bf16.msra.mxu0 %v1109
      %1129 = vmatprep.subr.bf16.mxu0 0
      %1130 = vmatpush2.bf16.msra.mxu0 0
      %1131 = vmatprep.subr.bf16.mxu0 0
      %1132 = vmatpush2.bf16.msra.mxu0 0
      %1133 = vmatprep.subr.bf16.mxu0 0
      %1134 = vmatpush2.bf16.msra.mxu0 0
      %1135 = vmatprep.subr.bf16.mxu0 0
      %1136 = vmatpush2.bf16.msra.mxu0 0
      %1137 = vmatprep.subr.bf16.mxu0 0
      %1138 = vmatpush2.bf16.msra.mxu0 0
      %1139 = vmatprep.subr.bf16.mxu0 0
      %1140 = vmatpush2.bf16.msra.mxu0 0
      %1141 = vmatprep.subr.bf16.mxu0 0
      %1142 = vmatpush2.bf16.msra.mxu0 0
      %1143 = vmatprep.subr.bf16.mxu0 0
      %1144 = vmatpush2.bf16.msra.mxu0 0
      %1145 = vmatprep.mubr.bf16.mxu0 0
      %1146 = vmatmul.mubr.bf16.gmra.mxu0 %v410
      %v1147 = vpop.f32.mrf.mxu0
      %v1148 = vadd.f32 %v1099, %v1147
      %v1149 = vpop.f32.mrf.mxu0
      %v1150 = vpop.f32.mrf.mxu0
      %v1151 = vpop.f32.mrf.mxu0
      %1152 = vdwg.mxu0
      %s1153 = scalar_lea.vmem %s2, 32
      %v1154 = vld [vmem:[%s1153] sm:$0xf]
      %v1155 = vld [vmem:[%s1153 + $0x4] sm:$0xf]
      %v1156 = vld [vmem:[%s1153 + $0x8] sm:$0xf]
      %v1157 = vld [vmem:[%s1153 + $0xc] sm:$0xf]
      %s1158 = scalar_lea.vmem %s5, 2
      %v1159 = vld [vmem:[%s1158] sm:$0x1]
      %v1161 = vlaneseq
      %v1162 = vshrl.u32 %v1161, 7
      %v1163 = vsub.s32 0, %v1162
      %v1164 = vrot.slane %v1159, %v1163
      %v1170 = vunpack.c.l.b16 %v1154
      %v1171 = vunpack.c.l.b16 %v1155
      %v1172 = vunpack.c.l.b16 %v1156
      %v1173 = vunpack.c.l.b16 %v1157
      %v1174 = vpack.c.b16 %v1171, %v1170
      %v1175 = vpack.c.b16 %v1173, %v1172
      %1178 = vmatprep.subr.bf16.mxu0 0
      %1179 = vmatpush1.bf16.msra.mxu0 0
      %1180 = vmatprep.subr.bf16.mxu0 0
      %1181 = vmatpush1.bf16.msra.mxu0 0
      %1182 = vmatprep.subr.bf16.mxu0 0
      %1183 = vmatpush1.bf16.msra.mxu0 0
      %1184 = vmatprep.subr.bf16.mxu0 0
      %1185 = vmatpush1.bf16.msra.mxu0 0
      %1186 = vmatprep.subr.bf16.mxu0 0
      %1187 = vmatpush1.bf16.msra.mxu0 0
      %1188 = vmatprep.subr.bf16.mxu0 0
      %1189 = vmatpush1.bf16.msra.mxu0 0
      %1190 = vmatprep.subr.bf16.mxu0 0
      %1191 = vmatpush1.bf16.msra.mxu0 %v1175
      %1192 = vmatprep.subr.bf16.mxu0 0
      %1193 = vmatpush1.bf16.msra.mxu0 %v1174
      %1194 = vmatprep.subr.bf16.mxu0 0
      %1195 = vmatpush2.bf16.msra.mxu0 0
      %1196 = vmatprep.subr.bf16.mxu0 0
      %1197 = vmatpush2.bf16.msra.mxu0 0
      %1198 = vmatprep.subr.bf16.mxu0 0
      %1199 = vmatpush2.bf16.msra.mxu0 0
      %1200 = vmatprep.subr.bf16.mxu0 0
      %1201 = vmatpush2.bf16.msra.mxu0 0
      %1202 = vmatprep.subr.bf16.mxu0 0
      %1203 = vmatpush2.bf16.msra.mxu0 0
      %1204 = vmatprep.subr.bf16.mxu0 0
      %1205 = vmatpush2.bf16.msra.mxu0 0
      %1206 = vmatprep.subr.bf16.mxu0 0
      %1207 = vmatpush2.bf16.msra.mxu0 0
      %1208 = vmatprep.subr.bf16.mxu0 0
      %1209 = vmatpush2.bf16.msra.mxu0 0
      %1210 = vmatprep.mubr.bf16.mxu0 0
      %1211 = vmatmul.mubr.bf16.gmra.mxu0 %v410
      %v1212 = vpop.f32.mrf.mxu0
      %v1213 = vadd.f32 %v1164, %v1212
      %v1214 = vpop.f32.mrf.mxu0
      %v1215 = vpop.f32.mrf.mxu0
      %v1216 = vpop.f32.mrf.mxu0
      %1217 = vdwg.mxu0
      %s1218 = scalar_lea.vmem %s3, 32
      %v1219 = vld [vmem:[%s1218] sm:$0xf]
      %v1220 = vld [vmem:[%s1218 + $0x4] sm:$0xf]
      %v1221 = vld [vmem:[%s1218 + $0x8] sm:$0xf]
      %v1222 = vld [vmem:[%s1218 + $0xc] sm:$0xf]
      %s1223 = scalar_lea.vmem %s6, 2
      %v1224 = vld [vmem:[%s1223] sm:$0x1]
      %v1226 = vlaneseq
      %v1227 = vshrl.u32 %v1226, 7
      %v1228 = vsub.s32 0, %v1227
      %v1229 = vrot.slane %v1224, %v1228
      %v1235 = vunpack.c.l.b16 %v1219
      %v1236 = vunpack.c.l.b16 %v1220
      %v1237 = vunpack.c.l.b16 %v1221
      %v1238 = vunpack.c.l.b16 %v1222
      %v1239 = vpack.c.b16 %v1236, %v1235
      %v1240 = vpack.c.b16 %v1238, %v1237
      %1243 = vmatprep.subr.bf16.mxu0 0
      %1244 = vmatpush1.bf16.msra.mxu0 0
      %1245 = vmatprep.subr.bf16.mxu0 0
      %1246 = vmatpush1.bf16.msra.mxu0 0
      %1247 = vmatprep.subr.bf16.mxu0 0
      %1248 = vmatpush1.bf16.msra.mxu0 0
      %1249 = vmatprep.subr.bf16.mxu0 0
      %1250 = vmatpush1.bf16.msra.mxu0 0
      %1251 = vmatprep.subr.bf16.mxu0 0
      %1252 = vmatpush1.bf16.msra.mxu0 0
      %1253 = vmatprep.subr.bf16.mxu0 0
      %1254 = vmatpush1.bf16.msra.mxu0 0
      %1255 = vmatprep.subr.bf16.mxu0 0
      %1256 = vmatpush1.bf16.msra.mxu0 %v1240
      %1257 = vmatprep.subr.bf16.mxu0 0
      %1258 = vmatpush1.bf16.msra.mxu0 %v1239
      %1259 = vmatprep.subr.bf16.mxu0 0
      %1260 = vmatpush2.bf16.msra.mxu0 0
      %1261 = vmatprep.subr.bf16.mxu0 0
      %1262 = vmatpush2.bf16.msra.mxu0 0
      %1263 = vmatprep.subr.bf16.mxu0 0
      %1264 = vmatpush2.bf16.msra.mxu0 0
      %1265 = vmatprep.subr.bf16.mxu0 0
      %1266 = vmatpush2.bf16.msra.mxu0 0
      %1267 = vmatprep.subr.bf16.mxu0 0
      %1268 = vmatpush2.bf16.msra.mxu0 0
      %1269 = vmatprep.subr.bf16.mxu0 0
      %1270 = vmatpush2.bf16.msra.mxu0 0
      %1271 = vmatprep.subr.bf16.mxu0 0
      %1272 = vmatpush2.bf16.msra.mxu0 0
      %1273 = vmatprep.subr.bf16.mxu0 0
      %1274 = vmatpush2.bf16.msra.mxu0 0
      %1275 = vmatprep.mubr.bf16.mxu0 0
      %1276 = vmatmul.mubr.bf16.gmra.mxu0 %v410
      %v1277 = vpop.f32.mrf.mxu0
      %v1278 = vadd.f32 %v1229, %v1277
      %v1279 = vpop.f32.mrf.mxu0
      %v1280 = vpop.f32.mrf.mxu0
      %v1281 = vpop.f32.mrf.mxu0
      %1282 = vdwg.mxu0
      %v1283 = vpack.c.bf16 %v1148, %v1148
      %v1284 = vpack.c.bf16 %v1213, %v1213
      %v1286 = vsel %vm580, %v1283, 0
      %v1289 = vsel %vm580, %v1284, 0
      %1291 = vmatprep.subr.bf16.mxu0 0
      %1292 = vmatpush1.bf16.xpose.msra.mxu0 0
      %1293 = vmatprep.subr.bf16.mxu0 0
      %1294 = vmatpush1.bf16.xpose.msra.mxu0 0
      %1295 = vmatprep.subr.bf16.mxu0 0
      %1296 = vmatpush1.bf16.xpose.msra.mxu0 0
      %1297 = vmatprep.subr.bf16.mxu0 0
      %1298 = vmatpush1.bf16.xpose.msra.mxu0 0
      %1299 = vmatprep.subr.bf16.mxu0 0
      %1300 = vmatpush1.bf16.xpose.msra.mxu0 0
      %1301 = vmatprep.subr.bf16.mxu0 0
      %1302 = vmatpush1.bf16.xpose.msra.mxu0 0
      %1303 = vmatprep.subr.bf16.mxu0 0
      %1304 = vmatpush1.bf16.xpose.msra.mxu0 0
      %1305 = vmatprep.subr.bf16.mxu0 0
      %1306 = vmatpush1.bf16.xpose.msra.mxu0 %v1289
      %1307 = vmatprep.subr.bf16.mxu0 0
      %1308 = vmatpush2.bf16.xpose.msra.mxu0 0
      %1309 = vmatprep.subr.bf16.mxu0 0
      %1310 = vmatpush2.bf16.xpose.msra.mxu0 0
      %1311 = vmatprep.subr.bf16.mxu0 0
      %1312 = vmatpush2.bf16.xpose.msra.mxu0 0
      %1313 = vmatprep.subr.bf16.mxu0 0
      %1314 = vmatpush2.bf16.xpose.msra.mxu0 0
      %1315 = vmatprep.subr.bf16.mxu0 0
      %1316 = vmatpush2.bf16.xpose.msra.mxu0 0
      %1317 = vmatprep.subr.bf16.mxu0 0
      %1318 = vmatpush2.bf16.xpose.msra.mxu0 0
      %1319 = vmatprep.subr.bf16.mxu0 0
      %1320 = vmatpush2.bf16.xpose.msra.mxu0 0
      %1321 = vmatprep.subr.bf16.mxu0 0
      %1322 = vmatpush2.bf16.xpose.msra.mxu0 0
      %1323 = vmatprep.mubr.bf16.mxu0 0
      %1324 = vmatmul.mubr.bf16.gmra.mxu0 %v1286
      %v1325 = vpop.f32.mrf.mxu0
      %v1326 = vadd.f32 0.0, %v1325
      %v1327 = vpop.f32.mrf.mxu0
      %v1328 = vpop.f32.mrf.mxu0
      %v1329 = vpop.f32.mrf.mxu0
      %1330 = vdwg.mxu0
      %v1331 = vmul.f32 %v1326, 0.35355338
      %v1332 = vsel %vm580, %v1331, -inf
      %1333 = vmax.xlane.f32.xlu0 %v1332
      %v1334 = vpop.xlane.xlu0 %1333
      %v1335 = vsub.f32 %v1331, %v1334
      %v1336 = vmul.f32 %v1335, 1.442695
      %v1337 = vpow.pop %v1336
      %v1338 = vsel %vm580, %v1337, 0.0
      %1339 = vadd.xlane.f32.xlu0 %v1338
      %v1340 = vpop.xlane.xlu0 %1339
      %v1341 = vrcp.pop %v1340
      %v1342 = vmul.f32 %v1337, %v1341
      %v1343 = vpack.c.bf16 %v1342, %v1342
      %v1344 = vpack.c.bf16 %v1278, %v1278
      %v1346 = vsel %vm580, %v1343, 0
      %v1349 = vsel %vm644, %v1344, 0
      %1351 = vmatprep.subr.bf16.mxu0 0
      %1352 = vmatpush1.bf16.msra.mxu0 0
      %1353 = vmatprep.subr.bf16.mxu0 0
      %1354 = vmatpush1.bf16.msra.mxu0 0
      %1355 = vmatprep.subr.bf16.mxu0 0
      %1356 = vmatpush1.bf16.msra.mxu0 0
      %1357 = vmatprep.subr.bf16.mxu0 0
      %1358 = vmatpush1.bf16.msra.mxu0 0
      %1359 = vmatprep.subr.bf16.mxu0 0
      %1360 = vmatpush1.bf16.msra.mxu0 0
      %1361 = vmatprep.subr.bf16.mxu0 0
      %1362 = vmatpush1.bf16.msra.mxu0 0
      %1363 = vmatprep.subr.bf16.mxu0 0
      %1364 = vmatpush1.bf16.msra.mxu0 0
      %1365 = vmatprep.subr.bf16.mxu0 0
      %1366 = vmatpush1.bf16.msra.mxu0 %v1349
      %1367 = vmatprep.subr.bf16.mxu0 0
      %1368 = vmatpush2.bf16.msra.mxu0 0
      %1369 = vmatprep.subr.bf16.mxu0 0
      %1370 = vmatpush2.bf16.msra.mxu0 0
      %1371 = vmatprep.subr.bf16.mxu0 0
      %1372 = vmatpush2.bf16.msra.mxu0 0
      %1373 = vmatprep.subr.bf16.mxu0 0
      %1374 = vmatpush2.bf16.msra.mxu0 0
      %1375 = vmatprep.subr.bf16.mxu0 0
      %1376 = vmatpush2.bf16.msra.mxu0 0
      %1377 = vmatprep.subr.bf16.mxu0 0
      %1378 = vmatpush2.bf16.msra.mxu0 0
      %1379 = vmatprep.subr.bf16.mxu0 0
      %1380 = vmatpush2.bf16.msra.mxu0 0
      %1381 = vmatprep.subr.bf16.mxu0 0
      %1382 = vmatpush2.bf16.msra.mxu0 0
      %1383 = vmatprep.mubr.bf16.mxu0 0
      %1384 = vmatmul.mubr.bf16.gmra.mxu0 %v1346
      %v1385 = vpop.f32.mrf.mxu0
      %v1386 = vadd.f32 0.0, %v1385
      %v1387 = vpop.f32.mrf.mxu0
      %v1388 = vpop.f32.mrf.mxu0
      %v1389 = vpop.f32.mrf.mxu0
      %1390 = vdwg.mxu0
      %v1391 = vpack.c.bf16 %v1386, %v1386
      %s1392 = scalar_lea.vmem %s7, 8
      %v1393 = vld [vmem:[%s1392] sm:$0xf]
      %v1395 = vsel %vm580, %v1391, 0
      %v1398 = vsel %vm644, %v1393, 0
      %1400 = vmatprep.subr.bf16.mxu0 0
      %1401 = vmatpush1.bf16.msra.mxu0 0
      %1402 = vmatprep.subr.bf16.mxu0 0
      %1403 = vmatpush1.bf16.msra.mxu0 0
      %1404 = vmatprep.subr.bf16.mxu0 0
      %1405 = vmatpush1.bf16.msra.mxu0 0
      %1406 = vmatprep.subr.bf16.mxu0 0
      %1407 = vmatpush1.bf16.msra.mxu0 0
      %1408 = vmatprep.subr.bf16.mxu0 0
      %1409 = vmatpush1.bf16.msra.mxu0 0
      %1410 = vmatprep.subr.bf16.mxu0 0
      %1411 = vmatpush1.bf16.msra.mxu0 0
      %1412 = vmatprep.subr.bf16.mxu0 0
      %1413 = vmatpush1.bf16.msra.mxu0 0
      %1414 = vmatprep.subr.bf16.mxu0 0
      %1415 = vmatpush1.bf16.msra.mxu0 %v1398
      %1416 = vmatprep.subr.bf16.mxu0 0
      %1417 = vmatpush2.bf16.msra.mxu0 0
      %1418 = vmatprep.subr.bf16.mxu0 0
      %1419 = vmatpush2.bf16.msra.mxu0 0
      %1420 = vmatprep.subr.bf16.mxu0 0
      %1421 = vmatpush2.bf16.msra.mxu0 0
      %1422 = vmatprep.subr.bf16.mxu0 0
      %1423 = vmatpush2.bf16.msra.mxu0 0
      %1424 = vmatprep.subr.bf16.mxu0 0
      %1425 = vmatpush2.bf16.msra.mxu0 0
      %1426 = vmatprep.subr.bf16.mxu0 0
      %1427 = vmatpush2.bf16.msra.mxu0 0
      %1428 = vmatprep.subr.bf16.mxu0 0
      %1429 = vmatpush2.bf16.msra.mxu0 0
      %1430 = vmatprep.subr.bf16.mxu0 0
      %1431 = vmatpush2.bf16.msra.mxu0 0
      %1432 = vmatprep.mubr.bf16.mxu0 0
      %1433 = vmatmul.mubr.bf16.gmra.mxu0 %v1395
      %v1434 = vpop.f32.mrf.mxu0
      %v1435 = vadd.f32 0.0, %v1434
      %v1436 = vpop.f32.mrf.mxu0
      %v1437 = vpop.f32.mrf.mxu0
      %v1438 = vpop.f32.mrf.mxu0
      %1439 = vdwg.mxu0
      %v1440 = vadd.f32 %v1083, %v1435
      %s1441 = scalar_lea.vmem %s1, 48
      %v1442 = vld [vmem:[%s1441] sm:$0xf]
      %v1443 = vld [vmem:[%s1441 + $0x4] sm:$0xf]
      %v1444 = vld [vmem:[%s1441 + $0x8] sm:$0xf]
      %v1445 = vld [vmem:[%s1441 + $0xc] sm:$0xf]
      %s1446 = scalar_lea.vmem %s4, 3
      %v1447 = vld [vmem:[%s1446] sm:$0x1]
      %v1449 = vlaneseq
      %v1450 = vshrl.u32 %v1449, 7
      %v1451 = vsub.s32 0, %v1450
      %v1452 = vrot.slane %v1447, %v1451
      %v1458 = vunpack.c.l.b16 %v1442
      %v1459 = vunpack.c.l.b16 %v1443
      %v1460 = vunpack.c.l.b16 %v1444
      %v1461 = vunpack.c.l.b16 %v1445
      %v1462 = vpack.c.b16 %v1459, %v1458
      %v1463 = vpack.c.b16 %v1461, %v1460
      %1466 = vmatprep.subr.bf16.mxu0 0
      %1467 = vmatpush1.bf16.msra.mxu0 0
      %1468 = vmatprep.subr.bf16.mxu0 0
      %1469 = vmatpush1.bf16.msra.mxu0 0
      %1470 = vmatprep.subr.bf16.mxu0 0
      %1471 = vmatpush1.bf16.msra.mxu0 0
      %1472 = vmatprep.subr.bf16.mxu0 0
      %1473 = vmatpush1.bf16.msra.mxu0 0
      %1474 = vmatprep.subr.bf16.mxu0 0
      %1475 = vmatpush1.bf16.msra.mxu0 0
      %1476 = vmatprep.subr.bf16.mxu0 0
      %1477 = vmatpush1.bf16.msra.mxu0 0
      %1478 = vmatprep.subr.bf16.mxu0 0
      %1479 = vmatpush1.bf16.msra.mxu0 %v1463
      %1480 = vmatprep.subr.bf16.mxu0 0
      %1481 = vmatpush1.bf16.msra.mxu0 %v1462
      %1482 = vmatprep.subr.bf16.mxu0 0
      %1483 = vmatpush2.bf16.msra.mxu0 0
      %1484 = vmatprep.subr.bf16.mxu0 0
      %1485 = vmatpush2.bf16.msra.mxu0 0
      %1486 = vmatprep.subr.bf16.mxu0 0
      %1487 = vmatpush2.bf16.msra.mxu0 0
      %1488 = vmatprep.subr.bf16.mxu0 0
      %1489 = vmatpush2.bf16.msra.mxu0 0
      %1490 = vmatprep.subr.bf16.mxu0 0
      %1491 = vmatpush2.bf16.msra.mxu0 0
      %1492 = vmatprep.subr.bf16.mxu0 0
      %1493 = vmatpush2.bf16.msra.mxu0 0
      %1494 = vmatprep.subr.bf16.mxu0 0
      %1495 = vmatpush2.bf16.msra.mxu0 0
      %1496 = vmatprep.subr.bf16.mxu0 0
      %1497 = vmatpush2.bf16.msra.mxu0 0
      %1498 = vmatprep.mubr.bf16.mxu0 0
      %1499 = vmatmul.mubr.bf16.gmra.mxu0 %v410
      %v1500 = vpop.f32.mrf.mxu0
      %v1501 = vadd.f32 %v1452, %v1500
      %v1502 = vpop.f32.mrf.mxu0
      %v1503 = vpop.f32.mrf.mxu0
      %v1504 = vpop.f32.mrf.mxu0
      %1505 = vdwg.mxu0
      %s1506 = scalar_lea.vmem %s2, 48
      %v1507 = vld [vmem:[%s1506] sm:$0xf]
      %v1508 = vld [vmem:[%s1506 + $0x4] sm:$0xf]
      %v1509 = vld [vmem:[%s1506 + $0x8] sm:$0xf]
      %v1510 = vld [vmem:[%s1506 + $0xc] sm:$0xf]
      %s1511 = scalar_lea.vmem %s5, 3
      %v1512 = vld [vmem:[%s1511] sm:$0x1]
      %v1514 = vlaneseq
      %v1515 = vshrl.u32 %v1514, 7
      %v1516 = vsub.s32 0, %v1515
      %v1517 = vrot.slane %v1512, %v1516
      %v1523 = vunpack.c.l.b16 %v1507
      %v1524 = vunpack.c.l.b16 %v1508
      %v1525 = vunpack.c.l.b16 %v1509
      %v1526 = vunpack.c.l.b16 %v1510
      %v1527 = vpack.c.b16 %v1524, %v1523
      %v1528 = vpack.c.b16 %v1526, %v1525
      %1531 = vmatprep.subr.bf16.mxu0 0
      %1532 = vmatpush1.bf16.msra.mxu0 0
      %1533 = vmatprep.subr.bf16.mxu0 0
      %1534 = vmatpush1.bf16.msra.mxu0 0
      %1535 = vmatprep.subr.bf16.mxu0 0
      %1536 = vmatpush1.bf16.msra.mxu0 0
      %1537 = vmatprep.subr.bf16.mxu0 0
      %1538 = vmatpush1.bf16.msra.mxu0 0
      %1539 = vmatprep.subr.bf16.mxu0 0
      %1540 = vmatpush1.bf16.msra.mxu0 0
      %1541 = vmatprep.subr.bf16.mxu0 0
      %1542 = vmatpush1.bf16.msra.mxu0 0
      %1543 = vmatprep.subr.bf16.mxu0 0
      %1544 = vmatpush1.bf16.msra.mxu0 %v1528
      %1545 = vmatprep.subr.bf16.mxu0 0
      %1546 = vmatpush1.bf16.msra.mxu0 %v1527
      %1547 = vmatprep.subr.bf16.mxu0 0
      %1548 = vmatpush2.bf16.msra.mxu0 0
      %1549 = vmatprep.subr.bf16.mxu0 0
      %1550 = vmatpush2.bf16.msra.mxu0 0
      %1551 = vmatprep.subr.bf16.mxu0 0
      %1552 = vmatpush2.bf16.msra.mxu0 0
      %1553 = vmatprep.subr.bf16.mxu0 0
      %1554 = vmatpush2.bf16.msra.mxu0 0
      %1555 = vmatprep.subr.bf16.mxu0 0
      %1556 = vmatpush2.bf16.msra.mxu0 0
      %1557 = vmatprep.subr.bf16.mxu0 0
      %1558 = vmatpush2.bf16.msra.mxu0 0
      %1559 = vmatprep.subr.bf16.mxu0 0
      %1560 = vmatpush2.bf16.msra.mxu0 0
      %1561 = vmatprep.subr.bf16.mxu0 0
      %1562 = vmatpush2.bf16.msra.mxu0 0
      %1563 = vmatprep.mubr.bf16.mxu0 0
      %1564 = vmatmul.mubr.bf16.gmra.mxu0 %v410
      %v1565 = vpop.f32.mrf.mxu0
      %v1566 = vadd.f32 %v1517, %v1565
      %v1567 = vpop.f32.mrf.mxu0
      %v1568 = vpop.f32.mrf.mxu0
      %v1569 = vpop.f32.mrf.mxu0
      %1570 = vdwg.mxu0
      %s1571 = scalar_lea.vmem %s3, 48
      %v1572 = vld [vmem:[%s1571] sm:$0xf]
      %v1573 = vld [vmem:[%s1571 + $0x4] sm:$0xf]
      %v1574 = vld [vmem:[%s1571 + $0x8] sm:$0xf]
      %v1575 = vld [vmem:[%s1571 + $0xc] sm:$0xf]
      %s1576 = scalar_lea.vmem %s6, 3
      %v1577 = vld [vmem:[%s1576] sm:$0x1]
      %v1579 = vlaneseq
      %v1580 = vshrl.u32 %v1579, 7
      %v1581 = vsub.s32 0, %v1580
      %v1582 = vrot.slane %v1577, %v1581
      %v1588 = vunpack.c.l.b16 %v1572
      %v1589 = vunpack.c.l.b16 %v1573
      %v1590 = vunpack.c.l.b16 %v1574
      %v1591 = vunpack.c.l.b16 %v1575
      %v1592 = vpack.c.b16 %v1589, %v1588
      %v1593 = vpack.c.b16 %v1591, %v1590
      %1596 = vmatprep.subr.bf16.mxu0 0
      %1597 = vmatpush1.bf16.msra.mxu0 0
      %1598 = vmatprep.subr.bf16.mxu0 0
      %1599 = vmatpush1.bf16.msra.mxu0 0
      %1600 = vmatprep.subr.bf16.mxu0 0
      %1601 = vmatpush1.bf16.msra.mxu0 0
      %1602 = vmatprep.subr.bf16.mxu0 0
      %1603 = vmatpush1.bf16.msra.mxu0 0
      %1604 = vmatprep.subr.bf16.mxu0 0
      %1605 = vmatpush1.bf16.msra.mxu0 0
      %1606 = vmatprep.subr.bf16.mxu0 0
      %1607 = vmatpush1.bf16.msra.mxu0 0
      %1608 = vmatprep.subr.bf16.mxu0 0
      %1609 = vmatpush1.bf16.msra.mxu0 %v1593
      %1610 = vmatprep.subr.bf16.mxu0 0
      %1611 = vmatpush1.bf16.msra.mxu0 %v1592
      %1612 = vmatprep.subr.bf16.mxu0 0
      %1613 = vmatpush2.bf16.msra.mxu0 0
      %1614 = vmatprep.subr.bf16.mxu0 0
      %1615 = vmatpush2.bf16.msra.mxu0 0
      %1616 = vmatprep.subr.bf16.mxu0 0
      %1617 = vmatpush2.bf16.msra.mxu0 0
      %1618 = vmatprep.subr.bf16.mxu0 0
      %1619 = vmatpush2.bf16.msra.mxu0 0
      %1620 = vmatprep.subr.bf16.mxu0 0
      %1621 = vmatpush2.bf16.msra.mxu0 0
      %1622 = vmatprep.subr.bf16.mxu0 0
      %1623 = vmatpush2.bf16.msra.mxu0 0
      %1624 = vmatprep.subr.bf16.mxu0 0
      %1625 = vmatpush2.bf16.msra.mxu0 0
      %1626 = vmatprep.subr.bf16.mxu0 0
      %1627 = vmatpush2.bf16.msra.mxu0 0
      %1628 = vmatprep.mubr.bf16.mxu0 0
      %1629 = vmatmul.mubr.bf16.gmra.mxu0 %v410
      %v1630 = vpop.f32.mrf.mxu0
      %v1631 = vadd.f32 %v1582, %v1630
      %v1632 = vpop.f32.mrf.mxu0
      %v1633 = vpop.f32.mrf.mxu0
      %v1634 = vpop.f32.mrf.mxu0
      %1635 = vdwg.mxu0
      %v1636 = vpack.c.bf16 %v1501, %v1501
      %v1637 = vpack.c.bf16 %v1566, %v1566
      %v1639 = vsel %vm580, %v1636, 0
      %v1642 = vsel %vm580, %v1637, 0
      %1644 = vmatprep.subr.bf16.mxu0 0
      %1645 = vmatpush1.bf16.xpose.msra.mxu0 0
      %1646 = vmatprep.subr.bf16.mxu0 0
      %1647 = vmatpush1.bf16.xpose.msra.mxu0 0
      %1648 = vmatprep.subr.bf16.mxu0 0
      %1649 = vmatpush1.bf16.xpose.msra.mxu0 0
      %1650 = vmatprep.subr.bf16.mxu0 0
      %1651 = vmatpush1.bf16.xpose.msra.mxu0 0
      %1652 = vmatprep.subr.bf16.mxu0 0
      %1653 = vmatpush1.bf16.xpose.msra.mxu0 0
      %1654 = vmatprep.subr.bf16.mxu0 0
      %1655 = vmatpush1.bf16.xpose.msra.mxu0 0
      %1656 = vmatprep.subr.bf16.mxu0 0
      %1657 = vmatpush1.bf16.xpose.msra.mxu0 0
      %1658 = vmatprep.subr.bf16.mxu0 0
      %1659 = vmatpush1.bf16.xpose.msra.mxu0 %v1642
      %1660 = vmatprep.subr.bf16.mxu0 0
      %1661 = vmatpush2.bf16.xpose.msra.mxu0 0
      %1662 = vmatprep.subr.bf16.mxu0 0
      %1663 = vmatpush2.bf16.xpose.msra.mxu0 0
      %1664 = vmatprep.subr.bf16.mxu0 0
      %1665 = vmatpush2.bf16.xpose.msra.mxu0 0
      %1666 = vmatprep.subr.bf16.mxu0 0
      %1667 = vmatpush2.bf16.xpose.msra.mxu0 0
      %1668 = vmatprep.subr.bf16.mxu0 0
      %1669 = vmatpush2.bf16.xpose.msra.mxu0 0
      %1670 = vmatprep.subr.bf16.mxu0 0
      %1671 = vmatpush2.bf16.xpose.msra.mxu0 0
      %1672 = vmatprep.subr.bf16.mxu0 0
      %1673 = vmatpush2.bf16.xpose.msra.mxu0 0
      %1674 = vmatprep.subr.bf16.mxu0 0
      %1675 = vmatpush2.bf16.xpose.msra.mxu0 0
      %1676 = vmatprep.mubr.bf16.mxu0 0
      %1677 = vmatmul.mubr.bf16.gmra.mxu0 %v1639
      %v1678 = vpop.f32.mrf.mxu0
      %v1679 = vadd.f32 0.0, %v1678
      %v1680 = vpop.f32.mrf.mxu0
      %v1681 = vpop.f32.mrf.mxu0
      %v1682 = vpop.f32.mrf.mxu0
      %1683 = vdwg.mxu0
      %v1684 = vmul.f32 %v1679, 0.35355338
      %v1685 = vsel %vm580, %v1684, -inf
      %1686 = vmax.xlane.f32.xlu0 %v1685
      %v1687 = vpop.xlane.xlu0 %1686
      %v1688 = vsub.f32 %v1684, %v1687
      %v1689 = vmul.f32 %v1688, 1.442695
      %v1690 = vpow.pop %v1689
      %v1691 = vsel %vm580, %v1690, 0.0
      %1692 = vadd.xlane.f32.xlu0 %v1691
      %v1693 = vpop.xlane.xlu0 %1692
      %v1694 = vrcp.pop %v1693
      %v1695 = vmul.f32 %v1690, %v1694
      %v1696 = vpack.c.bf16 %v1695, %v1695
      %v1697 = vpack.c.bf16 %v1631, %v1631
      %v1699 = vsel %vm580, %v1696, 0
      %v1702 = vsel %vm644, %v1697, 0
      %1704 = vmatprep.subr.bf16.mxu0 0
      %1705 = vmatpush1.bf16.msra.mxu0 0
      %1706 = vmatprep.subr.bf16.mxu0 0
      %1707 = vmatpush1.bf16.msra.mxu0 0
      %1708 = vmatprep.subr.bf16.mxu0 0
      %1709 = vmatpush1.bf16.msra.mxu0 0
      %1710 = vmatprep.subr.bf16.mxu0 0
      %1711 = vmatpush1.bf16.msra.mxu0 0
      %1712 = vmatprep.subr.bf16.mxu0 0
      %1713 = vmatpush1.bf16.msra.mxu0 0
      %1714 = vmatprep.subr.bf16.mxu0 0
      %1715 = vmatpush1.bf16.msra.mxu0 0
      %1716 = vmatprep.subr.bf16.mxu0 0
      %1717 = vmatpush1.bf16.msra.mxu0 0
      %1718 = vmatprep.subr.bf16.mxu0 0
      %1719 = vmatpush1.bf16.msra.mxu0 %v1702
      %1720 = vmatprep.subr.bf16.mxu0 0
      %1721 = vmatpush2.bf16.msra.mxu0 0
      %1722 = vmatprep.subr.bf16.mxu0 0
      %1723 = vmatpush2.bf16.msra.mxu0 0
      %1724 = vmatprep.subr.bf16.mxu0 0
      %1725 = vmatpush2.bf16.msra.mxu0 0
      %1726 = vmatprep.subr.bf16.mxu0 0
      %1727 = vmatpush2.bf16.msra.mxu0 0
      %1728 = vmatprep.subr.bf16.mxu0 0
      %1729 = vmatpush2.bf16.msra.mxu0 0
      %1730 = vmatprep.subr.bf16.mxu0 0
      %1731 = vmatpush2.bf16.msra.mxu0 0
      %1732 = vmatprep.subr.bf16.mxu0 0
      %1733 = vmatpush2.bf16.msra.mxu0 0
      %1734 = vmatprep.subr.bf16.mxu0 0
      %1735 = vmatpush2.bf16.msra.mxu0 0
      %1736 = vmatprep.mubr.bf16.mxu0 0
      %1737 = vmatmul.mubr.bf16.gmra.mxu0 %v1699
      %v1738 = vpop.f32.mrf.mxu0
      %v1739 = vadd.f32 0.0, %v1738
      %v1740 = vpop.f32.mrf.mxu0
      %v1741 = vpop.f32.mrf.mxu0
      %v1742 = vpop.f32.mrf.mxu0
      %1743 = vdwg.mxu0
      %v1744 = vpack.c.bf16 %v1739, %v1739
      %s1745 = scalar_lea.vmem %s7, 12
      %v1746 = vld [vmem:[%s1745] sm:$0xf]
      %v1748 = vsel %vm580, %v1744, 0
      %v1751 = vsel %vm644, %v1746, 0
      %1753 = vmatprep.subr.bf16.mxu0 0
      %1754 = vmatpush1.bf16.msra.mxu0 0
      %1755 = vmatprep.subr.bf16.mxu0 0
      %1756 = vmatpush1.bf16.msra.mxu0 0
      %1757 = vmatprep.subr.bf16.mxu0 0
      %1758 = vmatpush1.bf16.msra.mxu0 0
      %1759 = vmatprep.subr.bf16.mxu0 0
      %1760 = vmatpush1.bf16.msra.mxu0 0
      %1761 = vmatprep.subr.bf16.mxu0 0
      %1762 = vmatpush1.bf16.msra.mxu0 0
      %1763 = vmatprep.subr.bf16.mxu0 0
      %1764 = vmatpush1.bf16.msra.mxu0 0
      %1765 = vmatprep.subr.bf16.mxu0 0
      %1766 = vmatpush1.bf16.msra.mxu0 0
      %1767 = vmatprep.subr.bf16.mxu0 0
      %1768 = vmatpush1.bf16.msra.mxu0 %v1751
      %1769 = vmatprep.subr.bf16.mxu0 0
      %1770 = vmatpush2.bf16.msra.mxu0 0
      %1771 = vmatprep.subr.bf16.mxu0 0
      %1772 = vmatpush2.bf16.msra.mxu0 0
      %1773 = vmatprep.subr.bf16.mxu0 0
      %1774 = vmatpush2.bf16.msra.mxu0 0
      %1775 = vmatprep.subr.bf16.mxu0 0
      %1776 = vmatpush2.bf16.msra.mxu0 0
      %1777 = vmatprep.subr.bf16.mxu0 0
      %1778 = vmatpush2.bf16.msra.mxu0 0
      %1779 = vmatprep.subr.bf16.mxu0 0
      %1780 = vmatpush2.bf16.msra.mxu0 0
      %1781 = vmatprep.subr.bf16.mxu0 0
      %1782 = vmatpush2.bf16.msra.mxu0 0
      %1783 = vmatprep.subr.bf16.mxu0 0
      %1784 = vmatpush2.bf16.msra.mxu0 0
      %1785 = vmatprep.mubr.bf16.mxu0 0
      %1786 = vmatmul.mubr.bf16.gmra.mxu0 %v1748
      %v1787 = vpop.f32.mrf.mxu0
      %v1788 = vadd.f32 0.0, %v1787
      %v1789 = vpop.f32.mrf.mxu0
      %v1790 = vpop.f32.mrf.mxu0
      %v1791 = vpop.f32.mrf.mxu0
      %1792 = vdwg.mxu0
      %v1793 = vadd.f32 %v1440, %v1788
      %v1794 = vld [vmem:[%s8] sm:$0x1]
      %v1796 = vlaneseq
      %v1797 = vshrl.u32 %v1796, 7
      %v1798 = vsub.s32 0, %v1797
      %v1799 = vrot.slane %v1794, %v1798
      %v1801 = vadd.f32 %v1793, %v1799
      %v1802 = vadd.f32 %v1801, %v383
      %v1803 = vsel %vm408, %v1802, 0.0
      %1804 = vadd.xlane.f32.xlu0 %v1803
      %v1805 = vpop.xlane.xlu0 %1804
      %v1806 = vrcp.pop 32.0
      %v1807 = vmul.f32 %v1805, %v1806
      %v1808 = vsub.f32 %v1802, %v1807
      %v1809 = vmul.f32 %v1808, %v1808
      %v1810 = vsel %vm408, %v1809, 0.0
      %1811 = vadd.xlane.f32.xlu0 %v1810
      %v1812 = vpop.xlane.xlu0 %1811
      %v1813 = vmul.f32 %v1812, %v1806
      %v1814 = vadd.f32 %v1813, 1e-05
      %v1815 = vrsqrt.pop %v1814
      %v1816 = vmul.f32 %v1808, %v1815
      %v1817 = vld [vmem:[%s9] sm:$0x1]
      %v1819 = vlaneseq
      %v1820 = vshrl.u32 %v1819, 7
      %v1821 = vsub.s32 0, %v1820
      %v1822 = vrot.slane %v1817, %v1821
      %v1824 = vmul.f32 %v1816, %v1822
      %v1825 = vld [vmem:[%s10] sm:$0x1]
      %v1827 = vlaneseq
      %v1828 = vshrl.u32 %v1827, 7
      %v1829 = vsub.s32 0, %v1828
      %v1830 = vrot.slane %v1825, %v1829
      %v1832 = vadd.f32 %v1824, %v1830
      %1833 = vst.msk [vmem:[%s381] sm:$0xff] %vm408, %v1832
      %p1834 = scmp.lt.s32.totalorder %s22, 1
      %s1835 = scalar_select %p1834, %s22, 1
      %s1836 = smul.addr %s1835, 8
      %s1837 = scalar_lea.vmem %s11, %s1836
      // Predicated region
      $region65: #{forward.13} parent=63 // pred_check
        %p1838 = pneg %p276
      $region66: #{forward.13} parent=63 // pred_check_branch
        %1840 = sbr.rel (%p1838) target = $region68
      $region67: #{forward.13} parent=63 // pred_region
        _
      $region68: #{forward.13} parent=63 // pred_fallthru
        _
    $region64: #{forward.13} parent=5 // pred_fallthru
      _
    %p1841 = scmp.le.s32.totalorder 2, %s17
    // Predicated region
    $region69: #{forward.13} parent=5 // pred_check
      %p1842 = pneg %p1841
    $region70: #{forward.13} parent=5 // pred_check_branch
      %1844 = sbr.rel (%p1842) target = $region72
    $region71: #{forward.13} parent=5 // pred_region
      %s1845 = ssub.s32 %s17, 2
      // Predicated region
      $region73: #{forward.13} parent=71 // pred_check
        %p1846 = pneg %p282
      $region74: #{forward.13} parent=71 // pred_check_branch
        %1848 = sbr.rel (%p1846) target = $region76
      $region75: #{forward.13} parent=71 // pred_region
        %p1849 = scmp.lt.s32.totalorder %s23, 1
        %s1850 = scalar_select %p1849, %s23, 1
        %s1851 = smul.addr %s1850, 8
        %s1852 = scalar_lea.vmem %s11, %s1851
      $region76: #{forward.13} parent=71 // pred_fallthru
        _
    $region72: #{forward.13} parent=5 // pred_fallthru
      _
  $region6: #{forward.13} parent=0 // loop_footer
    %s21 = sadd.s32 1, %s17
  $region7: #{forward.13} parent=0 // loop_footer_branch
    %16 = sbr.rel target = $region3
  $region8: #{forward.13} parent=0 // loop_exit
    _

// kernel: forward.19
$region0: #{forward.19}
  #allocation0 [shape = 'u32[]', space=smem, size = 0x4, offset = 0x4, fixed_abs, tag = 'smem constant byte address 0x4 - core index']
  #allocation1 [shape = 'u32[144,128]{1,0:T(1,128)}', space=vmem, size = 0x12000, scoped, tag = 'internal scratch']
  %s0 = inlined_call_operand.vmem [shape: f32[2,8,32], index: 0, kind: input, shape index: {}]
  %s1 = inlined_call_operand.vmem [shape: f32[2,8,32], index: 1, kind: input, shape index: {}]
  %s2 = inlined_call_operand.vmem [shape: bf16[4,32,8], index: 2, kind: input, shape index: {}]
  %s3 = inlined_call_operand.vmem [shape: bf16[4,32,8], index: 3, kind: input, shape index: {}]
  %s4 = inlined_call_operand.vmem [shape: bf16[4,32,8], index: 4, kind: input, shape index: {}]
  %s5 = inlined_call_operand.vmem [shape: f32[4,1,8], index: 5, kind: input, shape index: {}]
  %s6 = inlined_call_operand.vmem [shape: f32[4,1,8], index: 6, kind: input, shape index: {}]
  %s7 = inlined_call_operand.vmem [shape: f32[4,1,8], index: 7, kind: input, shape index: {}]
  %s8 = inlined_call_operand.vmem [shape: bf16[4,8,32], index: 8, kind: input, shape index: {}]
  %s9 = inlined_call_operand.vmem [shape: f32[1,32], index: 9, kind: input, shape index: {}]
  %s10 = inlined_call_operand.vmem [shape: f32[1,32], index: 10, kind: input, shape index: {}]
  %s11 = inlined_call_operand.vmem [shape: f32[1,32], index: 11, kind: input, shape index: {}]
  %s12 = inlined_call_operand.vmem [shape: f32[2,8,32], index: 12, kind: output, shape index: {}]
  %s13 = sld [smem:[#allocation0]]
  $region81: #{forward.19} parent=0
    _
  %s15 = ssub.s32 1, %s13
  %s16 = scalar_select 0, %s15, %s13
  loop: start=0, step=1, limit=4
  $region2: #{forward.19} parent=0 // loop_pre_header
    _
  $region3: #{forward.19} parent=0 // loop_header
    %s18 = sphi 0, %s22
    %p19 = scmp.ge.s32.totalorder %s18, 4
    %s28 = sphi 0, %s30
    %s31 = sphi 0, %s28
    %s32 = sphi 0, %s31
    %s48 = sphi 0, %s32
    %s54 = sphi 0, %s56
    %s57 = sphi 0, %s54
    %s58 = sphi 0, %s57
    %s74 = sphi 0, %s58
    %s78 = sphi 0, %s78
    %s80 = sphi 0, %s78
    %s81 = sphi 0, %s80
    %s95 = sphi 0, %s81
    %s99 = sphi 0, %s99
    %s101 = sphi 0, %s99
    %s102 = sphi 0, %s101
    %s116 = sphi 0, %s102
    %s120 = sphi 0, %s120
    %s122 = sphi 0, %s120
    %s123 = sphi 0, %s122
    %s137 = sphi 0, %s123
    %s141 = sphi 0, %s141
    %s143 = sphi 0, %s141
    %s144 = sphi 0, %s143
    %s158 = sphi 0, %s144
    %s162 = sphi 0, %s162
    %s164 = sphi 0, %s162
    %s165 = sphi 0, %s164
    %s179 = sphi 0, %s165
    %s183 = sphi 0, %s183
    %s185 = sphi 0, %s183
    %s186 = sphi 0, %s185
    %s200 = sphi 0, %s186
    %s204 = sphi 0, %s204
    %s206 = sphi 0, %s204
    %s207 = sphi 0, %s206
    %s221 = sphi 0, %s207
    %s225 = sphi 0, %s225
    %s227 = sphi 0, %s225
    %s228 = sphi 0, %s227
    %s242 = sphi 0, %s228
    %s246 = sphi 0, %s246
    %s248 = sphi 0, %s246
    %s249 = sphi 0, %s248
    %s263 = sphi 0, %s249
    %s267 = sphi 0, %s267
    %s269 = sphi 0, %s267
    %s270 = sphi 0, %s269
    %s284 = sphi 0, %s270
    %s290 = sphi 0, %s292
    %s293 = sphi 0, %s290
    %s294 = sphi 0, %s293
    %s310 = sphi 0, %s294
  $region4: #{forward.19} parent=0 // loop_header_branch
    %21 = sbr.rel (%p19) target = $region8
  $region5: #{forward.19} parent=0 // loop_body
    %s23 = ssub.s32 %s18, 1
    %s24 = ssub.s32 %s18, 2
    %s25 = sadd.s32 %s18, 1
    %s26 = ssub.s32 %s18, %s25
    %p27 = scmp.eq.s32.totalorder %s26, 0
    %s29 = sadd.s32 %s28, 1
    %s30 = scalar_select %p27, %s28, %s29
    %p33 = pneg %p27
    %p34 = scmp.eq.s32.totalorder %s18, 1
    %p35 = por %p33, %p34
    %p36 = scmp.ne.s32.totalorder %s28, %s31
    %p37 = scmp.eq.s32.totalorder %s18, 0
    %p38 = por %p36, %p37
    %p39 = scmp.ne.s32.totalorder %s28, %s31
    %p40 = scmp.eq.s32.totalorder %s23, 1
    %p41 = por %p39, %p40
    %p42 = scmp.ne.s32.totalorder %s31, %s32
    %p43 = scmp.eq.s32.totalorder %s23, 0
    %p44 = por %p42, %p43
    %p45 = scmp.ne.s32.totalorder %s31, %s32
    %p46 = scmp.eq.s32.totalorder %s24, 1
    %p47 = por %p45, %p46
    %p49 = scmp.ne.s32.totalorder %s32, %s48
    %p50 = scmp.eq.s32.totalorder %s24, 0
    %p51 = por %p49, %p50
    %s52 = ssub.s32 %s18, %s25
    %p53 = scmp.eq.s32.totalorder %s52, 0
    %s55 = sadd.s32 %s54, 1
    %s56 = scalar_select %p53, %s54, %s55
    %p59 = pneg %p53
    %p60 = scmp.eq.s32.totalorder %s18, 1
    %p61 = por %p59, %p60
    %p62 = scmp.ne.s32.totalorder %s54, %s57
    %p63 = scmp.eq.s32.totalorder %s18, 0
    %p64 = por %p62, %p63
    %p65 = scmp.ne.s32.totalorder %s54, %s57
    %p66 = scmp.eq.s32.totalorder %s23, 1
    %p67 = por %p65, %p66
    %p68 = scmp.ne.s32.totalorder %s57, %s58
    %p69 = scmp.eq.s32.totalorder %s23, 0
    %p70 = por %p68, %p69
    %p71 = scmp.ne.s32.totalorder %s57, %s58
    %p72 = scmp.eq.s32.totalorder %s24, 1
    %p73 = por %p71, %p72
    %p75 = scmp.ne.s32.totalorder %s58, %s74
    %p76 = scmp.eq.s32.totalorder %s24, 0
    %p77 = por %p75, %p76
    %s79 = sadd.s32 %s78, 1
    %p82 = scmp.eq.s32.totalorder %s18, 1
    %p83 = scmp.ne.s32.totalorder %s78, %s80
    %p84 = scmp.eq.s32.totalorder %s18, 0
    %p85 = por %p83, %p84
    %p86 = scmp.ne.s32.totalorder %s78, %s80
    %p87 = scmp.eq.s32.totalorder %s23, 1
    %p88 = por %p86, %p87
    %p89 = scmp.ne.s32.totalorder %s80, %s81
    %p90 = scmp.eq.s32.totalorder %s23, 0
    %p91 = por %p89, %p90
    %p92 = scmp.ne.s32.totalorder %s80, %s81
    %p93 = scmp.eq.s32.totalorder %s24, 1
    %p94 = por %p92, %p93
    %p96 = scmp.ne.s32.totalorder %s81, %s95
    %p97 = scmp.eq.s32.totalorder %s24, 0
    %p98 = por %p96, %p97
    %s100 = sadd.s32 %s99, 1
    %p103 = scmp.eq.s32.totalorder %s18, 1
    %p104 = scmp.ne.s32.totalorder %s99, %s101
    %p105 = scmp.eq.s32.totalorder %s18, 0
    %p106 = por %p104, %p105
    %p107 = scmp.ne.s32.totalorder %s99, %s101
    %p108 = scmp.eq.s32.totalorder %s23, 1
    %p109 = por %p107, %p108
    %p110 = scmp.ne.s32.totalorder %s101, %s102
    %p111 = scmp.eq.s32.totalorder %s23, 0
    %p112 = por %p110, %p111
    %p113 = scmp.ne.s32.totalorder %s101, %s102
    %p114 = scmp.eq.s32.totalorder %s24, 1
    %p115 = por %p113, %p114
    %p117 = scmp.ne.s32.totalorder %s102, %s116
    %p118 = scmp.eq.s32.totalorder %s24, 0
    %p119 = por %p117, %p118
    %s121 = sadd.s32 %s120, 1
    %p124 = scmp.eq.s32.totalorder %s18, 1
    %p125 = scmp.ne.s32.totalorder %s120, %s122
    %p126 = scmp.eq.s32.totalorder %s18, 0
    %p127 = por %p125, %p126
    %p128 = scmp.ne.s32.totalorder %s120, %s122
    %p129 = scmp.eq.s32.totalorder %s23, 1
    %p130 = por %p128, %p129
    %p131 = scmp.ne.s32.totalorder %s122, %s123
    %p132 = scmp.eq.s32.totalorder %s23, 0
    %p133 = por %p131, %p132
    %p134 = scmp.ne.s32.totalorder %s122, %s123
    %p135 = scmp.eq.s32.totalorder %s24, 1
    %p136 = por %p134, %p135
    %p138 = scmp.ne.s32.totalorder %s123, %s137
    %p139 = scmp.eq.s32.totalorder %s24, 0
    %p140 = por %p138, %p139
    %s142 = sadd.s32 %s141, 1
    %p145 = scmp.eq.s32.totalorder %s18, 1
    %p146 = scmp.ne.s32.totalorder %s141, %s143
    %p147 = scmp.eq.s32.totalorder %s18, 0
    %p148 = por %p146, %p147
    %p149 = scmp.ne.s32.totalorder %s141, %s143
    %p150 = scmp.eq.s32.totalorder %s23, 1
    %p151 = por %p149, %p150
    %p152 = scmp.ne.s32.totalorder %s143, %s144
    %p153 = scmp.eq.s32.totalorder %s23, 0
    %p154 = por %p152, %p153
    %p155 = scmp.ne.s32.totalorder %s143, %s144
    %p156 = scmp.eq.s32.totalorder %s24, 1
    %p157 = por %p155, %p156
    %p159 = scmp.ne.s32.totalorder %s144, %s158
    %p160 = scmp.eq.s32.totalorder %s24, 0
    %p161 = por %p159, %p160
    %s163 = sadd.s32 %s162, 1
    %p166 = scmp.eq.s32.totalorder %s18, 1
    %p167 = scmp.ne.s32.totalorder %s162, %s164
    %p168 = scmp.eq.s32.totalorder %s18, 0
    %p169 = por %p167, %p168
    %p170 = scmp.ne.s32.totalorder %s162, %s164
    %p171 = scmp.eq.s32.totalorder %s23, 1
    %p172 = por %p170, %p171
    %p173 = scmp.ne.s32.totalorder %s164, %s165
    %p174 = scmp.eq.s32.totalorder %s23, 0
    %p175 = por %p173, %p174
    %p176 = scmp.ne.s32.totalorder %s164, %s165
    %p177 = scmp.eq.s32.totalorder %s24, 1
    %p178 = por %p176, %p177
    %p180 = scmp.ne.s32.totalorder %s165, %s179
    %p181 = scmp.eq.s32.totalorder %s24, 0
    %p182 = por %p180, %p181
    %s184 = sadd.s32 %s183, 1
    %p187 = scmp.eq.s32.totalorder %s18, 1
    %p188 = scmp.ne.s32.totalorder %s183, %s185
    %p189 = scmp.eq.s32.totalorder %s18, 0
    %p190 = por %p188, %p189
    %p191 = scmp.ne.s32.totalorder %s183, %s185
    %p192 = scmp.eq.s32.totalorder %s23, 1
    %p193 = por %p191, %p192
    %p194 = scmp.ne.s32.totalorder %s185, %s186
    %p195 = scmp.eq.s32.totalorder %s23, 0
    %p196 = por %p194, %p195
    %p197 = scmp.ne.s32.totalorder %s185, %s186
    %p198 = scmp.eq.s32.totalorder %s24, 1
    %p199 = por %p197, %p198
    %p201 = scmp.ne.s32.totalorder %s186, %s200
    %p202 = scmp.eq.s32.totalorder %s24, 0
    %p203 = por %p201, %p202
    %s205 = sadd.s32 %s204, 1
    %p208 = scmp.eq.s32.totalorder %s18, 1
    %p209 = scmp.ne.s32.totalorder %s204, %s206
    %p210 = scmp.eq.s32.totalorder %s18, 0
    %p211 = por %p209, %p210
    %p212 = scmp.ne.s32.totalorder %s204, %s206
    %p213 = scmp.eq.s32.totalorder %s23, 1
    %p214 = por %p212, %p213
    %p215 = scmp.ne.s32.totalorder %s206, %s207
    %p216 = scmp.eq.s32.totalorder %s23, 0
    %p217 = por %p215, %p216
    %p218 = scmp.ne.s32.totalorder %s206, %s207
    %p219 = scmp.eq.s32.totalorder %s24, 1
    %p220 = por %p218, %p219
    %p222 = scmp.ne.s32.totalorder %s207, %s221
    %p223 = scmp.eq.s32.totalorder %s24, 0
    %p224 = por %p222, %p223
    %s226 = sadd.s32 %s225, 1
    %p229 = scmp.eq.s32.totalorder %s18, 1
    %p230 = scmp.ne.s32.totalorder %s225, %s227
    %p231 = scmp.eq.s32.totalorder %s18, 0
    %p232 = por %p230, %p231
    %p233 = scmp.ne.s32.totalorder %s225, %s227
    %p234 = scmp.eq.s32.totalorder %s23, 1
    %p235 = por %p233, %p234
    %p236 = scmp.ne.s32.totalorder %s227, %s228
    %p237 = scmp.eq.s32.totalorder %s23, 0
    %p238 = por %p236, %p237
    %p239 = scmp.ne.s32.totalorder %s227, %s228
    %p240 = scmp.eq.s32.totalorder %s24, 1
    %p241 = por %p239, %p240
    %p243 = scmp.ne.s32.totalorder %s228, %s242
    %p244 = scmp.eq.s32.totalorder %s24, 0
    %p245 = por %p243, %p244
    %s247 = sadd.s32 %s246, 1
    %p250 = scmp.eq.s32.totalorder %s18, 1
    %p251 = scmp.ne.s32.totalorder %s246, %s248
    %p252 = scmp.eq.s32.totalorder %s18, 0
    %p253 = por %p251, %p252
    %p254 = scmp.ne.s32.totalorder %s246, %s248
    %p255 = scmp.eq.s32.totalorder %s23, 1
    %p256 = por %p254, %p255
    %p257 = scmp.ne.s32.totalorder %s248, %s249
    %p258 = scmp.eq.s32.totalorder %s23, 0
    %p259 = por %p257, %p258
    %p260 = scmp.ne.s32.totalorder %s248, %s249
    %p261 = scmp.eq.s32.totalorder %s24, 1
    %p262 = por %p260, %p261
    %p264 = scmp.ne.s32.totalorder %s249, %s263
    %p265 = scmp.eq.s32.totalorder %s24, 0
    %p266 = por %p264, %p265
    %s268 = sadd.s32 %s267, 1
    %p271 = scmp.eq.s32.totalorder %s18, 1
    %p272 = scmp.ne.s32.totalorder %s267, %s269
    %p273 = scmp.eq.s32.totalorder %s18, 0
    %p274 = por %p272, %p273
    %p275 = scmp.ne.s32.totalorder %s267, %s269
    %p276 = scmp.eq.s32.totalorder %s23, 1
    %p277 = por %p275, %p276
    %p278 = scmp.ne.s32.totalorder %s269, %s270
    %p279 = scmp.eq.s32.totalorder %s23, 0
    %p280 = por %p278, %p279
    %p281 = scmp.ne.s32.totalorder %s269, %s270
    %p282 = scmp.eq.s32.totalorder %s24, 1
    %p283 = por %p281, %p282
    %p285 = scmp.ne.s32.totalorder %s270, %s284
    %p286 = scmp.eq.s32.totalorder %s24, 0
    %p287 = por %p285, %p286
    %s288 = ssub.s32 %s18, %s25
    %p289 = scmp.eq.s32.totalorder %s288, 0
    %s291 = sadd.s32 %s290, 1
    %s292 = scalar_select %p289, %s290, %s291
    %p295 = pneg %p289
    %p296 = scmp.eq.s32.totalorder %s18, 1
    %p297 = por %p295, %p296
    %p298 = scmp.ne.s32.totalorder %s290, %s293
    %p299 = scmp.eq.s32.totalorder %s18, 0
    %p300 = por %p298, %p299
    %p301 = scmp.ne.s32.totalorder %s290, %s293
    %p302 = scmp.eq.s32.totalorder %s23, 1
    %p303 = por %p301, %p302
    %p304 = scmp.ne.s32.totalorder %s293, %s294
    %p305 = scmp.eq.s32.totalorder %s23, 0
    %p306 = por %p304, %p305
    %p307 = scmp.ne.s32.totalorder %s293, %s294
    %p308 = scmp.eq.s32.totalorder %s24, 1
    %p309 = por %p307, %p308
    %p311 = scmp.ne.s32.totalorder %s294, %s310
    %p312 = scmp.eq.s32.totalorder %s24, 0
    %p313 = por %p311, %p312
    %p314 = scmp.le.s32.totalorder 1, %s18
    %p315 = scmp.lt.s32.totalorder %s18, 3
    %p316 = pnand %p314, %p315
    %p317 = pneg %p316
    // Predicated region
    $region9: #{forward.19} parent=5 // pred_check
      _
    $region10: #{forward.19} parent=5 // pred_check_branch
      %319 = sbr.rel (%p316) target = $region12
    $region11: #{forward.19} parent=5 // pred_region
      %s320 = ssub.s32 %s18, 1
      // Predicated region
      $region13: #{forward.19} parent=11 // pred_check
        %p321 = pneg %p91
      $region14: #{forward.19} parent=11 // pred_check_branch
        %323 = sbr.rel (%p321) target = $region16
      $region15: #{forward.19} parent=11 // pred_region
        _
      $region16: #{forward.19} parent=11 // pred_fallthru
        _
      // Predicated region
      $region17: #{forward.19} parent=11 // pred_check
        %p324 = pneg %p112
      $region18: #{forward.19} parent=11 // pred_check_branch
        %326 = sbr.rel (%p324) target = $region20
      $region19: #{forward.19} parent=11 // pred_region
        _
      $region20: #{forward.19} parent=11 // pred_fallthru
        _
      // Predicated region
      $region21: #{forward.19} parent=11 // pred_check
        %p327 = pneg %p133
      $region22: #{forward.19} parent=11 // pred_check_branch
        %329 = sbr.rel (%p327) target = $region24
      $region23: #{forward.19} parent=11 // pred_region
        _
      $region24: #{forward.19} parent=11 // pred_fallthru
        _
      // Predicated region
      $region25: #{forward.19} parent=11 // pred_check
        %p330 = pneg %p154
      $region26: #{forward.19} parent=11 // pred_check_branch
        %332 = sbr.rel (%p330) target = $region28
      $region27: #{forward.19} parent=11 // pred_region
        _
      $region28: #{forward.19} parent=11 // pred_fallthru
        _
      // Predicated region
      $region29: #{forward.19} parent=11 // pred_check
        %p333 = pneg %p175
      $region30: #{forward.19} parent=11 // pred_check_branch
        %335 = sbr.rel (%p333) target = $region32
      $region31: #{forward.19} parent=11 // pred_region
        _
      $region32: #{forward.19} parent=11 // pred_fallthru
        _
      // Predicated region
      $region33: #{forward.19} parent=11 // pred_check
        %p336 = pneg %p196
      $region34: #{forward.19} parent=11 // pred_check_branch
        %338 = sbr.rel (%p336) target = $region36
      $region35: #{forward.19} parent=11 // pred_region
        _
      $region36: #{forward.19} parent=11 // pred_fallthru
        _
      // Predicated region
      $region37: #{forward.19} parent=11 // pred_check
        %p339 = pneg %p217
      $region38: #{forward.19} parent=11 // pred_check_branch
        %341 = sbr.rel (%p339) target = $region40
      $region39: #{forward.19} parent=11 // pred_region
        _
      $region40: #{forward.19} parent=11 // pred_fallthru
        _
      // Predicated region
      $region41: #{forward.19} parent=11 // pred_check
        %p342 = pneg %p238
      $region42: #{forward.19} parent=11 // pred_check_branch
        %344 = sbr.rel (%p342) target = $region44
      $region43: #{forward.19} parent=11 // pred_region
        _
      $region44: #{forward.19} parent=11 // pred_fallthru
        _
      // Predicated region
      $region45: #{forward.19} parent=11 // pred_check
        %p345 = pneg %p259
      $region46: #{forward.19} parent=11 // pred_check_branch
        %347 = sbr.rel (%p345) target = $region48
      $region47: #{forward.19} parent=11 // pred_region
        _
      $region48: #{forward.19} parent=11 // pred_fallthru
        _
      // Predicated region
      $region49: #{forward.19} parent=11 // pred_check
        %p348 = pneg %p280
      $region50: #{forward.19} parent=11 // pred_check_branch
        %350 = sbr.rel (%p348) target = $region52
      $region51: #{forward.19} parent=11 // pred_region
        _
      $region52: #{forward.19} parent=11 // pred_fallthru
        _
    $region12: #{forward.19} parent=5 // pred_fallthru
      _
    %p351 = scmp.lt.s32.totalorder %s18, 2
    // Predicated region
    $region53: #{forward.19} parent=5 // pred_check
      %p352 = pneg %p351
    $region54: #{forward.19} parent=5 // pred_check_branch
      %354 = sbr.rel (%p352) target = $region56
    $region55: #{forward.19} parent=5 // pred_region
      // Predicated region
      $region57: #{forward.19} parent=55 // pred_check
        %p355 = pneg %p38
      $region58: #{forward.19} parent=55 // pred_check_branch
        %357 = sbr.rel (%p355) target = $region60
      $region59: #{forward.19} parent=55 // pred_region
        %p358 = scmp.lt.s32.totalorder %s18, 1
        %s359 = scalar_select %p358, %s18, 1
        %s360 = smul.addr %s359, 8
        %s361 = scalar_lea.vmem %s0, %s360
      $region60: #{forward.19} parent=55 // pred_fallthru
        _
      // Predicated region
      $region61: #{forward.19} parent=55 // pred_check
        %p362 = pneg %p64
      $region62: #{forward.19} parent=55 // pred_check_branch
        %364 = sbr.rel (%p362) target = $region64
      $region63: #{forward.19} parent=55 // pred_region
        %p365 = scmp.lt.s32.totalorder %s18, 1
        %s366 = scalar_select %p365, %s18, 1
        %s367 = smul.addr %s366, 8
        %s368 = scalar_lea.vmem %s1, %s367
      $region64: #{forward.19} parent=55 // pred_fallthru
        _
    $region56: #{forward.19} parent=5 // pred_fallthru
      _
    %p369 = scmp.le.s32.totalorder 1, %s18
    %p370 = scmp.lt.s32.totalorder %s18, 3
    %p371 = pnand %p369, %p370
    %p372 = pneg %p371
    // Predicated region
    $region65: #{forward.19} parent=5 // pred_check
      _
    $region66: #{forward.19} parent=5 // pred_check_branch
      %374 = sbr.rel (%p371) target = $region68
    $region67: #{forward.19} parent=5 // pred_region
      %s375 = ssub.s32 %s18, 1
      %p376 = scmp.lt.s32.totalorder %s23, 1
      %s377 = scalar_select %p376, %s23, 1
      %s378 = smul.addr %s377, 8
      %s379 = scalar_lea.vmem %s0, %s378
      %p380 = pneg %p44
      %p381 = pneg %p41
      %p382 = scmp.lt.s32.totalorder %s23, 1
      %s383 = scalar_select %p382, %s23, 1
      %s384 = smul.addr %s383, 8
      %s385 = scalar_lea.vmem %s1, %s384
      %p386 = pneg %p70
      %p387 = pneg %p67
      %p388 = pneg %p91
      %p389 = pneg %p88
      %p390 = pneg %p112
      %p391 = pneg %p109
      %p392 = pneg %p133
      %p393 = pneg %p130
      %p394 = pneg %p154
      %p395 = pneg %p151
      %p396 = pneg %p175
      %p397 = pneg %p172
      %p398 = pneg %p196
      %p399 = pneg %p193
      %p400 = pneg %p217
      %p401 = pneg %p214
      %p402 = pneg %p238
      %p403 = pneg %p235
      %p404 = pneg %p259
      %p405 = pneg %p256
      %p406 = pneg %p280
      %p407 = pneg %p277
      %p408 = pneg %p306
      %p409 = pneg %p303
      %p410 = scmp.lt.s32.totalorder %s23, 1
      %s411 = scalar_select %p410, %s23, 1
      %s412 = smul.addr %s411, 8
      %s413 = scalar_lea.vmem %s12, %s412
      %p414 = scmp.lt.s32.totalorder %s23, 1
      %s415 = scalar_select %p414, %s23, 1
      %s416 = smul.addr %s415, 8
      %s417 = scalar_lea.vmem %s0, %s416
      %p418 = scmp.lt.s32.totalorder %s23, 1
      %s419 = scalar_select %p418, %s23, 1
      %s420 = smul.addr %s419, 8
      %s421 = scalar_lea.vmem %s1, %s420
      %p422 = scmp.lt.s32.totalorder %s23, 1
      %s423 = scalar_select %p422, %s23, 1
      %s424 = smul.addr %s423, 8
      %s425 = scalar_lea.vmem %s12, %s424
      %v427 = vld [vmem:[%s417] sm:$0xff]
      %v428 = vpack.c.bf16 %v427, %v427
      %v429 = vld [vmem:[%s421] sm:$0xff]
      %v430 = vpack.c.bf16 %v429, %v429
      %v431 = vld [vmem:[%s2] sm:$0xf]
      %v432 = vld [vmem:[%s2 + $0x4] sm:$0xf]
      %v433 = vld [vmem:[%s2 + $0x8] sm:$0xf]
      %v434 = vld [vmem:[%s2 + $0xc] sm:$0xf]
      %v435 = vld [vmem:[%s5] sm:$0x1]
      %v437 = vlaneseq
      %v438 = vshrl.u32 %v437, 7
      %v439 = vsub.s32 0, %v438
      %v440 = vrot.slane %v435, %v439
      %v446 = vunpack.c.l.b16 %v431
      %v447 = vunpack.c.l.b16 %v432
      %v448 = vunpack.c.l.b16 %v433
      %v449 = vunpack.c.l.b16 %v434
      %v450 = vpack.c.b16 %v447, %v446
      %v451 = vpack.c.b16 %v449, %v448
      %vm454 = vcmask 261120
      %v456 = vsel %vm454, %v428, 0
      %458 = vmatprep.subr.bf16.mxu0 0
      %459 = vmatpush1.bf16.msra.mxu0 0
      %460 = vmatprep.subr.bf16.mxu0 0
      %461 = vmatpush1.bf16.msra.mxu0 0
      %462 = vmatprep.subr.bf16.mxu0 0
      %463 = vmatpush1.bf16.msra.mxu0 0
      %464 = vmatprep.subr.bf16.mxu0 0
      %465 = vmatpush1.bf16.msra.mxu0 0
      %466 = vmatprep.subr.bf16.mxu0 0
      %467 = vmatpush1.bf16.msra.mxu0 0
      %468 = vmatprep.subr.bf16.mxu0 0
      %469 = vmatpush1.bf16.msra.mxu0 0
      %470 = vmatprep.subr.bf16.mxu0 0
      %471 = vmatpush1.bf16.msra.mxu0 %v451
      %472 = vmatprep.subr.bf16.mxu0 0
      %473 = vmatpush1.bf16.msra.mxu0 %v450
      %474 = vmatprep.subr.bf16.mxu0 0
      %475 = vmatpush2.bf16.msra.mxu0 0
      %476 = vmatprep.subr.bf16.mxu0 0
      %477 = vmatpush2.bf16.msra.mxu0 0
      %478 = vmatprep.subr.bf16.mxu0 0
      %479 = vmatpush2.bf16.msra.mxu0 0
      %480 = vmatprep.subr.bf16.mxu0 0
      %481 = vmatpush2.bf16.msra.mxu0 0
      %482 = vmatprep.subr.bf16.mxu0 0
      %483 = vmatpush2.bf16.msra.mxu0 0
      %484 = vmatprep.subr.bf16.mxu0 0
      %485 = vmatpush2.bf16.msra.mxu0 0
      %486 = vmatprep.subr.bf16.mxu0 0
      %487 = vmatpush2.bf16.msra.mxu0 0
      %488 = vmatprep.subr.bf16.mxu0 0
      %489 = vmatpush2.bf16.msra.mxu0 0
      %490 = vmatprep.mubr.bf16.mxu0 0
      %491 = vmatmul.mubr.bf16.gmra.mxu0 %v456
      %v492 = vpop.f32.mrf.mxu0
      %v493 = vadd.f32 %v440, %v492
      %v494 = vpop.f32.mrf.mxu0
      %v495 = vpop.f32.mrf.mxu0
      %v496 = vpop.f32.mrf.mxu0
      %497 = vdwg.mxu0
      %v498 = vld [vmem:[%s3] sm:$0xf]
      %v499 = vld [vmem:[%s3 + $0x4] sm:$0xf]
      %v500 = vld [vmem:[%s3 + $0x8] sm:$0xf]
      %v501 = vld [vmem:[%s3 + $0xc] sm:$0xf]
      %v502 = vld [vmem:[%s6] sm:$0x1]
      %v504 = vlaneseq
      %v505 = vshrl.u32 %v504, 7
      %v506 = vsub.s32 0, %v505
      %v507 = vrot.slane %v502, %v506
      %v513 = vunpack.c.l.b16 %v498
      %v514 = vunpack.c.l.b16 %v499
      %v515 = vunpack.c.l.b16 %v500
      %v516 = vunpack.c.l.b16 %v501
      %v517 = vpack.c.b16 %v514, %v513
      %v518 = vpack.c.b16 %v516, %v515
      %v522 = vsel %vm454, %v430, 0
      %524 = vmatprep.subr.bf16.mxu0 0
      %525 = vmatpush1.bf16.msra.mxu0 0
      %526 = vmatprep.subr.bf16.mxu0 0
      %527 = vmatpush1.bf16.msra.mxu0 0
      %528 = vmatprep.subr.bf16.mxu0 0
      %529 = vmatpush1.bf16.msra.mxu0 0
      %530 = vmatprep.subr.bf16.mxu0 0
      %531 = vmatpush1.bf16.msra.mxu0 0
      %532 = vmatprep.subr.bf16.mxu0 0
      %533 = vmatpush1.bf16.msra.mxu0 0
      %534 = vmatprep.subr.bf16.mxu0 0
      %535 = vmatpush1.bf16.msra.mxu0 0
      %536 = vmatprep.subr.bf16.mxu0 0
      %537 = vmatpush1.bf16.msra.mxu0 %v518
      %538 = vmatprep.subr.bf16.mxu0 0
      %539 = vmatpush1.bf16.msra.mxu0 %v517
      %540 = vmatprep.subr.bf16.mxu0 0
      %541 = vmatpush2.bf16.msra.mxu0 0
      %542 = vmatprep.subr.bf16.mxu0 0
      %543 = vmatpush2.bf16.msra.mxu0 0
      %544 = vmatprep.subr.bf16.mxu0 0
      %545 = vmatpush2.bf16.msra.mxu0 0
      %546 = vmatprep.subr.bf16.mxu0 0
      %547 = vmatpush2.bf16.msra.mxu0 0
      %548 = vmatprep.subr.bf16.mxu0 0
      %549 = vmatpush2.bf16.msra.mxu0 0
      %550 = vmatprep.subr.bf16.mxu0 0
      %551 = vmatpush2.bf16.msra.mxu0 0
      %552 = vmatprep.subr.bf16.mxu0 0
      %553 = vmatpush2.bf16.msra.mxu0 0
      %554 = vmatprep.subr.bf16.mxu0 0
      %555 = vmatpush2.bf16.msra.mxu0 0
      %556 = vmatprep.mubr.bf16.mxu0 0
      %557 = vmatmul.mubr.bf16.gmra.mxu0 %v522
      %v558 = vpop.f32.mrf.mxu0
      %v559 = vadd.f32 %v507, %v558
      %v560 = vpop.f32.mrf.mxu0
      %v561 = vpop.f32.mrf.mxu0
      %v562 = vpop.f32.mrf.mxu0
      %563 = vdwg.mxu0
      %v564 = vld [vmem:[%s4] sm:$0xf]
      %v565 = vld [vmem:[%s4 + $0x4] sm:$0xf]
      %v566 = vld [vmem:[%s4 + $0x8] sm:$0xf]
      %v567 = vld [vmem:[%s4 + $0xc] sm:$0xf]
      %v568 = vld [vmem:[%s7] sm:$0x1]
      %v570 = vlaneseq
      %v571 = vshrl.u32 %v570, 7
      %v572 = vsub.s32 0, %v571
      %v573 = vrot.slane %v568, %v572
      %v579 = vunpack.c.l.b16 %v564
      %v580 = vunpack.c.l.b16 %v565
      %v581 = vunpack.c.l.b16 %v566
      %v582 = vunpack.c.l.b16 %v567
      %v583 = vpack.c.b16 %v580, %v579
      %v584 = vpack.c.b16 %v582, %v581
      %587 = vmatprep.subr.bf16.mxu0 0
      %588 = vmatpush1.bf16.msra.mxu0 0
      %589 = vmatprep.subr.bf16.mxu0 0
      %590 = vmatpush1.bf16.msra.mxu0 0
      %591 = vmatprep.subr.bf16.mxu0 0
      %592 = vmatpush1.bf16.msra.mxu0 0
      %593 = vmatprep.subr.bf16.mxu0 0
      %594 = vmatpush1.bf16.msra.mxu0 0
      %595 = vmatprep.subr.bf16.mxu0 0
      %596 = vmatpush1.bf16.msra.mxu0 0
      %597 = vmatprep.subr.bf16.mxu0 0
      %598 = vmatpush1.bf16.msra.mxu0 0
      %599 = vmatprep.subr.bf16.mxu0 0
      %600 = vmatpush1.bf16.msra.mxu0 %v584
      %601 = vmatprep.subr.bf16.mxu0 0
      %602 = vmatpush1.bf16.msra.mxu0 %v583
      %603 = vmatprep.subr.bf16.mxu0 0
      %604 = vmatpush2.bf16.msra.mxu0 0
      %605 = vmatprep.subr.bf16.mxu0 0
      %606 = vmatpush2.bf16.msra.mxu0 0
      %607 = vmatprep.subr.bf16.mxu0 0
      %608 = vmatpush2.bf16.msra.mxu0 0
      %609 = vmatprep.subr.bf16.mxu0 0
      %610 = vmatpush2.bf16.msra.mxu0 0
      %611 = vmatprep.subr.bf16.mxu0 0
      %612 = vmatpush2.bf16.msra.mxu0 0
      %613 = vmatprep.subr.bf16.mxu0 0
      %614 = vmatpush2.bf16.msra.mxu0 0
      %615 = vmatprep.subr.bf16.mxu0 0
      %616 = vmatpush2.bf16.msra.mxu0 0
      %617 = vmatprep.subr.bf16.mxu0 0
      %618 = vmatpush2.bf16.msra.mxu0 0
      %619 = vmatprep.mubr.bf16.mxu0 0
      %620 = vmatmul.mubr.bf16.gmra.mxu0 %v522
      %v621 = vpop.f32.mrf.mxu0
      %v622 = vadd.f32 %v573, %v621
      %v623 = vpop.f32.mrf.mxu0
      %v624 = vpop.f32.mrf.mxu0
      %v625 = vpop.f32.mrf.mxu0
      %626 = vdwg.mxu0
      %v627 = vpack.c.bf16 %v493, %v493
      %v628 = vpack.c.bf16 %v559, %v559
      %vm629 = vcmask 64512
      %v631 = vsel %vm629, %v627, 0
      %v634 = vsel %vm629, %v628, 0
      %636 = vmatprep.subr.bf16.mxu0 0
      %637 = vmatpush1.bf16.xpose.msra.mxu0 0
      %638 = vmatprep.subr.bf16.mxu0 0
      %639 = vmatpush1.bf16.xpose.msra.mxu0 0
      %640 = vmatprep.subr.bf16.mxu0 0
      %641 = vmatpush1.bf16.xpose.msra.mxu0 0
      %642 = vmatprep.subr.bf16.mxu0 0
      %643 = vmatpush1.bf16.xpose.msra.mxu0 0
      %644 = vmatprep.subr.bf16.mxu0 0
      %645 = vmatpush1.bf16.xpose.msra.mxu0 0
      %646 = vmatprep.subr.bf16.mxu0 0
      %647 = vmatpush1.bf16.xpose.msra.mxu0 0
      %648 = vmatprep.subr.bf16.mxu0 0
      %649 = vmatpush1.bf16.xpose.msra.mxu0 0
      %650 = vmatprep.subr.bf16.mxu0 0
      %651 = vmatpush1.bf16.xpose.msra.mxu0 %v634
      %652 = vmatprep.subr.bf16.mxu0 0
      %653 = vmatpush2.bf16.xpose.msra.mxu0 0
      %654 = vmatprep.subr.bf16.mxu0 0
      %655 = vmatpush2.bf16.xpose.msra.mxu0 0
      %656 = vmatprep.subr.bf16.mxu0 0
      %657 = vmatpush2.bf16.xpose.msra.mxu0 0
      %658 = vmatprep.subr.bf16.mxu0 0
      %659 = vmatpush2.bf16.xpose.msra.mxu0 0
      %660 = vmatprep.subr.bf16.mxu0 0
      %661 = vmatpush2.bf16.xpose.msra.mxu0 0
      %662 = vmatprep.subr.bf16.mxu0 0
      %663 = vmatpush2.bf16.xpose.msra.mxu0 0
      %664 = vmatprep.subr.bf16.mxu0 0
      %665 = vmatpush2.bf16.xpose.msra.mxu0 0
      %666 = vmatprep.subr.bf16.mxu0 0
      %667 = vmatpush2.bf16.xpose.msra.mxu0 0
      %668 = vmatprep.mubr.bf16.mxu0 0
      %669 = vmatmul.mubr.bf16.gmra.mxu0 %v631
      %v670 = vpop.f32.mrf.mxu0
      %v671 = vadd.f32 0.0, %v670
      %v672 = vpop.f32.mrf.mxu0
      %v673 = vpop.f32.mrf.mxu0
      %v674 = vpop.f32.mrf.mxu0
      %675 = vdwg.mxu0
      %v676 = vmul.f32 %v671, 0.35355338
      %v677 = vsel %vm629, %v676, -inf
      %678 = vmax.xlane.f32.xlu0 %v677
      %v679 = vpop.xlane.xlu0 %678
      %v680 = vsub.f32 %v676, %v679
      %v681 = vmul.f32 %v680, 1.442695
      %v682 = vpow.pop %v681
      %v683 = vsel %vm629, %v682, 0.0
      %684 = vadd.xlane.f32.xlu0 %v683
      %v685 = vpop.xlane.xlu0 %684
      %v686 = vrcp.pop %v685
      %v687 = vmul.f32 %v682, %v686
      %v688 = vpack.c.bf16 %v687, %v687
      %v689 = vpack.c.bf16 %v622, %v622
      %v691 = vsel %vm629, %v688, 0
      %vm693 = vcmask 1043456
      %v695 = vsel %vm693, %v689, 0
      %697 = vmatprep.subr.bf16.mxu0 0
      %698 = vmatpush1.bf16.msra.mxu0 0
      %699 = vmatprep.subr.bf16.mxu0 0
      %700 = vmatpush1.bf16.msra.mxu0 0
      %701 = vmatprep.subr.bf16.mxu0 0
      %702 = vmatpush1.bf16.msra.mxu0 0
      %703 = vmatprep.subr.bf16.mxu0 0
      %704 = vmatpush1.bf16.msra.mxu0 0
      %705 = vmatprep.subr.bf16.mxu0 0
      %706 = vmatpush1.bf16.msra.mxu0 0
      %707 = vmatprep.subr.bf16.mxu0 0
      %708 = vmatpush1.bf16.msra.mxu0 0
      %709 = vmatprep.subr.bf16.mxu0 0
      %710 = vmatpush1.bf16.msra.mxu0 0
      %711 = vmatprep.subr.bf16.mxu0 0
      %712 = vmatpush1.bf16.msra.mxu0 %v695
      %713 = vmatprep.subr.bf16.mxu0 0
      %714 = vmatpush2.bf16.msra.mxu0 0
      %715 = vmatprep.subr.bf16.mxu0 0
      %716 = vmatpush2.bf16.msra.mxu0 0
      %717 = vmatprep.subr.bf16.mxu0 0
      %718 = vmatpush2.bf16.msra.mxu0 0
      %719 = vmatprep.subr.bf16.mxu0 0
      %720 = vmatpush2.bf16.msra.mxu0 0
      %721 = vmatprep.subr.bf16.mxu0 0
      %722 = vmatpush2.bf16.msra.mxu0 0
      %723 = vmatprep.subr.bf16.mxu0 0
      %724 = vmatpush2.bf16.msra.mxu0 0
      %725 = vmatprep.subr.bf16.mxu0 0
      %726 = vmatpush2.bf16.msra.mxu0 0
      %727 = vmatprep.subr.bf16.mxu0 0
      %728 = vmatpush2.bf16.msra.mxu0 0
      %729 = vmatprep.mubr.bf16.mxu0 0
      %730 = vmatmul.mubr.bf16.gmra.mxu0 %v691
      %v731 = vpop.f32.mrf.mxu0
      %v732 = vadd.f32 0.0, %v731
      %v733 = vpop.f32.mrf.mxu0
      %v734 = vpop.f32.mrf.mxu0
      %v735 = vpop.f32.mrf.mxu0
      %736 = vdwg.mxu0
      %v737 = vpack.c.bf16 %v732, %v732
      %v738 = vld [vmem:[%s8] sm:$0xf]
      %s739 = scalar_lea.vmem %s2, 16
      %v740 = vld [vmem:[%s739] sm:$0xf]
      %v741 = vld [vmem:[%s739 + $0x4] sm:$0xf]
      %v742 = vld [vmem:[%s739 + $0x8] sm:$0xf]
      %v743 = vld [vmem:[%s739 + $0xc] sm:$0xf]
      %s744 = scalar_lea.vmem %s5, 1
      %v745 = vld [vmem:[%s744] sm:$0x1]
      %v747 = vlaneseq
      %v748 = vshrl.u32 %v747, 7
      %v749 = vsub.s32 0, %v748
      %v750 = vrot.slane %v745, %v749
      %v756 = vunpack.c.l.b16 %v740
      %v757 = vunpack.c.l.b16 %v741
      %v758 = vunpack.c.l.b16 %v742
      %v759 = vunpack.c.l.b16 %v743
      %v760 = vpack.c.b16 %v757, %v756
      %v761 = vpack.c.b16 %v759, %v758
      %764 = vmatprep.subr.bf16.mxu0 0
      %765 = vmatpush1.bf16.msra.mxu0 0
      %766 = vmatprep.subr.bf16.mxu0 0
      %767 = vmatpush1.bf16.msra.mxu0 0
      %768 = vmatprep.subr.bf16.mxu0 0
      %769 = vmatpush1.bf16.msra.mxu0 0
      %770 = vmatprep.subr.bf16.mxu0 0
      %771 = vmatpush1.bf16.msra.mxu0 0
      %772 = vmatprep.subr.bf16.mxu0 0
      %773 = vmatpush1.bf16.msra.mxu0 0
      %774 = vmatprep.subr.bf16.mxu0 0
      %775 = vmatpush1.bf16.msra.mxu0 0
      %776 = vmatprep.subr.bf16.mxu0 0
      %777 = vmatpush1.bf16.msra.mxu0 %v761
      %778 = vmatprep.subr.bf16.mxu0 0
      %779 = vmatpush1.bf16.msra.mxu0 %v760
      %780 = vmatprep.subr.bf16.mxu0 0
      %781 = vmatpush2.bf16.msra.mxu0 0
      %782 = vmatprep.subr.bf16.mxu0 0
      %783 = vmatpush2.bf16.msra.mxu0 0
      %784 = vmatprep.subr.bf16.mxu0 0
      %785 = vmatpush2.bf16.msra.mxu0 0
      %786 = vmatprep.subr.bf16.mxu0 0
      %787 = vmatpush2.bf16.msra.mxu0 0
      %788 = vmatprep.subr.bf16.mxu0 0
      %789 = vmatpush2.bf16.msra.mxu0 0
      %790 = vmatprep.subr.bf16.mxu0 0
      %791 = vmatpush2.bf16.msra.mxu0 0
      %792 = vmatprep.subr.bf16.mxu0 0
      %793 = vmatpush2.bf16.msra.mxu0 0
      %794 = vmatprep.subr.bf16.mxu0 0
      %795 = vmatpush2.bf16.msra.mxu0 0
      %796 = vmatprep.mubr.bf16.mxu0 0
      %797 = vmatmul.mubr.bf16.gmra.mxu0 %v456
      %v798 = vpop.f32.mrf.mxu0
      %v799 = vadd.f32 %v750, %v798
      %v800 = vpop.f32.mrf.mxu0
      %v801 = vpop.f32.mrf.mxu0
      %v802 = vpop.f32.mrf.mxu0
      %803 = vdwg.mxu0
      %s804 = scalar_lea.vmem %s3, 16
      %v805 = vld [vmem:[%s804] sm:$0xf]
      %v806 = vld [vmem:[%s804 + $0x4] sm:$0xf]
      %v807 = vld [vmem:[%s804 + $0x8] sm:$0xf]
      %v808 = vld [vmem:[%s804 + $0xc] sm:$0xf]
      %s809 = scalar_lea.vmem %s6, 1
      %v810 = vld [vmem:[%s809] sm:$0x1]
      %v812 = vlaneseq
      %v813 = vshrl.u32 %v812, 7
      %v814 = vsub.s32 0, %v813
      %v815 = vrot.slane %v810, %v814
      %v821 = vunpack.c.l.b16 %v805
      %v822 = vunpack.c.l.b16 %v806
      %v823 = vunpack.c.l.b16 %v807
      %v824 = vunpack.c.l.b16 %v808
      %v825 = vpack.c.b16 %v822, %v821
      %v826 = vpack.c.b16 %v824, %v823
      %829 = vmatprep.subr.bf16.mxu0 0
      %830 = vmatpush1.bf16.msra.mxu0 0
      %831 = vmatprep.subr.bf16.mxu0 0
      %832 = vmatpush1.bf16.msra.mxu0 0
      %833 = vmatprep.subr.bf16.mxu0 0
      %834 = vmatpush1.bf16.msra.mxu0 0
      %835 = vmatprep.subr.bf16.mxu0 0
      %836 = vmatpush1.bf16.msra.mxu0 0
      %837 = vmatprep.subr.bf16.mxu0 0
      %838 = vmatpush1.bf16.msra.mxu0 0
      %839 = vmatprep.subr.bf16.mxu0 0
      %840 = vmatpush1.bf16.msra.mxu0 0
      %841 = vmatprep.subr.bf16.mxu0 0
      %842 = vmatpush1.bf16.msra.mxu0 %v826
      %843 = vmatprep.subr.bf16.mxu0 0
      %844 = vmatpush1.bf16.msra.mxu0 %v825
      %845 = vmatprep.subr.bf16.mxu0 0
      %846 = vmatpush2.bf16.msra.mxu0 0
      %847 = vmatprep.subr.bf16.mxu0 0
      %848 = vmatpush2.bf16.msra.mxu0 0
      %849 = vmatprep.subr.bf16.mxu0 0
      %850 = vmatpush2.bf16.msra.mxu0 0
      %851 = vmatprep.subr.bf16.mxu0 0
      %852 = vmatpush2.bf16.msra.mxu0 0
      %853 = vmatprep.subr.bf16.mxu0 0
      %854 = vmatpush2.bf16.msra.mxu0 0
      %855 = vmatprep.subr.bf16.mxu0 0
      %856 = vmatpush2.bf16.msra.mxu0 0
      %857 = vmatprep.subr.bf16.mxu0 0
      %858 = vmatpush2.bf16.msra.mxu0 0
      %859 = vmatprep.subr.bf16.mxu0 0
      %860 = vmatpush2.bf16.msra.mxu0 0
      %861 = vmatprep.mubr.bf16.mxu0 0
      %862 = vmatmul.mubr.bf16.gmra.mxu0 %v522
      %v863 = vpop.f32.mrf.mxu0
      %v864 = vadd.f32 %v815, %v863
      %v865 = vpop.f32.mrf.mxu0
      %v866 = vpop.f32.mrf.mxu0
      %v867 = vpop.f32.mrf.mxu0
      %868 = vdwg.mxu0
      %s869 = scalar_lea.vmem %s4, 16
      %v870 = vld [vmem:[%s869] sm:$0xf]
      %v871 = vld [vmem:[%s869 + $0x4] sm:$0xf]
      %v872 = vld [vmem:[%s869 + $0x8] sm:$0xf]
      %v873 = vld [vmem:[%s869 + $0xc] sm:$0xf]
      %s874 = scalar_lea.vmem %s7, 1
      %v875 = vld [vmem:[%s874] sm:$0x1]
      %v877 = vlaneseq
      %v878 = vshrl.u32 %v877, 7
      %v879 = vsub.s32 0, %v878
      %v880 = vrot.slane %v875, %v879
      %v886 = vunpack.c.l.b16 %v870
      %v887 = vunpack.c.l.b16 %v871
      %v888 = vunpack.c.l.b16 %v872
      %v889 = vunpack.c.l.b16 %v873
      %v890 = vpack.c.b16 %v887, %v886
      %v891 = vpack.c.b16 %v889, %v888
      %894 = vmatprep.subr.bf16.mxu0 0
      %895 = vmatpush1.bf16.msra.mxu0 0
      %896 = vmatprep.subr.bf16.mxu0 0
      %897 = vmatpush1.bf16.msra.mxu0 0
      %898 = vmatprep.subr.bf16.mxu0 0
      %899 = vmatpush1.bf16.msra.mxu0 0
      %900 = vmatprep.subr.bf16.mxu0 0
      %901 = vmatpush1.bf16.msra.mxu0 0
      %902 = vmatprep.subr.bf16.mxu0 0
      %903 = vmatpush1.bf16.msra.mxu0 0
      %904 = vmatprep.subr.bf16.mxu0 0
      %905 = vmatpush1.bf16.msra.mxu0 0
      %906 = vmatprep.subr.bf16.mxu0 0
      %907 = vmatpush1.bf16.msra.mxu0 %v891
      %908 = vmatprep.subr.bf16.mxu0 0
      %909 = vmatpush1.bf16.msra.mxu0 %v890
      %910 = vmatprep.subr.bf16.mxu0 0
      %911 = vmatpush2.bf16.msra.mxu0 0
      %912 = vmatprep.subr.bf16.mxu0 0
      %913 = vmatpush2.bf16.msra.mxu0 0
      %914 = vmatprep.subr.bf16.mxu0 0
      %915 = vmatpush2.bf16.msra.mxu0 0
      %916 = vmatprep.subr.bf16.mxu0 0
      %917 = vmatpush2.bf16.msra.mxu0 0
      %918 = vmatprep.subr.bf16.mxu0 0
      %919 = vmatpush2.bf16.msra.mxu0 0
      %920 = vmatprep.subr.bf16.mxu0 0
      %921 = vmatpush2.bf16.msra.mxu0 0
      %922 = vmatprep.subr.bf16.mxu0 0
      %923 = vmatpush2.bf16.msra.mxu0 0
      %924 = vmatprep.subr.bf16.mxu0 0
      %925 = vmatpush2.bf16.msra.mxu0 0
      %926 = vmatprep.mubr.bf16.mxu0 0
      %927 = vmatmul.mubr.bf16.gmra.mxu0 %v522
      %v928 = vpop.f32.mrf.mxu0
      %v929 = vadd.f32 %v880, %v928
      %v930 = vpop.f32.mrf.mxu0
      %v931 = vpop.f32.mrf.mxu0
      %v932 = vpop.f32.mrf.mxu0
      %933 = vdwg.mxu0
      %v934 = vpack.c.bf16 %v799, %v799
      %v935 = vpack.c.bf16 %v864, %v864
      %v937 = vsel %vm629, %v934, 0
      %v940 = vsel %vm629, %v935, 0
      %942 = vmatprep.subr.bf16.mxu0 0
      %943 = vmatpush1.bf16.xpose.msra.mxu0 0
      %944 = vmatprep.subr.bf16.mxu0 0
      %945 = vmatpush1.bf16.xpose.msra.mxu0 0
      %946 = vmatprep.subr.bf16.mxu0 0
      %947 = vmatpush1.bf16.xpose.msra.mxu0 0
      %948 = vmatprep.subr.bf16.mxu0 0
      %949 = vmatpush1.bf16.xpose.msra.mxu0 0
      %950 = vmatprep.subr.bf16.mxu0 0
      %951 = vmatpush1.bf16.xpose.msra.mxu0 0
      %952 = vmatprep.subr.bf16.mxu0 0
      %953 = vmatpush1.bf16.xpose.msra.mxu0 0
      %954 = vmatprep.subr.bf16.mxu0 0
      %955 = vmatpush1.bf16.xpose.msra.mxu0 0
      %956 = vmatprep.subr.bf16.mxu0 0
      %957 = vmatpush1.bf16.xpose.msra.mxu0 %v940
      %958 = vmatprep.subr.bf16.mxu0 0
      %959 = vmatpush2.bf16.xpose.msra.mxu0 0
      %960 = vmatprep.subr.bf16.mxu0 0
      %961 = vmatpush2.bf16.xpose.msra.mxu0 0
      %962 = vmatprep.subr.bf16.mxu0 0
      %963 = vmatpush2.bf16.xpose.msra.mxu0 0
      %964 = vmatprep.subr.bf16.mxu0 0
      %965 = vmatpush2.bf16.xpose.msra.mxu0 0
      %966 = vmatprep.subr.bf16.mxu0 0
      %967 = vmatpush2.bf16.xpose.msra.mxu0 0
      %968 = vmatprep.subr.bf16.mxu0 0
      %969 = vmatpush2.bf16.xpose.msra.mxu0 0
      %970 = vmatprep.subr.bf16.mxu0 0
      %971 = vmatpush2.bf16.xpose.msra.mxu0 0
      %972 = vmatprep.subr.bf16.mxu0 0
      %973 = vmatpush2.bf16.xpose.msra.mxu0 0
      %974 = vmatprep.mubr.bf16.mxu0 0
      %975 = vmatmul.mubr.bf16.gmra.mxu0 %v937
      %v976 = vpop.f32.mrf.mxu0
      %v977 = vadd.f32 0.0, %v976
      %v978 = vpop.f32.mrf.mxu0
      %v979 = vpop.f32.mrf.mxu0
      %v980 = vpop.f32.mrf.mxu0
      %981 = vdwg.mxu0
      %v982 = vmul.f32 %v977, 0.35355338
      %v983 = vsel %vm629, %v982, -inf
      %984 = vmax.xlane.f32.xlu0 %v983
      %v985 = vpop.xlane.xlu0 %984
      %v986 = vsub.f32 %v982, %v985
      %v987 = vmul.f32 %v986, 1.442695
      %v988 = vpow.pop %v987
      %v989 = vsel %vm629, %v988, 0.0
      %990 = vadd.xlane.f32.xlu0 %v989
      %v991 = vpop.xlane.xlu0 %990
      %v992 = vrcp.pop %v991
      %v993 = vmul.f32 %v988, %v992
      %v994 = vpack.c.bf16 %v993, %v993
      %v995 = vpack.c.bf16 %v929, %v929
      %v997 = vsel %vm629, %v994, 0
      %v1000 = vsel %vm693, %v995, 0
      %1002 = vmatprep.subr.bf16.mxu0 0
      %1003 = vmatpush1.bf16.msra.mxu0 0
      %1004 = vmatprep.subr.bf16.mxu0 0
      %1005 = vmatpush1.bf16.msra.mxu0 0
      %1006 = vmatprep.subr.bf16.mxu0 0
      %1007 = vmatpush1.bf16.msra.mxu0 0
      %1008 = vmatprep.subr.bf16.mxu0 0
      %1009 = vmatpush1.bf16.msra.mxu0 0
      %1010 = vmatprep.subr.bf16.mxu0 0
      %1011 = vmatpush1.bf16.msra.mxu0 0
      %1012 = vmatprep.subr.bf16.mxu0 0
      %1013 = vmatpush1.bf16.msra.mxu0 0
      %1014 = vmatprep.subr.bf16.mxu0 0
      %1015 = vmatpush1.bf16.msra.mxu0 0
      %1016 = vmatprep.subr.bf16.mxu0 0
      %1017 = vmatpush1.bf16.msra.mxu0 %v1000
      %1018 = vmatprep.subr.bf16.mxu0 0
      %1019 = vmatpush2.bf16.msra.mxu0 0
      %1020 = vmatprep.subr.bf16.mxu0 0
      %1021 = vmatpush2.bf16.msra.mxu0 0
      %1022 = vmatprep.subr.bf16.mxu0 0
      %1023 = vmatpush2.bf16.msra.mxu0 0
      %1024 = vmatprep.subr.bf16.mxu0 0
      %1025 = vmatpush2.bf16.msra.mxu0 0
      %1026 = vmatprep.subr.bf16.mxu0 0
      %1027 = vmatpush2.bf16.msra.mxu0 0
      %1028 = vmatprep.subr.bf16.mxu0 0
      %1029 = vmatpush2.bf16.msra.mxu0 0
      %1030 = vmatprep.subr.bf16.mxu0 0
      %1031 = vmatpush2.bf16.msra.mxu0 0
      %1032 = vmatprep.subr.bf16.mxu0 0
      %1033 = vmatpush2.bf16.msra.mxu0 0
      %1034 = vmatprep.mubr.bf16.mxu0 0
      %1035 = vmatmul.mubr.bf16.gmra.mxu0 %v997
      %v1036 = vpop.f32.mrf.mxu0
      %v1037 = vadd.f32 0.0, %v1036
      %v1038 = vpop.f32.mrf.mxu0
      %v1039 = vpop.f32.mrf.mxu0
      %v1040 = vpop.f32.mrf.mxu0
      %1041 = vdwg.mxu0
      %v1042 = vpack.c.bf16 %v1037, %v1037
      %s1043 = scalar_lea.vmem %s8, 4
      %v1044 = vld [vmem:[%s1043] sm:$0xf]
      %v1046 = vsel %vm629, %v1042, 0
      %v1049 = vsel %vm693, %v1044, 0
      %1051 = vmatprep.subr.bf16.mxu0 0
      %1052 = vmatpush1.bf16.msra.mxu0 0
      %1053 = vmatprep.subr.bf16.mxu0 0
      %1054 = vmatpush1.bf16.msra.mxu0 0
      %1055 = vmatprep.subr.bf16.mxu0 0
      %1056 = vmatpush1.bf16.msra.mxu0 0
      %1057 = vmatprep.subr.bf16.mxu0 0
      %1058 = vmatpush1.bf16.msra.mxu0 0
      %1059 = vmatprep.subr.bf16.mxu0 0
      %1060 = vmatpush1.bf16.msra.mxu0 0
      %1061 = vmatprep.subr.bf16.mxu0 0
      %1062 = vmatpush1.bf16.msra.mxu0 0
      %1063 = vmatprep.subr.bf16.mxu0 0
      %1064 = vmatpush1.bf16.msra.mxu0 0
      %1065 = vmatprep.subr.bf16.mxu0 0
      %1066 = vmatpush1.bf16.msra.mxu0 %v1049
      %1067 = vmatprep.subr.bf16.mxu0 0
      %1068 = vmatpush2.bf16.msra.mxu0 0
      %1069 = vmatprep.subr.bf16.mxu0 0
      %1070 = vmatpush2.bf16.msra.mxu0 0
      %1071 = vmatprep.subr.bf16.mxu0 0
      %1072 = vmatpush2.bf16.msra.mxu0 0
      %1073 = vmatprep.subr.bf16.mxu0 0
      %1074 = vmatpush2.bf16.msra.mxu0 0
      %1075 = vmatprep.subr.bf16.mxu0 0
      %1076 = vmatpush2.bf16.msra.mxu0 0
      %1077 = vmatprep.subr.bf16.mxu0 0
      %1078 = vmatpush2.bf16.msra.mxu0 0
      %1079 = vmatprep.subr.bf16.mxu0 0
      %1080 = vmatpush2.bf16.msra.mxu0 0
      %1081 = vmatprep.subr.bf16.mxu0 0
      %1082 = vmatpush2.bf16.msra.mxu0 0
      %1083 = vmatprep.mubr.bf16.mxu0 0
      %1084 = vmatmul.mubr.bf16.gmra.mxu0 %v1046
      %v1085 = vpop.f32.mrf.mxu0
      %v1086 = vadd.f32 0.0, %v1085
      %v1087 = vpop.f32.mrf.mxu0
      %v1088 = vpop.f32.mrf.mxu0
      %v1089 = vpop.f32.mrf.mxu0
      %1090 = vdwg.mxu0
      %v1092 = vsel %vm629, %v737, 0
      %v1095 = vsel %vm693, %v738, 0
      %1097 = vmatprep.subr.bf16.mxu0 0
      %1098 = vmatpush1.bf16.msra.mxu0 0
      %1099 = vmatprep.subr.bf16.mxu0 0
      %1100 = vmatpush1.bf16.msra.mxu0 0
      %1101 = vmatprep.subr.bf16.mxu0 0
      %1102 = vmatpush1.bf16.msra.mxu0 0
      %1103 = vmatprep.subr.bf16.mxu0 0
      %1104 = vmatpush1.bf16.msra.mxu0 0
      %1105 = vmatprep.subr.bf16.mxu0 0
      %1106 = vmatpush1.bf16.msra.mxu0 0
      %1107 = vmatprep.subr.bf16.mxu0 0
      %1108 = vmatpush1.bf16.msra.mxu0 0
      %1109 = vmatprep.subr.bf16.mxu0 0
      %1110 = vmatpush1.bf16.msra.mxu0 0
      %1111 = vmatprep.subr.bf16.mxu0 0
      %1112 = vmatpush1.bf16.msra.mxu0 %v1095
      %1113 = vmatprep.subr.bf16.mxu0 0
      %1114 = vmatpush2.bf16.msra.mxu0 0
      %1115 = vmatprep.subr.bf16.mxu0 0
      %1116 = vmatpush2.bf16.msra.mxu0 0
      %1117 = vmatprep.subr.bf16.mxu0 0
      %1118 = vmatpush2.bf16.msra.mxu0 0
      %1119 = vmatprep.subr.bf16.mxu0 0
      %1120 = vmatpush2.bf16.msra.mxu0 0
      %1121 = vmatprep.subr.bf16.mxu0 0
      %1122 = vmatpush2.bf16.msra.mxu0 0
      %1123 = vmatprep.subr.bf16.mxu0 0
      %1124 = vmatpush2.bf16.msra.mxu0 0
      %1125 = vmatprep.subr.bf16.mxu0 0
      %1126 = vmatpush2.bf16.msra.mxu0 0
      %1127 = vmatprep.subr.bf16.mxu0 0
      %1128 = vmatpush2.bf16.msra.mxu0 0
      %1129 = vmatprep.mubr.bf16.mxu0 0
      %1130 = vmatmul.mubr.bf16.gmra.mxu0 %v1092
      %v1131 = vpop.f32.mrf.mxu0
      %v1132 = vadd.f32 %v1086, %v1131
      %v1133 = vpop.f32.mrf.mxu0
      %v1134 = vpop.f32.mrf.mxu0
      %v1135 = vpop.f32.mrf.mxu0
      %1136 = vdwg.mxu0
      %s1137 = scalar_lea.vmem %s2, 32
      %v1138 = vld [vmem:[%s1137] sm:$0xf]
      %v1139 = vld [vmem:[%s1137 + $0x4] sm:$0xf]
      %v1140 = vld [vmem:[%s1137 + $0x8] sm:$0xf]
      %v1141 = vld [vmem:[%s1137 + $0xc] sm:$0xf]
      %s1142 = scalar_lea.vmem %s5, 2
      %v1143 = vld [vmem:[%s1142] sm:$0x1]
      %v1145 = vlaneseq
      %v1146 = vshrl.u32 %v1145, 7
      %v1147 = vsub.s32 0, %v1146
      %v1148 = vrot.slane %v1143, %v1147
      %v1154 = vunpack.c.l.b16 %v1138
      %v1155 = vunpack.c.l.b16 %v1139
      %v1156 = vunpack.c.l.b16 %v1140
      %v1157 = vunpack.c.l.b16 %v1141
      %v1158 = vpack.c.b16 %v1155, %v1154
      %v1159 = vpack.c.b16 %v1157, %v1156
      %1162 = vmatprep.subr.bf16.mxu0 0
      %1163 = vmatpush1.bf16.msra.mxu0 0
      %1164 = vmatprep.subr.bf16.mxu0 0
      %1165 = vmatpush1.bf16.msra.mxu0 0
      %1166 = vmatprep.subr.bf16.mxu0 0
      %1167 = vmatpush1.bf16.msra.mxu0 0
      %1168 = vmatprep.subr.bf16.mxu0 0
      %1169 = vmatpush1.bf16.msra.mxu0 0
      %1170 = vmatprep.subr.bf16.mxu0 0
      %1171 = vmatpush1.bf16.msra.mxu0 0
      %1172 = vmatprep.subr.bf16.mxu0 0
      %1173 = vmatpush1.bf16.msra.mxu0 0
      %1174 = vmatprep.subr.bf16.mxu0 0
      %1175 = vmatpush1.bf16.msra.mxu0 %v1159
      %1176 = vmatprep.subr.bf16.mxu0 0
      %1177 = vmatpush1.bf16.msra.mxu0 %v1158
      %1178 = vmatprep.subr.bf16.mxu0 0
      %1179 = vmatpush2.bf16.msra.mxu0 0
      %1180 = vmatprep.subr.bf16.mxu0 0
      %1181 = vmatpush2.bf16.msra.mxu0 0
      %1182 = vmatprep.subr.bf16.mxu0 0
      %1183 = vmatpush2.bf16.msra.mxu0 0
      %1184 = vmatprep.subr.bf16.mxu0 0
      %1185 = vmatpush2.bf16.msra.mxu0 0
      %1186 = vmatprep.subr.bf16.mxu0 0
      %1187 = vmatpush2.bf16.msra.mxu0 0
      %1188 = vmatprep.subr.bf16.mxu0 0
      %1189 = vmatpush2.bf16.msra.mxu0 0
      %1190 = vmatprep.subr.bf16.mxu0 0
      %1191 = vmatpush2.bf16.msra.mxu0 0
      %1192 = vmatprep.subr.bf16.mxu0 0
      %1193 = vmatpush2.bf16.msra.mxu0 0
      %1194 = vmatprep.mubr.bf16.mxu0 0
      %1195 = vmatmul.mubr.bf16.gmra.mxu0 %v456
      %v1196 = vpop.f32.mrf.mxu0
      %v1197 = vadd.f32 %v1148, %v1196
      %v1198 = vpop.f32.mrf.mxu0
      %v1199 = vpop.f32.mrf.mxu0
      %v1200 = vpop.f32.mrf.mxu0
      %1201 = vdwg.mxu0
      %s1202 = scalar_lea.vmem %s3, 32
      %v1203 = vld [vmem:[%s1202] sm:$0xf]
      %v1204 = vld [vmem:[%s1202 + $0x4] sm:$0xf]
      %v1205 = vld [vmem:[%s1202 + $0x8] sm:$0xf]
      %v1206 = vld [vmem:[%s1202 + $0xc] sm:$0xf]
      %s1207 = scalar_lea.vmem %s6, 2
      %v1208 = vld [vmem:[%s1207] sm:$0x1]
      %v1210 = vlaneseq
      %v1211 = vshrl.u32 %v1210, 7
      %v1212 = vsub.s32 0, %v1211
      %v1213 = vrot.slane %v1208, %v1212
      %v1219 = vunpack.c.l.b16 %v1203
      %v1220 = vunpack.c.l.b16 %v1204
      %v1221 = vunpack.c.l.b16 %v1205
      %v1222 = vunpack.c.l.b16 %v1206
      %v1223 = vpack.c.b16 %v1220, %v1219
      %v1224 = vpack.c.b16 %v1222, %v1221
      %1227 = vmatprep.subr.bf16.mxu0 0
      %1228 = vmatpush1.bf16.msra.mxu0 0
      %1229 = vmatprep.subr.bf16.mxu0 0
      %1230 = vmatpush1.bf16.msra.mxu0 0
      %1231 = vmatprep.subr.bf16.mxu0 0
      %1232 = vmatpush1.bf16.msra.mxu0 0
      %1233 = vmatprep.subr.bf16.mxu0 0
      %1234 = vmatpush1.bf16.msra.mxu0 0
      %1235 = vmatprep.subr.bf16.mxu0 0
      %1236 = vmatpush1.bf16.msra.mxu0 0
      %1237 = vmatprep.subr.bf16.mxu0 0
      %1238 = vmatpush1.bf16.msra.mxu0 0
      %1239 = vmatprep.subr.bf16.mxu0 0
      %1240 = vmatpush1.bf16.msra.mxu0 %v1224
      %1241 = vmatprep.subr.bf16.mxu0 0
      %1242 = vmatpush1.bf16.msra.mxu0 %v1223
      %1243 = vmatprep.subr.bf16.mxu0 0
      %1244 = vmatpush2.bf16.msra.mxu0 0
      %1245 = vmatprep.subr.bf16.mxu0 0
      %1246 = vmatpush2.bf16.msra.mxu0 0
      %1247 = vmatprep.subr.bf16.mxu0 0
      %1248 = vmatpush2.bf16.msra.mxu0 0
      %1249 = vmatprep.subr.bf16.mxu0 0
      %1250 = vmatpush2.bf16.msra.mxu0 0
      %1251 = vmatprep.subr.bf16.mxu0 0
      %1252 = vmatpush2.bf16.msra.mxu0 0
      %1253 = vmatprep.subr.bf16.mxu0 0
      %1254 = vmatpush2.bf16.msra.mxu0 0
      %1255 = vmatprep.subr.bf16.mxu0 0
      %1256 = vmatpush2.bf16.msra.mxu0 0
      %1257 = vmatprep.subr.bf16.mxu0 0
      %1258 = vmatpush2.bf16.msra.mxu0 0
      %1259 = vmatprep.mubr.bf16.mxu0 0
      %1260 = vmatmul.mubr.bf16.gmra.mxu0 %v522
      %v1261 = vpop.f32.mrf.mxu0
      %v1262 = vadd.f32 %v1213, %v1261
      %v1263 = vpop.f32.mrf.mxu0
      %v1264 = vpop.f32.mrf.mxu0
      %v1265 = vpop.f32.mrf.mxu0
      %1266 = vdwg.mxu0
      %s1267 = scalar_lea.vmem %s4, 32
      %v1268 = vld [vmem:[%s1267] sm:$0xf]
      %v1269 = vld [vmem:[%s1267 + $0x4] sm:$0xf]
      %v1270 = vld [vmem:[%s1267 + $0x8] sm:$0xf]
      %v1271 = vld [vmem:[%s1267 + $0xc] sm:$0xf]
      %s1272 = scalar_lea.vmem %s7, 2
      %v1273 = vld [vmem:[%s1272] sm:$0x1]
      %v1275 = vlaneseq
      %v1276 = vshrl.u32 %v1275, 7
      %v1277 = vsub.s32 0, %v1276
      %v1278 = vrot.slane %v1273, %v1277
      %v1284 = vunpack.c.l.b16 %v1268
      %v1285 = vunpack.c.l.b16 %v1269
      %v1286 = vunpack.c.l.b16 %v1270
      %v1287 = vunpack.c.l.b16 %v1271
      %v1288 = vpack.c.b16 %v1285, %v1284
      %v1289 = vpack.c.b16 %v1287, %v1286
      %1292 = vmatprep.subr.bf16.mxu0 0
      %1293 = vmatpush1.bf16.msra.mxu0 0
      %1294 = vmatprep.subr.bf16.mxu0 0
      %1295 = vmatpush1.bf16.msra.mxu0 0
      %1296 = vmatprep.subr.bf16.mxu0 0
      %1297 = vmatpush1.bf16.msra.mxu0 0
      %1298 = vmatprep.subr.bf16.mxu0 0
      %1299 = vmatpush1.bf16.msra.mxu0 0
      %1300 = vmatprep.subr.bf16.mxu0 0
      %1301 = vmatpush1.bf16.msra.mxu0 0
      %1302 = vmatprep.subr.bf16.mxu0 0
      %1303 = vmatpush1.bf16.msra.mxu0 0
      %1304 = vmatprep.subr.bf16.mxu0 0
      %1305 = vmatpush1.bf16.msra.mxu0 %v1289
      %1306 = vmatprep.subr.bf16.mxu0 0
      %1307 = vmatpush1.bf16.msra.mxu0 %v1288
      %1308 = vmatprep.subr.bf16.mxu0 0
      %1309 = vmatpush2.bf16.msra.mxu0 0
      %1310 = vmatprep.subr.bf16.mxu0 0
      %1311 = vmatpush2.bf16.msra.mxu0 0
      %1312 = vmatprep.subr.bf16.mxu0 0
      %1313 = vmatpush2.bf16.msra.mxu0 0
      %1314 = vmatprep.subr.bf16.mxu0 0
      %1315 = vmatpush2.bf16.msra.mxu0 0
      %1316 = vmatprep.subr.bf16.mxu0 0
      %1317 = vmatpush2.bf16.msra.mxu0 0
      %1318 = vmatprep.subr.bf16.mxu0 0
      %1319 = vmatpush2.bf16.msra.mxu0 0
      %1320 = vmatprep.subr.bf16.mxu0 0
      %1321 = vmatpush2.bf16.msra.mxu0 0
      %1322 = vmatprep.subr.bf16.mxu0 0
      %1323 = vmatpush2.bf16.msra.mxu0 0
      %1324 = vmatprep.mubr.bf16.mxu0 0
      %1325 = vmatmul.mubr.bf16.gmra.mxu0 %v522
      %v1326 = vpop.f32.mrf.mxu0
      %v1327 = vadd.f32 %v1278, %v1326
      %v1328 = vpop.f32.mrf.mxu0
      %v1329 = vpop.f32.mrf.mxu0
      %v1330 = vpop.f32.mrf.mxu0
      %1331 = vdwg.mxu0
      %v1332 = vpack.c.bf16 %v1197, %v1197
      %v1333 = vpack.c.bf16 %v1262, %v1262
      %v1335 = vsel %vm629, %v1332, 0
      %v1338 = vsel %vm629, %v1333, 0
      %1340 = vmatprep.subr.bf16.mxu0 0
      %1341 = vmatpush1.bf16.xpose.msra.mxu0 0
      %1342 = vmatprep.subr.bf16.mxu0 0
      %1343 = vmatpush1.bf16.xpose.msra.mxu0 0
      %1344 = vmatprep.subr.bf16.mxu0 0
      %1345 = vmatpush1.bf16.xpose.msra.mxu0 0
      %1346 = vmatprep.subr.bf16.mxu0 0
      %1347 = vmatpush1.bf16.xpose.msra.mxu0 0
      %1348 = vmatprep.subr.bf16.mxu0 0
      %1349 = vmatpush1.bf16.xpose.msra.mxu0 0
      %1350 = vmatprep.subr.bf16.mxu0 0
      %1351 = vmatpush1.bf16.xpose.msra.mxu0 0
      %1352 = vmatprep.subr.bf16.mxu0 0
      %1353 = vmatpush1.bf16.xpose.msra.mxu0 0
      %1354 = vmatprep.subr.bf16.mxu0 0
      %1355 = vmatpush1.bf16.xpose.msra.mxu0 %v1338
      %1356 = vmatprep.subr.bf16.mxu0 0
      %1357 = vmatpush2.bf16.xpose.msra.mxu0 0
      %1358 = vmatprep.subr.bf16.mxu0 0
      %1359 = vmatpush2.bf16.xpose.msra.mxu0 0
      %1360 = vmatprep.subr.bf16.mxu0 0
      %1361 = vmatpush2.bf16.xpose.msra.mxu0 0
      %1362 = vmatprep.subr.bf16.mxu0 0
      %1363 = vmatpush2.bf16.xpose.msra.mxu0 0
      %1364 = vmatprep.subr.bf16.mxu0 0
      %1365 = vmatpush2.bf16.xpose.msra.mxu0 0
      %1366 = vmatprep.subr.bf16.mxu0 0
      %1367 = vmatpush2.bf16.xpose.msra.mxu0 0
      %1368 = vmatprep.subr.bf16.mxu0 0
      %1369 = vmatpush2.bf16.xpose.msra.mxu0 0
      %1370 = vmatprep.subr.bf16.mxu0 0
      %1371 = vmatpush2.bf16.xpose.msra.mxu0 0
      %1372 = vmatprep.mubr.bf16.mxu0 0
      %1373 = vmatmul.mubr.bf16.gmra.mxu0 %v1335
      %v1374 = vpop.f32.mrf.mxu0
      %v1375 = vadd.f32 0.0, %v1374
      %v1376 = vpop.f32.mrf.mxu0
      %v1377 = vpop.f32.mrf.mxu0
      %v1378 = vpop.f32.mrf.mxu0
      %1379 = vdwg.mxu0
      %v1380 = vmul.f32 %v1375, 0.35355338
      %v1381 = vsel %vm629, %v1380, -inf
      %1382 = vmax.xlane.f32.xlu0 %v1381
      %v1383 = vpop.xlane.xlu0 %1382
      %v1384 = vsub.f32 %v1380, %v1383
      %v1385 = vmul.f32 %v1384, 1.442695
      %v1386 = vpow.pop %v1385
      %v1387 = vsel %vm629, %v1386, 0.0
      %1388 = vadd.xlane.f32.xlu0 %v1387
      %v1389 = vpop.xlane.xlu0 %1388
      %v1390 = vrcp.pop %v1389
      %v1391 = vmul.f32 %v1386, %v1390
      %v1392 = vpack.c.bf16 %v1391, %v1391
      %v1393 = vpack.c.bf16 %v1327, %v1327
      %v1395 = vsel %vm629, %v1392, 0
      %v1398 = vsel %vm693, %v1393, 0
      %1400 = vmatprep.subr.bf16.mxu0 0
      %1401 = vmatpush1.bf16.msra.mxu0 0
      %1402 = vmatprep.subr.bf16.mxu0 0
      %1403 = vmatpush1.bf16.msra.mxu0 0
      %1404 = vmatprep.subr.bf16.mxu0 0
      %1405 = vmatpush1.bf16.msra.mxu0 0
      %1406 = vmatprep.subr.bf16.mxu0 0
      %1407 = vmatpush1.bf16.msra.mxu0 0
      %1408 = vmatprep.subr.bf16.mxu0 0
      %1409 = vmatpush1.bf16.msra.mxu0 0
      %1410 = vmatprep.subr.bf16.mxu0 0
      %1411 = vmatpush1.bf16.msra.mxu0 0
      %1412 = vmatprep.subr.bf16.mxu0 0
      %1413 = vmatpush1.bf16.msra.mxu0 0
      %1414 = vmatprep.subr.bf16.mxu0 0
      %1415 = vmatpush1.bf16.msra.mxu0 %v1398
      %1416 = vmatprep.subr.bf16.mxu0 0
      %1417 = vmatpush2.bf16.msra.mxu0 0
      %1418 = vmatprep.subr.bf16.mxu0 0
      %1419 = vmatpush2.bf16.msra.mxu0 0
      %1420 = vmatprep.subr.bf16.mxu0 0
      %1421 = vmatpush2.bf16.msra.mxu0 0
      %1422 = vmatprep.subr.bf16.mxu0 0
      %1423 = vmatpush2.bf16.msra.mxu0 0
      %1424 = vmatprep.subr.bf16.mxu0 0
      %1425 = vmatpush2.bf16.msra.mxu0 0
      %1426 = vmatprep.subr.bf16.mxu0 0
      %1427 = vmatpush2.bf16.msra.mxu0 0
      %1428 = vmatprep.subr.bf16.mxu0 0
      %1429 = vmatpush2.bf16.msra.mxu0 0
      %1430 = vmatprep.subr.bf16.mxu0 0
      %1431 = vmatpush2.bf16.msra.mxu0 0
      %1432 = vmatprep.mubr.bf16.mxu0 0
      %1433 = vmatmul.mubr.bf16.gmra.mxu0 %v1395
      %v1434 = vpop.f32.mrf.mxu0
      %v1435 = vadd.f32 0.0, %v1434
      %v1436 = vpop.f32.mrf.mxu0
      %v1437 = vpop.f32.mrf.mxu0
      %v1438 = vpop.f32.mrf.mxu0
      %1439 = vdwg.mxu0
      %v1440 = vpack.c.bf16 %v1435, %v1435
      %s1441 = scalar_lea.vmem %s8, 8
      %v1442 = vld [vmem:[%s1441] sm:$0xf]
      %v1444 = vsel %vm629, %v1440, 0
      %v1447 = vsel %vm693, %v1442, 0
      %1449 = vmatprep.subr.bf16.mxu0 0
      %1450 = vmatpush1.bf16.msra.mxu0 0
      %1451 = vmatprep.subr.bf16.mxu0 0
      %1452 = vmatpush1.bf16.msra.mxu0 0
      %1453 = vmatprep.subr.bf16.mxu0 0
      %1454 = vmatpush1.bf16.msra.mxu0 0
      %1455 = vmatprep.subr.bf16.mxu0 0
      %1456 = vmatpush1.bf16.msra.mxu0 0
      %1457 = vmatprep.subr.bf16.mxu0 0
      %1458 = vmatpush1.bf16.msra.mxu0 0
      %1459 = vmatprep.subr.bf16.mxu0 0
      %1460 = vmatpush1.bf16.msra.mxu0 0
      %1461 = vmatprep.subr.bf16.mxu0 0
      %1462 = vmatpush1.bf16.msra.mxu0 0
      %1463 = vmatprep.subr.bf16.mxu0 0
      %1464 = vmatpush1.bf16.msra.mxu0 %v1447
      %1465 = vmatprep.subr.bf16.mxu0 0
      %1466 = vmatpush2.bf16.msra.mxu0 0
      %1467 = vmatprep.subr.bf16.mxu0 0
      %1468 = vmatpush2.bf16.msra.mxu0 0
      %1469 = vmatprep.subr.bf16.mxu0 0
      %1470 = vmatpush2.bf16.msra.mxu0 0
      %1471 = vmatprep.subr.bf16.mxu0 0
      %1472 = vmatpush2.bf16.msra.mxu0 0
      %1473 = vmatprep.subr.bf16.mxu0 0
      %1474 = vmatpush2.bf16.msra.mxu0 0
      %1475 = vmatprep.subr.bf16.mxu0 0
      %1476 = vmatpush2.bf16.msra.mxu0 0
      %1477 = vmatprep.subr.bf16.mxu0 0
      %1478 = vmatpush2.bf16.msra.mxu0 0
      %1479 = vmatprep.subr.bf16.mxu0 0
      %1480 = vmatpush2.bf16.msra.mxu0 0
      %1481 = vmatprep.mubr.bf16.mxu0 0
      %1482 = vmatmul.mubr.bf16.gmra.mxu0 %v1444
      %v1483 = vpop.f32.mrf.mxu0
      %v1484 = vadd.f32 0.0, %v1483
      %v1485 = vpop.f32.mrf.mxu0
      %v1486 = vpop.f32.mrf.mxu0
      %v1487 = vpop.f32.mrf.mxu0
      %1488 = vdwg.mxu0
      %v1489 = vadd.f32 %v1132, %v1484
      %s1490 = scalar_lea.vmem %s2, 48
      %v1491 = vld [vmem:[%s1490] sm:$0xf]
      %v1492 = vld [vmem:[%s1490 + $0x4] sm:$0xf]
      %v1493 = vld [vmem:[%s1490 + $0x8] sm:$0xf]
      %v1494 = vld [vmem:[%s1490 + $0xc] sm:$0xf]
      %s1495 = scalar_lea.vmem %s5, 3
      %v1496 = vld [vmem:[%s1495] sm:$0x1]
      %v1498 = vlaneseq
      %v1499 = vshrl.u32 %v1498, 7
      %v1500 = vsub.s32 0, %v1499
      %v1501 = vrot.slane %v1496, %v1500
      %v1507 = vunpack.c.l.b16 %v1491
      %v1508 = vunpack.c.l.b16 %v1492
      %v1509 = vunpack.c.l.b16 %v1493
      %v1510 = vunpack.c.l.b16 %v1494
      %v1511 = vpack.c.b16 %v1508, %v1507
      %v1512 = vpack.c.b16 %v1510, %v1509
      %1515 = vmatprep.subr.bf16.mxu0 0
      %1516 = vmatpush1.bf16.msra.mxu0 0
      %1517 = vmatprep.subr.bf16.mxu0 0
      %1518 = vmatpush1.bf16.msra.mxu0 0
      %1519 = vmatprep.subr.bf16.mxu0 0
      %1520 = vmatpush1.bf16.msra.mxu0 0
      %1521 = vmatprep.subr.bf16.mxu0 0
      %1522 = vmatpush1.bf16.msra.mxu0 0
      %1523 = vmatprep.subr.bf16.mxu0 0
      %1524 = vmatpush1.bf16.msra.mxu0 0
      %1525 = vmatprep.subr.bf16.mxu0 0
      %1526 = vmatpush1.bf16.msra.mxu0 0
      %1527 = vmatprep.subr.bf16.mxu0 0
      %1528 = vmatpush1.bf16.msra.mxu0 %v1512
      %1529 = vmatprep.subr.bf16.mxu0 0
      %1530 = vmatpush1.bf16.msra.mxu0 %v1511
      %1531 = vmatprep.subr.bf16.mxu0 0
      %1532 = vmatpush2.bf16.msra.mxu0 0
      %1533 = vmatprep.subr.bf16.mxu0 0
      %1534 = vmatpush2.bf16.msra.mxu0 0
      %1535 = vmatprep.subr.bf16.mxu0 0
      %1536 = vmatpush2.bf16.msra.mxu0 0
      %1537 = vmatprep.subr.bf16.mxu0 0
      %1538 = vmatpush2.bf16.msra.mxu0 0
      %1539 = vmatprep.subr.bf16.mxu0 0
      %1540 = vmatpush2.bf16.msra.mxu0 0
      %1541 = vmatprep.subr.bf16.mxu0 0
      %1542 = vmatpush2.bf16.msra.mxu0 0
      %1543 = vmatprep.subr.bf16.mxu0 0
      %1544 = vmatpush2.bf16.msra.mxu0 0
      %1545 = vmatprep.subr.bf16.mxu0 0
      %1546 = vmatpush2.bf16.msra.mxu0 0
      %1547 = vmatprep.mubr.bf16.mxu0 0
      %1548 = vmatmul.mubr.bf16.gmra.mxu0 %v456
      %v1549 = vpop.f32.mrf.mxu0
      %v1550 = vadd.f32 %v1501, %v1549
      %v1551 = vpop.f32.mrf.mxu0
      %v1552 = vpop.f32.mrf.mxu0
      %v1553 = vpop.f32.mrf.mxu0
      %1554 = vdwg.mxu0
      %s1555 = scalar_lea.vmem %s3, 48
      %v1556 = vld [vmem:[%s1555] sm:$0xf]
      %v1557 = vld [vmem:[%s1555 + $0x4] sm:$0xf]
      %v1558 = vld [vmem:[%s1555 + $0x8] sm:$0xf]
      %v1559 = vld [vmem:[%s1555 + $0xc] sm:$0xf]
      %s1560 = scalar_lea.vmem %s6, 3
      %v1561 = vld [vmem:[%s1560] sm:$0x1]
      %v1563 = vlaneseq
      %v1564 = vshrl.u32 %v1563, 7
      %v1565 = vsub.s32 0, %v1564
      %v1566 = vrot.slane %v1561, %v1565
      %v1572 = vunpack.c.l.b16 %v1556
      %v1573 = vunpack.c.l.b16 %v1557
      %v1574 = vunpack.c.l.b16 %v1558
      %v1575 = vunpack.c.l.b16 %v1559
      %v1576 = vpack.c.b16 %v1573, %v1572
      %v1577 = vpack.c.b16 %v1575, %v1574
      %1580 = vmatprep.subr.bf16.mxu0 0
      %1581 = vmatpush1.bf16.msra.mxu0 0
      %1582 = vmatprep.subr.bf16.mxu0 0
      %1583 = vmatpush1.bf16.msra.mxu0 0
      %1584 = vmatprep.subr.bf16.mxu0 0
      %1585 = vmatpush1.bf16.msra.mxu0 0
      %1586 = vmatprep.subr.bf16.mxu0 0
      %1587 = vmatpush1.bf16.msra.mxu0 0
      %1588 = vmatprep.subr.bf16.mxu0 0
      %1589 = vmatpush1.bf16.msra.mxu0 0
      %1590 = vmatprep.subr.bf16.mxu0 0
      %1591 = vmatpush1.bf16.msra.mxu0 0
      %1592 = vmatprep.subr.bf16.mxu0 0
      %1593 = vmatpush1.bf16.msra.mxu0 %v1577
      %1594 = vmatprep.subr.bf16.mxu0 0
      %1595 = vmatpush1.bf16.msra.mxu0 %v1576
      %1596 = vmatprep.subr.bf16.mxu0 0
      %1597 = vmatpush2.bf16.msra.mxu0 0
      %1598 = vmatprep.subr.bf16.mxu0 0
      %1599 = vmatpush2.bf16.msra.mxu0 0
      %1600 = vmatprep.subr.bf16.mxu0 0
      %1601 = vmatpush2.bf16.msra.mxu0 0
      %1602 = vmatprep.subr.bf16.mxu0 0
      %1603 = vmatpush2.bf16.msra.mxu0 0
      %1604 = vmatprep.subr.bf16.mxu0 0
      %1605 = vmatpush2.bf16.msra.mxu0 0
      %1606 = vmatprep.subr.bf16.mxu0 0
      %1607 = vmatpush2.bf16.msra.mxu0 0
      %1608 = vmatprep.subr.bf16.mxu0 0
      %1609 = vmatpush2.bf16.msra.mxu0 0
      %1610 = vmatprep.subr.bf16.mxu0 0
      %1611 = vmatpush2.bf16.msra.mxu0 0
      %1612 = vmatprep.mubr.bf16.mxu0 0
      %1613 = vmatmul.mubr.bf16.gmra.mxu0 %v522
      %v1614 = vpop.f32.mrf.mxu0
      %v1615 = vadd.f32 %v1566, %v1614
      %v1616 = vpop.f32.mrf.mxu0
      %v1617 = vpop.f32.mrf.mxu0
      %v1618 = vpop.f32.mrf.mxu0
      %1619 = vdwg.mxu0
      %s1620 = scalar_lea.vmem %s4, 48
      %v1621 = vld [vmem:[%s1620] sm:$0xf]
      %v1622 = vld [vmem:[%s1620 + $0x4] sm:$0xf]
      %v1623 = vld [vmem:[%s1620 + $0x8] sm:$0xf]
      %v1624 = vld [vmem:[%s1620 + $0xc] sm:$0xf]
      %s1625 = scalar_lea.vmem %s7, 3
      %v1626 = vld [vmem:[%s1625] sm:$0x1]
      %v1628 = vlaneseq
      %v1629 = vshrl.u32 %v1628, 7
      %v1630 = vsub.s32 0, %v1629
      %v1631 = vrot.slane %v1626, %v1630
      %v1637 = vunpack.c.l.b16 %v1621
      %v1638 = vunpack.c.l.b16 %v1622
      %v1639 = vunpack.c.l.b16 %v1623
      %v1640 = vunpack.c.l.b16 %v1624
      %v1641 = vpack.c.b16 %v1638, %v1637
      %v1642 = vpack.c.b16 %v1640, %v1639
      %1645 = vmatprep.subr.bf16.mxu0 0
      %1646 = vmatpush1.bf16.msra.mxu0 0
      %1647 = vmatprep.subr.bf16.mxu0 0
      %1648 = vmatpush1.bf16.msra.mxu0 0
      %1649 = vmatprep.subr.bf16.mxu0 0
      %1650 = vmatpush1.bf16.msra.mxu0 0
      %1651 = vmatprep.subr.bf16.mxu0 0
      %1652 = vmatpush1.bf16.msra.mxu0 0
      %1653 = vmatprep.subr.bf16.mxu0 0
      %1654 = vmatpush1.bf16.msra.mxu0 0
      %1655 = vmatprep.subr.bf16.mxu0 0
      %1656 = vmatpush1.bf16.msra.mxu0 0
      %1657 = vmatprep.subr.bf16.mxu0 0
      %1658 = vmatpush1.bf16.msra.mxu0 %v1642
      %1659 = vmatprep.subr.bf16.mxu0 0
      %1660 = vmatpush1.bf16.msra.mxu0 %v1641
      %1661 = vmatprep.subr.bf16.mxu0 0
      %1662 = vmatpush2.bf16.msra.mxu0 0
      %1663 = vmatprep.subr.bf16.mxu0 0
      %1664 = vmatpush2.bf16.msra.mxu0 0
      %1665 = vmatprep.subr.bf16.mxu0 0
      %1666 = vmatpush2.bf16.msra.mxu0 0
      %1667 = vmatprep.subr.bf16.mxu0 0
      %1668 = vmatpush2.bf16.msra.mxu0 0
      %1669 = vmatprep.subr.bf16.mxu0 0
      %1670 = vmatpush2.bf16.msra.mxu0 0
      %1671 = vmatprep.subr.bf16.mxu0 0
      %1672 = vmatpush2.bf16.msra.mxu0 0
      %1673 = vmatprep.subr.bf16.mxu0 0
      %1674 = vmatpush2.bf16.msra.mxu0 0
      %1675 = vmatprep.subr.bf16.mxu0 0
      %1676 = vmatpush2.bf16.msra.mxu0 0
      %1677 = vmatprep.mubr.bf16.mxu0 0
      %1678 = vmatmul.mubr.bf16.gmra.mxu0 %v522
      %v1679 = vpop.f32.mrf.mxu0
      %v1680 = vadd.f32 %v1631, %v1679
      %v1681 = vpop.f32.mrf.mxu0
      %v1682 = vpop.f32.mrf.mxu0
      %v1683 = vpop.f32.mrf.mxu0
      %1684 = vdwg.mxu0
      %v1685 = vpack.c.bf16 %v1550, %v1550
      %v1686 = vpack.c.bf16 %v1615, %v1615
      %v1688 = vsel %vm629, %v1685, 0
      %v1691 = vsel %vm629, %v1686, 0
      %1693 = vmatprep.subr.bf16.mxu0 0
      %1694 = vmatpush1.bf16.xpose.msra.mxu0 0
      %1695 = vmatprep.subr.bf16.mxu0 0
      %1696 = vmatpush1.bf16.xpose.msra.mxu0 0
      %1697 = vmatprep.subr.bf16.mxu0 0
      %1698 = vmatpush1.bf16.xpose.msra.mxu0 0
      %1699 = vmatprep.subr.bf16.mxu0 0
      %1700 = vmatpush1.bf16.xpose.msra.mxu0 0
      %1701 = vmatprep.subr.bf16.mxu0 0
      %1702 = vmatpush1.bf16.xpose.msra.mxu0 0
      %1703 = vmatprep.subr.bf16.mxu0 0
      %1704 = vmatpush1.bf16.xpose.msra.mxu0 0
      %1705 = vmatprep.subr.bf16.mxu0 0
      %1706 = vmatpush1.bf16.xpose.msra.mxu0 0
      %1707 = vmatprep.subr.bf16.mxu0 0
      %1708 = vmatpush1.bf16.xpose.msra.mxu0 %v1691
      %1709 = vmatprep.subr.bf16.mxu0 0
      %1710 = vmatpush2.bf16.xpose.msra.mxu0 0
      %1711 = vmatprep.subr.bf16.mxu0 0
      %1712 = vmatpush2.bf16.xpose.msra.mxu0 0
      %1713 = vmatprep.subr.bf16.mxu0 0
      %1714 = vmatpush2.bf16.xpose.msra.mxu0 0
      %1715 = vmatprep.subr.bf16.mxu0 0
      %1716 = vmatpush2.bf16.xpose.msra.mxu0 0
      %1717 = vmatprep.subr.bf16.mxu0 0
      %1718 = vmatpush2.bf16.xpose.msra.mxu0 0
      %1719 = vmatprep.subr.bf16.mxu0 0
      %1720 = vmatpush2.bf16.xpose.msra.mxu0 0
      %1721 = vmatprep.subr.bf16.mxu0 0
      %1722 = vmatpush2.bf16.xpose.msra.mxu0 0
      %1723 = vmatprep.subr.bf16.mxu0 0
      %1724 = vmatpush2.bf16.xpose.msra.mxu0 0
      %1725 = vmatprep.mubr.bf16.mxu0 0
      %1726 = vmatmul.mubr.bf16.gmra.mxu0 %v1688
      %v1727 = vpop.f32.mrf.mxu0
      %v1728 = vadd.f32 0.0, %v1727
      %v1729 = vpop.f32.mrf.mxu0
      %v1730 = vpop.f32.mrf.mxu0
      %v1731 = vpop.f32.mrf.mxu0
      %1732 = vdwg.mxu0
      %v1733 = vmul.f32 %v1728, 0.35355338
      %v1734 = vsel %vm629, %v1733, -inf
      %1735 = vmax.xlane.f32.xlu0 %v1734
      %v1736 = vpop.xlane.xlu0 %1735
      %v1737 = vsub.f32 %v1733, %v1736
      %v1738 = vmul.f32 %v1737, 1.442695
      %v1739 = vpow.pop %v1738
      %v1740 = vsel %vm629, %v1739, 0.0
      %1741 = vadd.xlane.f32.xlu0 %v1740
      %v1742 = vpop.xlane.xlu0 %1741
      %v1743 = vrcp.pop %v1742
      %v1744 = vmul.f32 %v1739, %v1743
      %v1745 = vpack.c.bf16 %v1744, %v1744
      %v1746 = vpack.c.bf16 %v1680, %v1680
      %v1748 = vsel %vm629, %v1745, 0
      %v1751 = vsel %vm693, %v1746, 0
      %1753 = vmatprep.subr.bf16.mxu0 0
      %1754 = vmatpush1.bf16.msra.mxu0 0
      %1755 = vmatprep.subr.bf16.mxu0 0
      %1756 = vmatpush1.bf16.msra.mxu0 0
      %1757 = vmatprep.subr.bf16.mxu0 0
      %1758 = vmatpush1.bf16.msra.mxu0 0
      %1759 = vmatprep.subr.bf16.mxu0 0
      %1760 = vmatpush1.bf16.msra.mxu0 0
      %1761 = vmatprep.subr.bf16.mxu0 0
      %1762 = vmatpush1.bf16.msra.mxu0 0
      %1763 = vmatprep.subr.bf16.mxu0 0
      %1764 = vmatpush1.bf16.msra.mxu0 0
      %1765 = vmatprep.subr.bf16.mxu0 0
      %1766 = vmatpush1.bf16.msra.mxu0 0
      %1767 = vmatprep.subr.bf16.mxu0 0
      %1768 = vmatpush1.bf16.msra.mxu0 %v1751
      %1769 = vmatprep.subr.bf16.mxu0 0
      %1770 = vmatpush2.bf16.msra.mxu0 0
      %1771 = vmatprep.subr.bf16.mxu0 0
      %1772 = vmatpush2.bf16.msra.mxu0 0
      %1773 = vmatprep.subr.bf16.mxu0 0
      %1774 = vmatpush2.bf16.msra.mxu0 0
      %1775 = vmatprep.subr.bf16.mxu0 0
      %1776 = vmatpush2.bf16.msra.mxu0 0
      %1777 = vmatprep.subr.bf16.mxu0 0
      %1778 = vmatpush2.bf16.msra.mxu0 0
      %1779 = vmatprep.subr.bf16.mxu0 0
      %1780 = vmatpush2.bf16.msra.mxu0 0
      %1781 = vmatprep.subr.bf16.mxu0 0
      %1782 = vmatpush2.bf16.msra.mxu0 0
      %1783 = vmatprep.subr.bf16.mxu0 0
      %1784 = vmatpush2.bf16.msra.mxu0 0
      %1785 = vmatprep.mubr.bf16.mxu0 0
      %1786 = vmatmul.mubr.bf16.gmra.mxu0 %v1748
      %v1787 = vpop.f32.mrf.mxu0
      %v1788 = vadd.f32 0.0, %v1787
      %v1789 = vpop.f32.mrf.mxu0
      %v1790 = vpop.f32.mrf.mxu0
      %v1791 = vpop.f32.mrf.mxu0
      %1792 = vdwg.mxu0
      %v1793 = vpack.c.bf16 %v1788, %v1788
      %s1794 = scalar_lea.vmem %s8, 12
      %v1795 = vld [vmem:[%s1794] sm:$0xf]
      %v1797 = vsel %vm629, %v1793, 0
      %v1800 = vsel %vm693, %v1795, 0
      %1802 = vmatprep.subr.bf16.mxu0 0
      %1803 = vmatpush1.bf16.msra.mxu0 0
      %1804 = vmatprep.subr.bf16.mxu0 0
      %1805 = vmatpush1.bf16.msra.mxu0 0
      %1806 = vmatprep.subr.bf16.mxu0 0
      %1807 = vmatpush1.bf16.msra.mxu0 0
      %1808 = vmatprep.subr.bf16.mxu0 0
      %1809 = vmatpush1.bf16.msra.mxu0 0
      %1810 = vmatprep.subr.bf16.mxu0 0
      %1811 = vmatpush1.bf16.msra.mxu0 0
      %1812 = vmatprep.subr.bf16.mxu0 0
      %1813 = vmatpush1.bf16.msra.mxu0 0
      %1814 = vmatprep.subr.bf16.mxu0 0
      %1815 = vmatpush1.bf16.msra.mxu0 0
      %1816 = vmatprep.subr.bf16.mxu0 0
      %1817 = vmatpush1.bf16.msra.mxu0 %v1800
      %1818 = vmatprep.subr.bf16.mxu0 0
      %1819 = vmatpush2.bf16.msra.mxu0 0
      %1820 = vmatprep.subr.bf16.mxu0 0
      %1821 = vmatpush2.bf16.msra.mxu0 0
      %1822 = vmatprep.subr.bf16.mxu0 0
      %1823 = vmatpush2.bf16.msra.mxu0 0
      %1824 = vmatprep.subr.bf16.mxu0 0
      %1825 = vmatpush2.bf16.msra.mxu0 0
      %1826 = vmatprep.subr.bf16.mxu0 0
      %1827 = vmatpush2.bf16.msra.mxu0 0
      %1828 = vmatprep.subr.bf16.mxu0 0
      %1829 = vmatpush2.bf16.msra.mxu0 0
      %1830 = vmatprep.subr.bf16.mxu0 0
      %1831 = vmatpush2.bf16.msra.mxu0 0
      %1832 = vmatprep.subr.bf16.mxu0 0
      %1833 = vmatpush2.bf16.msra.mxu0 0
      %1834 = vmatprep.mubr.bf16.mxu0 0
      %1835 = vmatmul.mubr.bf16.gmra.mxu0 %v1797
      %v1836 = vpop.f32.mrf.mxu0
      %v1837 = vadd.f32 0.0, %v1836
      %v1838 = vpop.f32.mrf.mxu0
      %v1839 = vpop.f32.mrf.mxu0
      %v1840 = vpop.f32.mrf.mxu0
      %1841 = vdwg.mxu0
      %v1842 = vadd.f32 %v1489, %v1837
      %v1843 = vld [vmem:[%s9] sm:$0x1]
      %v1845 = vlaneseq
      %v1846 = vshrl.u32 %v1845, 7
      %v1847 = vsub.s32 0, %v1846
      %v1848 = vrot.slane %v1843, %v1847
      %v1850 = vadd.f32 %v1842, %v1848
      %v1851 = vadd.f32 %v1850, %v427
      %v1852 = vsel %vm454, %v1851, 0.0
      %1853 = vadd.xlane.f32.xlu0 %v1852
      %v1854 = vpop.xlane.xlu0 %1853
      %v1855 = vrcp.pop 32.0
      %v1856 = vmul.f32 %v1854, %v1855
      %v1857 = vsub.f32 %v1851, %v1856
      %v1858 = vmul.f32 %v1857, %v1857
      %v1859 = vsel %vm454, %v1858, 0.0
      %1860 = vadd.xlane.f32.xlu0 %v1859
      %v1861 = vpop.xlane.xlu0 %1860
      %v1862 = vmul.f32 %v1861, %v1855
      %v1863 = vadd.f32 %v1862, 1e-05
      %v1864 = vrsqrt.pop %v1863
      %v1865 = vmul.f32 %v1857, %v1864
      %v1866 = vld [vmem:[%s10] sm:$0x1]
      %v1868 = vlaneseq
      %v1869 = vshrl.u32 %v1868, 7
      %v1870 = vsub.s32 0, %v1869
      %v1871 = vrot.slane %v1866, %v1870
      %v1873 = vmul.f32 %v1865, %v1871
      %v1874 = vld [vmem:[%s11] sm:$0x1]
      %v1876 = vlaneseq
      %v1877 = vshrl.u32 %v1876, 7
      %v1878 = vsub.s32 0, %v1877
      %v1879 = vrot.slane %v1874, %v1878
      %v1881 = vadd.f32 %v1873, %v1879
      %1882 = vst.msk [vmem:[%s425] sm:$0xff] %vm454, %v1881
      %p1883 = scmp.lt.s32.totalorder %s23, 1
      %s1884 = scalar_select %p1883, %s23, 1
      %s1885 = smul.addr %s1884, 8
      %s1886 = scalar_lea.vmem %s12, %s1885
      // Predicated region
      $region69: #{forward.19} parent=67 // pred_check
        %p1887 = pneg %p303
      $region70: #{forward.19} parent=67 // pred_check_branch
        %1889 = sbr.rel (%p1887) target = $region72
      $region71: #{forward.19} parent=67 // pred_region
        _
      $region72: #{forward.19} parent=67 // pred_fallthru
        _
    $region68: #{forward.19} parent=5 // pred_fallthru
      _
    %p1890 = scmp.le.s32.totalorder 2, %s18
    // Predicated region
    $region73: #{forward.19} parent=5 // pred_check
      %p1891 = pneg %p1890
    $region74: #{forward.19} parent=5 // pred_check_branch
      %1893 = sbr.rel (%p1891) target = $region76
    $region75: #{forward.19} parent=5 // pred_region
      %s1894 = ssub.s32 %s18, 2
      // Predicated region
      $region77: #{forward.19} parent=75 // pred_check
        %p1895 = pneg %p309
      $region78: #{forward.19} parent=75 // pred_check_branch
        %1897 = sbr.rel (%p1895) target = $region80
      $region79: #{forward.19} parent=75 // pred_region
        %p1898 = scmp.lt.s32.totalorder %s24, 1
        %s1899 = scalar_select %p1898, %s24, 1
        %s1900 = smul.addr %s1899, 8
        %s1901 = scalar_lea.vmem %s12, %s1900
      $region80: #{forward.19} parent=75 // pred_fallthru
        _
    $region76: #{forward.19} parent=5 // pred_fallthru
      _
  $region6: #{forward.19} parent=0 // loop_footer
    %s22 = sadd.s32 1, %s18
  $region7: #{forward.19} parent=0 // loop_footer_branch
    %17 = sbr.rel target = $region3
  $region8: #{forward.19} parent=0 // loop_exit
    _

</llo_original>
